<compile_context>
chip_gen: v6e
topology: v6e:2x2x1
jax: 0.10.0
libtpu: 0.0.40
codegen_flags: <defaults>
</compile_context>

<pallas_src>
import functools

import numpy as np
import jax
import jax.numpy as jnp
from jax import lax
from jax.experimental import pallas as pl
from jax.experimental.pallas import tpu as pltpu


def _round_up(x, m):
    return ((x + m - 1) // m) * m


# ------------------------------ Pallas kernel -------------------------------

def _lenet_kernel(xp_ref, t1_ref, b1_ref, t2_ref, b2_ref,
                  wf1_ref, bf1_ref, wf2_ref, bf2_ref, wf3_ref, bf3_ref,
                  out_ref, p1_scr, f1_scr):
    """Whole LeNet-5 forward for one batch tile.

    xp_ref : (4, 7, tb, 32)  input rows split by (row % 4) phase, width padded
    t1_ref : (5, 32, 256)    conv1 Toeplitz slabs, one per kernel row; the two
                             pool column phases are lane-padded to 128 each
    t2_ref : (5, 128, 256)   conv2 Toeplitz slabs (same layout)
    p1_scr : (2, 6*tb, 128)  pool1 output, split by pooled-row parity
    f1_scr : (tb, 512)       fc1 input slab (pool2 row-blocks in lane slices)
    """
    tb = out_ref.shape[0]
    cdt = t1_ref.dtype                     # bf16 MXU operands (f32 accumulate)

    # ---- conv1 (5x5, 1->6) + bias + ReLU + 2x2 max-pool (fused) ------------
    # Hoist the 8 distinct input row-slabs (one per absolute row offset
    # s = 2*q + rp + di); each is reused by several (q, rp, di) triples.
    x_slab = []
    for s in range(8):
        p, off = s % 4, s // 4
        blk = xp_ref[p, pl.ds(off, 6), :, :]                  # (6, tb, 32) f32
        x_slab.append(blk.reshape(6 * tb, 32).astype(cdt))

    for q in range(2):                     # parity of the pooled output row
        acc = None
        for rp in range(2):                # row inside the 2x2 pool window
            z = None
            for di in range(5):            # conv kernel row -> K accumulation
                part = jnp.dot(x_slab[2 * q + rp + di], t1_ref[di],
                               preferred_element_type=jnp.float32)  # (6tb,256)
                z = part if z is None else z + part
            acc = z if acc is None else jnp.maximum(acc, z)
        # max over the two pooling column phases = max of the 128-lane halves;
        # bias/ReLU commute with the window max (bias constant over window).
        pooled = jnp.maximum(acc[:, :128], acc[:, 128:])
        p1_scr[q] = jnp.maximum(pooled + b1_ref[...], 0.0)    # (6tb, 128)

    # ---- conv2 (5x5, 6->16) + bias + ReLU + 2x2 max-pool (fused) -----------
    p1_slab = []
    for s in range(6):                     # s = rp + di
        q2, off = s % 2, s // 2
        p1_slab.append(p1_scr[q2, pl.ds(off * tb, 4 * tb), :].astype(cdt))

    acc2 = None
    for rp in range(2):
        z2 = None
        for di in range(5):
            part = jnp.dot(p1_slab[rp + di], t2_ref[di],
                           preferred_element_type=jnp.float32)      # (4tb,256)
            z2 = part if z2 is None else z2 + part
        acc2 = z2 if acc2 is None else jnp.maximum(acc2, z2)
    pooled2 = jnp.maximum(acc2[:, :128], acc2[:, 128:])
    p2 = jnp.maximum(pooled2 + b2_ref[...], 0.0)              # (4tb, 128)

    # ---- fc1 (256->120) as ONE matmul: stage pool2 row-blocks into
    #      128-aligned lane slices of a (tb, 512) slab, then a single dot.
    for r in range(4):
        f1_scr[:, r * 128:(r + 1) * 128] = p2[r * tb:(r + 1) * tb, :]

    h = jnp.dot(f1_scr[...].astype(cdt), wf1_ref[...],
                preferred_element_type=jnp.float32) + bf1_ref[...]
    h = jnp.maximum(h, 0.0)
    # ---- fc2 (120->84) + ReLU, fc3 (84->odim) + ReLU (module has final ReLU)
    h = jnp.dot(h.astype(cdt), wf2_ref[...],
                preferred_element_type=jnp.float32) + bf2_ref[...]
    h = jnp.maximum(h, 0.0)
    h = jnp.dot(h.astype(cdt), wf3_ref[...],
                preferred_element_type=jnp.float32) + bf3_ref[...]
    out_ref[...] = jnp.maximum(h, 0.0)     # lane-dense (tb, 128) store


# --------------------------- host-side weight prep ---------------------------

def prepare_params(params, compute_dtype=jnp.bfloat16):
    """One-time packing: phase-merged lane-padded Toeplitz conv slabs (bf16),
    tiled biases (f32), and padded/permuted FC weights (bf16)."""
    w1 = np.asarray(params["w1"], np.float32)    # (6, 1, 5, 5)
    b1 = np.asarray(params["b1"], np.float32)    # (6,)
    w2 = np.asarray(params["w2"], np.float32)    # (16, 6, 5, 5)
    b2 = np.asarray(params["b2"], np.float32)    # (16,)
    wf1 = np.asarray(params["wf1"], np.float32)  # (120, 256)
    bf1 = np.asarray(params["bf1"], np.float32)
    wf2 = np.asarray(params["wf2"], np.float32)  # (84, 120)
    bf2 = np.asarray(params["bf2"], np.float32)
    wf3 = np.asarray(params["wf3"], np.float32)  # (odim, 84)
    bf3 = np.asarray(params["bf3"], np.float32)
    odim = wf3.shape[0]
    assert odim <= 128

    # conv1 Toeplitz, one slab per kernel row di:
    #   rows : input column j_in (28 valid of 32, width zero-padded)
    #   cols : cp*128 + oj*6 + co   (cp = pool col phase, oj = pooled col)
    t1 = np.zeros((5, 32, 256), np.float32)
    for di in range(5):
        for cp in range(2):
            for oj in range(12):
                for dj in range(5):
                    j_in = 2 * oj + cp + dj
                    t1[di, j_in, cp * 128 + oj * 6:cp * 128 + oj * 6 + 6] = \
                        w1[:, 0, di, dj]

    # conv2 Toeplitz: rows = j1*6 + c1 (72 valid of 128, matches p1 lanes),
    #                 cols = cp*128 + oj2*16 + c2 (64 valid per 128-half).
    t2 = np.zeros((5, 128, 256), np.float32)
    for di in range(5):
        for cp in range(2):
            for oj in range(4):
                for dj in range(5):
                    j1 = 2 * oj + cp + dj
                    for c1 in range(6):
                        t2[di, j1 * 6 + c1,
                           cp * 128 + oj * 16:cp * 128 + oj * 16 + 16] = \
                            w2[:, c1, di, dj]

    b1p = np.zeros((1, 128), np.float32); b1p[0, :72] = np.tile(b1, 12)
    b2p = np.zeros((1, 128), np.float32); b2p[0, :64] = np.tile(b2, 4)

    # fc1: fold the torch NCHW flatten (f = d*16 + r*4 + oj2) and the .T into
    # a (512, 128) matrix whose rows match the kernel's staged layout
    # (row = r*128 + oj2*16 + d).
    wf1m = np.zeros((512, 128), np.float32)
    for r in range(4):
        for oj2 in range(4):
            for d in range(16):
                wf1m[r * 128 + oj2 * 16 + d, :120] = wf1[:, d * 16 + r * 4 + oj2]
    wf2m = np.zeros((128, 128), np.float32); wf2m[:120, :84] = wf2.T
    wf3m = np.zeros((128, 128), np.float32); wf3m[:84, :odim] = wf3.T
    bf1p = np.zeros((1, 128), np.float32); bf1p[0, :120] = bf1
    bf2p = np.zeros((1, 128), np.float32); bf2p[0, :84] = bf2
    bf3p = np.zeros((1, 128), np.float32); bf3p[0, :odim] = bf3

    cdt = compute_dtype   # set to jnp.float32 for bit-closer f32 parity
    return dict(
        t1=jnp.asarray(t1, cdt), b1=jnp.asarray(b1p),
        t2=jnp.asarray(t2, cdt), b2=jnp.asarray(b2p),
        wf1=jnp.asarray(wf1m, cdt), bf1=jnp.asarray(bf1p),
        wf2=jnp.asarray(wf2m, cdt), bf2=jnp.asarray(bf2p),
        wf3=jnp.asarray(wf3m, cdt), bf3=jnp.asarray(bf3p),
    )


# --------------------------------- forward -----------------------------------

def lenet_forward(prep, x_nchw, *, output_dim=10, max_tile_b=128):
    """max_tile_b: 128 is safe everywhere; raise to 256 on v6e/v7x for larger
    batches (keep n_tiles >= 2 on v7x so both TensorCores get grid steps)."""
    B, C, H, W = x_nchw.shape
    assert C == 1 and H == 28 and W == 28, "LeNet-5 (fc1=256) expects (B,1,28,28)"
    tile_b = int(min(max_tile_b, _round_up(B, 8)))
    n_tiles = pl.cdiv(B, tile_b)
    Bp = n_tiles * tile_b

    # Cheap input re-layout: pad batch + width (28->32), put batch second-to-
    # last, split rows by (row % 4) so the kernel only does contiguous reads.
    x_img = jnp.pad(x_nchw[:, 0, :, :], ((0, Bp - B), (0, 0), (0, 32 - W)))
    xr = jnp.transpose(x_img, (1, 0, 2))                       # (28, Bp, 32)
    xp = jnp.stack([xr[p::4] for p in range(4)], axis=0)       # (4, 7, Bp, 32)

    def _resident(shape):
        zeros = (0,) * len(shape)
        return pl.BlockSpec(shape, lambda t, _z=zeros: _z)     # VMEM-resident

    in_specs = [
        pl.BlockSpec((4, 7, tile_b, 32), lambda t: (0, 0, t, 0)),  # input tile
        _resident((5, 32, 256)),    # t1
        _resident((1, 128)),        # b1
        _resident((5, 128, 256)),   # t2
        _resident((1, 128)),        # b2
        _resident((512, 128)),      # wf1
        _resident((1, 128)),        # bf1
        _resident((128, 128)),      # wf2
        _resident((1, 128)),        # bf2
        _resident((128, 128)),      # wf3
        _resident((1, 128)),        # bf3
    ]
    out_specs = pl.BlockSpec((tile_b, 128), lambda t: (t, 0))

    out = pl.pallas_call(
        _lenet_kernel,
        out_shape=jax.ShapeDtypeStruct((Bp, 128), jnp.float32),
        grid_spec=pltpu.PrefetchScalarGridSpec(
            num_scalar_prefetch=0,
            grid=(n_tiles,),
            in_specs=in_specs,
            out_specs=out_specs,
            scratch_shapes=[
                pltpu.VMEM((2, 6 * tile_b, 128), jnp.float32),  # pool1 output
                pltpu.VMEM((tile_b, 512), jnp.float32),         # fc1 input slab
            ],
        ),
        compiler_params=pltpu.CompilerParams(
            dimension_semantics=("parallel",),
            vmem_limit_bytes=32 * 1024 * 1024),
    )(xp, prep["t1"], prep["b1"], prep["t2"], prep["b2"],
      prep["wf1"], prep["bf1"], prep["wf2"], prep["bf2"],
      prep["wf3"], prep["bf3"])

    return out[:B, :output_dim]


# -------------------------------- reference ----------------------------------

def lenet_forward_ref(params, x_nchw):
    """Pure-JAX f32 reference with the original torch semantics."""
    dn = ("NCHW", "OIHW", "NCHW")
    y = lax.conv_general_dilated(x_nchw, params["w1"], (1, 1), "VALID",
                                 dimension_numbers=dn)
    y = jnp.maximum(y + params["b1"][None, :, None, None], 0.0)
    y = lax.reduce_window(y, -jnp.inf, lax.max, (1, 1, 2, 2), (1, 1, 2, 2), "VALID")
    y = lax.conv_general_dilated(y, params["w2"], (1, 1), "VALID",
                                 dimension_numbers=dn)
    y = jnp.maximum(y + params["b2"][None, :, None, None], 0.0)
    y = lax.reduce_window(y, -jnp.inf, lax.max, (1, 1, 2, 2), (1, 1, 2, 2), "VALID")
    y = y.reshape(y.shape[0], -1)
    y = jnp.maximum(y @ params["wf1"].T + params["bf1"], 0.0)
    y = jnp.maximum(y @ params["wf2"].T + params["bf2"], 0.0)
    y = jnp.maximum(y @ params["wf3"].T + params["bf3"], 0.0)
    return y


# ----------------------------------- main -------------------------------------

def init_params(key, output_dim=10):
    ks = jax.random.split(key, 10)
    s = 0.1
    return {
        "w1": s * jax.random.normal(ks[0], (6, 1, 5, 5), jnp.float32),
        "b1": s * jax.random.normal(ks[1], (6,), jnp.float32),
        "w2": s * jax.random.normal(ks[2], (16, 6, 5, 5), jnp.float32),
        "b2": s * jax.random.normal(ks[3], (16,), jnp.float32),
        "wf1": s * jax.random.normal(ks[4], (120, 256), jnp.float32),
        "bf1": s * jax.random.normal(ks[5], (120,), jnp.float32),
        "wf2": s * jax.random.normal(ks[6], (84, 120), jnp.float32),
        "bf2": s * jax.random.normal(ks[7], (84,), jnp.float32),
        "wf3": s * jax.random.normal(ks[8], (output_dim, 84), jnp.float32),
        "bf3": s * jax.random.normal(ks[9], (output_dim,), jnp.float32),
    }


if __name__ == "__main__":
    key = jax.random.PRNGKey(0)
    k_param, k_x = jax.random.split(key)
    params = init_params(k_param, output_dim=10)
    prep = prepare_params(params)     # one-time weight packing (host side)

    # fc1 expects 256 = 16*4*4 features, which forces 28x28 spatial input.
    x = jax.random.normal(k_x, (2, 1, 28, 28), jnp.float32)

    fwd = jax.jit(functools.partial(lenet_forward, output_dim=10))
    out = jax.block_until_ready(fwd(prep, x))
    assert out.shape == (2, 10) and out.dtype == jnp.float32

    ref = jax.block_until_ready(lenet_forward_ref(params, x))
    # Tolerance reflects bf16 MXU operands (per the perf guidance) vs the pure
    # f32 reference; structural/indexing errors would be orders larger.
    assert jnp.allclose(out, ref, atol=5e-2, rtol=5e-2), "mismatch vs reference"

    print("KERNEL_OK")
</pallas_src>

<mosaic_0001>
module attributes {stable_mosaic.version = 11 : i64} {
  func.func @_lenet_kernel(%arg0: i32, %arg1: memref<4x7x8x32xf32, #tpu.memory_space<vmem>>, %arg2: memref<5x32x256xbf16, #tpu.memory_space<vmem>>, %arg3: memref<1x128xf32, #tpu.memory_space<vmem>>, %arg4: memref<5x128x256xbf16, #tpu.memory_space<vmem>>, %arg5: memref<1x128xf32, #tpu.memory_space<vmem>>, %arg6: memref<512x128xbf16, #tpu.memory_space<vmem>>, %arg7: memref<1x128xf32, #tpu.memory_space<vmem>>, %arg8: memref<128x128xbf16, #tpu.memory_space<vmem>>, %arg9: memref<1x128xf32, #tpu.memory_space<vmem>>, %arg10: memref<128x128xbf16, #tpu.memory_space<vmem>>, %arg11: memref<1x128xf32, #tpu.memory_space<vmem>>, %arg12: memref<8x128xf32, #tpu.memory_space<vmem>>, %arg13: memref<2x48x128xf32, #tpu.memory_space<vmem>>, %arg14: memref<8x512xf32, #tpu.memory_space<vmem>>) attributes {dimension_semantics = [#tpu.dimension_semantics<parallel>], iteration_bounds = array<i64: 1>, scalar_prefetch = 0 : i64, scratch_operands = 2 : i64, tpu.core_type = #tpu.core_type<tc>, window_params = [{transform_indices = @transform_0, window_bounds = array<i64: 4, 7, 8, 32>}, {pipeline_mode = #tpu.pipeline_mode<synchronous>, transform_indices = @transform_1, window_bounds = array<i64: 5, 32, 256>}, {pipeline_mode = #tpu.pipeline_mode<synchronous>, transform_indices = @transform_2, window_bounds = array<i64: 1, 128>}, {pipeline_mode = #tpu.pipeline_mode<synchronous>, transform_indices = @transform_3, window_bounds = array<i64: 5, 128, 256>}, {pipeline_mode = #tpu.pipeline_mode<synchronous>, transform_indices = @transform_4, window_bounds = array<i64: 1, 128>}, {pipeline_mode = #tpu.pipeline_mode<synchronous>, transform_indices = @transform_5, window_bounds = array<i64: 512, 128>}, {pipeline_mode = #tpu.pipeline_mode<synchronous>, transform_indices = @transform_6, window_bounds = array<i64: 1, 128>}, {pipeline_mode = #tpu.pipeline_mode<synchronous>, transform_indices = @transform_7, window_bounds = array<i64: 128, 128>}, {pipeline_mode = #tpu.pipeline_mode<synchronous>, transform_indices = @transform_8, window_bounds = array<i64: 1, 128>}, {pipeline_mode = #tpu.pipeline_mode<synchronous>, transform_indices = @transform_9, window_bounds = array<i64: 128, 128>}, {pipeline_mode = #tpu.pipeline_mode<synchronous>, transform_indices = @transform_10, window_bounds = array<i64: 1, 128>}, {transform_indices = @transform_11, window_bounds = array<i64: 8, 128>}]} {
    %c0 = arith.constant 0 : index
    %c0_0 = arith.constant 0 : index
    %c0_1 = arith.constant 0 : index
    %c0_2 = arith.constant 0 : index
    %0 = vector.load %arg1[%c0, %c0_0, %c0_1, %c0_2] : memref<4x7x8x32xf32, #tpu.memory_space<vmem>>, vector<1x6x8x32xf32>
    %1 = vector.shape_cast %0 : vector<1x6x8x32xf32> to vector<6x8x32xf32>
    %2 = vector.shape_cast %1 : vector<6x8x32xf32> to vector<48x32xf32>
    %3 = arith.truncf %2 : vector<48x32xf32> to vector<48x32xbf16>
    %c1 = arith.constant 1 : index
    %c0_3 = arith.constant 0 : index
    %c0_4 = arith.constant 0 : index
    %c0_5 = arith.constant 0 : index
    %4 = vector.load %arg1[%c1, %c0_3, %c0_4, %c0_5] : memref<4x7x8x32xf32, #tpu.memory_space<vmem>>, vector<1x6x8x32xf32>
    %5 = vector.shape_cast %4 : vector<1x6x8x32xf32> to vector<6x8x32xf32>
    %6 = vector.shape_cast %5 : vector<6x8x32xf32> to vector<48x32xf32>
    %7 = arith.truncf %6 : vector<48x32xf32> to vector<48x32xbf16>
    %c2 = arith.constant 2 : index
    %c0_6 = arith.constant 0 : index
    %c0_7 = arith.constant 0 : index
    %c0_8 = arith.constant 0 : index
    %8 = vector.load %arg1[%c2, %c0_6, %c0_7, %c0_8] : memref<4x7x8x32xf32, #tpu.memory_space<vmem>>, vector<1x6x8x32xf32>
    %9 = vector.shape_cast %8 : vector<1x6x8x32xf32> to vector<6x8x32xf32>
    %10 = vector.shape_cast %9 : vector<6x8x32xf32> to vector<48x32xf32>
    %11 = arith.truncf %10 : vector<48x32xf32> to vector<48x32xbf16>
    %c3 = arith.constant 3 : index
    %c0_9 = arith.constant 0 : index
    %c0_10 = arith.constant 0 : index
    %c0_11 = arith.constant 0 : index
    %12 = vector.load %arg1[%c3, %c0_9, %c0_10, %c0_11] : memref<4x7x8x32xf32, #tpu.memory_space<vmem>>, vector<1x6x8x32xf32>
    %13 = vector.shape_cast %12 : vector<1x6x8x32xf32> to vector<6x8x32xf32>
    %14 = vector.shape_cast %13 : vector<6x8x32xf32> to vector<48x32xf32>
    %15 = arith.truncf %14 : vector<48x32xf32> to vector<48x32xbf16>
    %c0_12 = arith.constant 0 : index
    %c1_13 = arith.constant 1 : index
    %c0_14 = arith.constant 0 : index
    %c0_15 = arith.constant 0 : index
    %16 = vector.load %arg1[%c0_12, %c1_13, %c0_14, %c0_15] : memref<4x7x8x32xf32, #tpu.memory_space<vmem>>, vector<1x6x8x32xf32>
    %17 = vector.shape_cast %16 : vector<1x6x8x32xf32> to vector<6x8x32xf32>
    %18 = vector.shape_cast %17 : vector<6x8x32xf32> to vector<48x32xf32>
    %19 = arith.truncf %18 : vector<48x32xf32> to vector<48x32xbf16>
    %c1_16 = arith.constant 1 : index
    %c1_17 = arith.constant 1 : index
    %c0_18 = arith.constant 0 : index
    %c0_19 = arith.constant 0 : index
    %20 = vector.load %arg1[%c1_16, %c1_17, %c0_18, %c0_19] : memref<4x7x8x32xf32, #tpu.memory_space<vmem>>, vector<1x6x8x32xf32>
    %21 = vector.shape_cast %20 : vector<1x6x8x32xf32> to vector<6x8x32xf32>
    %22 = vector.shape_cast %21 : vector<6x8x32xf32> to vector<48x32xf32>
    %23 = arith.truncf %22 : vector<48x32xf32> to vector<48x32xbf16>
    %c2_20 = arith.constant 2 : index
    %c1_21 = arith.constant 1 : index
    %c0_22 = arith.constant 0 : index
    %c0_23 = arith.constant 0 : index
    %24 = vector.load %arg1[%c2_20, %c1_21, %c0_22, %c0_23] : memref<4x7x8x32xf32, #tpu.memory_space<vmem>>, vector<1x6x8x32xf32>
    %25 = vector.shape_cast %24 : vector<1x6x8x32xf32> to vector<6x8x32xf32>
    %26 = vector.shape_cast %25 : vector<6x8x32xf32> to vector<48x32xf32>
    %27 = arith.truncf %26 : vector<48x32xf32> to vector<48x32xbf16>
    %c3_24 = arith.constant 3 : index
    %c1_25 = arith.constant 1 : index
    %c0_26 = arith.constant 0 : index
    %c0_27 = arith.constant 0 : index
    %28 = vector.load %arg1[%c3_24, %c1_25, %c0_26, %c0_27] : memref<4x7x8x32xf32, #tpu.memory_space<vmem>>, vector<1x6x8x32xf32>
    %29 = vector.shape_cast %28 : vector<1x6x8x32xf32> to vector<6x8x32xf32>
    %30 = vector.shape_cast %29 : vector<6x8x32xf32> to vector<48x32xf32>
    %31 = arith.truncf %30 : vector<48x32xf32> to vector<48x32xbf16>
    %c0_28 = arith.constant 0 : index
    %c0_29 = arith.constant 0 : index
    %c0_30 = arith.constant 0 : index
    %32 = vector.load %arg2[%c0_28, %c0_29, %c0_30] : memref<5x32x256xbf16, #tpu.memory_space<vmem>>, vector<1x32x256xbf16>
    %33 = vector.shape_cast %32 : vector<1x32x256xbf16> to vector<32x256xbf16>
    %cst = arith.constant dense<0.000000e+00> : vector<48x256xf32>
    %34 = tpu.matmul %3, %33, %cst {dimension_numbers = #tpu.dot_dimension_numbers<[1], [0], [0], [1], [0, 0, 1, 1], [], []>} : vector<48x32xbf16>, vector<32x256xbf16>, vector<48x256xf32> -> vector<48x256xf32>
    %c1_31 = arith.constant 1 : index
    %c0_32 = arith.constant 0 : index
    %c0_33 = arith.constant 0 : index
    %35 = vector.load %arg2[%c1_31, %c0_32, %c0_33] : memref<5x32x256xbf16, #tpu.memory_space<vmem>>, vector<1x32x256xbf16>
    %36 = vector.shape_cast %35 : vector<1x32x256xbf16> to vector<32x256xbf16>
    %cst_34 = arith.constant dense<0.000000e+00> : vector<48x256xf32>
    %37 = tpu.matmul %7, %36, %cst_34 {dimension_numbers = #tpu.dot_dimension_numbers<[1], [0], [0], [1], [0, 0, 1, 1], [], []>} : vector<48x32xbf16>, vector<32x256xbf16>, vector<48x256xf32> -> vector<48x256xf32>
    %38 = arith.addf %34, %37 : vector<48x256xf32>
    %c2_35 = arith.constant 2 : index
    %c0_36 = arith.constant 0 : index
    %c0_37 = arith.constant 0 : index
    %39 = vector.load %arg2[%c2_35, %c0_36, %c0_37] : memref<5x32x256xbf16, #tpu.memory_space<vmem>>, vector<1x32x256xbf16>
    %40 = vector.shape_cast %39 : vector<1x32x256xbf16> to vector<32x256xbf16>
    %cst_38 = arith.constant dense<0.000000e+00> : vector<48x256xf32>
    %41 = tpu.matmul %11, %40, %cst_38 {dimension_numbers = #tpu.dot_dimension_numbers<[1], [0], [0], [1], [0, 0, 1, 1], [], []>} : vector<48x32xbf16>, vector<32x256xbf16>, vector<48x256xf32> -> vector<48x256xf32>
    %42 = arith.addf %38, %41 : vector<48x256xf32>
    %c3_39 = arith.constant 3 : index
    %c0_40 = arith.constant 0 : index
    %c0_41 = arith.constant 0 : index
    %43 = vector.load %arg2[%c3_39, %c0_40, %c0_41] : memref<5x32x256xbf16, #tpu.memory_space<vmem>>, vector<1x32x256xbf16>
    %44 = vector.shape_cast %43 : vector<1x32x256xbf16> to vector<32x256xbf16>
    %cst_42 = arith.constant dense<0.000000e+00> : vector<48x256xf32>
    %45 = tpu.matmul %15, %44, %cst_42 {dimension_numbers = #tpu.dot_dimension_numbers<[1], [0], [0], [1], [0, 0, 1, 1], [], []>} : vector<48x32xbf16>, vector<32x256xbf16>, vector<48x256xf32> -> vector<48x256xf32>
    %46 = arith.addf %42, %45 : vector<48x256xf32>
    %c4 = arith.constant 4 : index
    %c0_43 = arith.constant 0 : index
    %c0_44 = arith.constant 0 : index
    %47 = vector.load %arg2[%c4, %c0_43, %c0_44] : memref<5x32x256xbf16, #tpu.memory_space<vmem>>, vector<1x32x256xbf16>
    %48 = vector.shape_cast %47 : vector<1x32x256xbf16> to vector<32x256xbf16>
    %cst_45 = arith.constant dense<0.000000e+00> : vector<48x256xf32>
    %49 = tpu.matmul %19, %48, %cst_45 {dimension_numbers = #tpu.dot_dimension_numbers<[1], [0], [0], [1], [0, 0, 1, 1], [], []>} : vector<48x32xbf16>, vector<32x256xbf16>, vector<48x256xf32> -> vector<48x256xf32>
    %50 = arith.addf %46, %49 : vector<48x256xf32>
    %c0_46 = arith.constant 0 : index
    %c0_47 = arith.constant 0 : index
    %c0_48 = arith.constant 0 : index
    %51 = vector.load %arg2[%c0_46, %c0_47, %c0_48] : memref<5x32x256xbf16, #tpu.memory_space<vmem>>, vector<1x32x256xbf16>
    %52 = vector.shape_cast %51 : vector<1x32x256xbf16> to vector<32x256xbf16>
    %cst_49 = arith.constant dense<0.000000e+00> : vector<48x256xf32>
    %53 = tpu.matmul %7, %52, %cst_49 {dimension_numbers = #tpu.dot_dimension_numbers<[1], [0], [0], [1], [0, 0, 1, 1], [], []>} : vector<48x32xbf16>, vector<32x256xbf16>, vector<48x256xf32> -> vector<48x256xf32>
    %c1_50 = arith.constant 1 : index
    %c0_51 = arith.constant 0 : index
    %c0_52 = arith.constant 0 : index
    %54 = vector.load %arg2[%c1_50, %c0_51, %c0_52] : memref<5x32x256xbf16, #tpu.memory_space<vmem>>, vector<1x32x256xbf16>
    %55 = vector.shape_cast %54 : vector<1x32x256xbf16> to vector<32x256xbf16>
    %cst_53 = arith.constant dense<0.000000e+00> : vector<48x256xf32>
    %56 = tpu.matmul %11, %55, %cst_53 {dimension_numbers = #tpu.dot_dimension_numbers<[1], [0], [0], [1], [0, 0, 1, 1], [], []>} : vector<48x32xbf16>, vector<32x256xbf16>, vector<48x256xf32> -> vector<48x256xf32>
    %57 = arith.addf %53, %56 : vector<48x256xf32>
    %c2_54 = arith.constant 2 : index
    %c0_55 = arith.constant 0 : index
    %c0_56 = arith.constant 0 : index
    %58 = vector.load %arg2[%c2_54, %c0_55, %c0_56] : memref<5x32x256xbf16, #tpu.memory_space<vmem>>, vector<1x32x256xbf16>
    %59 = vector.shape_cast %58 : vector<1x32x256xbf16> to vector<32x256xbf16>
    %cst_57 = arith.constant dense<0.000000e+00> : vector<48x256xf32>
    %60 = tpu.matmul %15, %59, %cst_57 {dimension_numbers = #tpu.dot_dimension_numbers<[1], [0], [0], [1], [0, 0, 1, 1], [], []>} : vector<48x32xbf16>, vector<32x256xbf16>, vector<48x256xf32> -> vector<48x256xf32>
    %61 = arith.addf %57, %60 : vector<48x256xf32>
    %c3_58 = arith.constant 3 : index
    %c0_59 = arith.constant 0 : index
    %c0_60 = arith.constant 0 : index
    %62 = vector.load %arg2[%c3_58, %c0_59, %c0_60] : memref<5x32x256xbf16, #tpu.memory_space<vmem>>, vector<1x32x256xbf16>
    %63 = vector.shape_cast %62 : vector<1x32x256xbf16> to vector<32x256xbf16>
    %cst_61 = arith.constant dense<0.000000e+00> : vector<48x256xf32>
    %64 = tpu.matmul %19, %63, %cst_61 {dimension_numbers = #tpu.dot_dimension_numbers<[1], [0], [0], [1], [0, 0, 1, 1], [], []>} : vector<48x32xbf16>, vector<32x256xbf16>, vector<48x256xf32> -> vector<48x256xf32>
    %65 = arith.addf %61, %64 : vector<48x256xf32>
    %c4_62 = arith.constant 4 : index
    %c0_63 = arith.constant 0 : index
    %c0_64 = arith.constant 0 : index
    %66 = vector.load %arg2[%c4_62, %c0_63, %c0_64] : memref<5x32x256xbf16, #tpu.memory_space<vmem>>, vector<1x32x256xbf16>
    %67 = vector.shape_cast %66 : vector<1x32x256xbf16> to vector<32x256xbf16>
    %cst_65 = arith.constant dense<0.000000e+00> : vector<48x256xf32>
    %68 = tpu.matmul %23, %67, %cst_65 {dimension_numbers = #tpu.dot_dimension_numbers<[1], [0], [0], [1], [0, 0, 1, 1], [], []>} : vector<48x32xbf16>, vector<32x256xbf16>, vector<48x256xf32> -> vector<48x256xf32>
    %69 = arith.addf %65, %68 : vector<48x256xf32>
    %70 = arith.maximumf %50, %69 : vector<48x256xf32>
    %71 = vector.extract_strided_slice %70 {offsets = [0, 0], sizes = [48, 128], strides = [1, 1]} : vector<48x256xf32> to vector<48x128xf32>
    %72 = vector.extract_strided_slice %70 {offsets = [0, 128], sizes = [48, 128], strides = [1, 1]} : vector<48x256xf32> to vector<48x128xf32>
    %73 = arith.maximumf %71, %72 : vector<48x128xf32>
    %c0_66 = arith.constant 0 : index
    %c0_67 = arith.constant 0 : index
    %74 = vector.load %arg3[%c0_66, %c0_67] : memref<1x128xf32, #tpu.memory_space<vmem>>, vector<1x128xf32>
    %75 = vector.broadcast %74 : vector<1x128xf32> to vector<48x128xf32>
    %76 = arith.addf %73, %75 : vector<48x128xf32>
    %cst_68 = arith.constant 0.000000e+00 : f32
    %77 = vector.broadcast %cst_68 : f32 to vector<48x128xf32>
    %78 = arith.maximumf %76, %77 : vector<48x128xf32>
    %c0_69 = arith.constant 0 : index
    %c0_70 = arith.constant 0 : index
    %c0_71 = arith.constant 0 : index
    %79 = vector.load %arg13[%c0_69, %c0_70, %c0_71] : memref<2x48x128xf32, #tpu.memory_space<vmem>>, vector<1x48x128xf32>
    %80 = vector.shape_cast %79 : vector<1x48x128xf32> to vector<48x128xf32>
    %81 = vector.shape_cast %78 : vector<48x128xf32> to vector<1x48x128xf32>
    tpu.vector_store %arg13[%c0_69, %c0_70, %c0_71], %81 {strides = array<i32>} : memref<2x48x128xf32, #tpu.memory_space<vmem>>, vector<1x48x128xf32>,
    %c0_72 = arith.constant 0 : index
    %c0_73 = arith.constant 0 : index
    %c0_74 = arith.constant 0 : index
    %82 = vector.load %arg2[%c0_72, %c0_73, %c0_74] : memref<5x32x256xbf16, #tpu.memory_space<vmem>>, vector<1x32x256xbf16>
    %83 = vector.shape_cast %82 : vector<1x32x256xbf16> to vector<32x256xbf16>
    %cst_75 = arith.constant dense<0.000000e+00> : vector<48x256xf32>
    %84 = tpu.matmul %11, %83, %cst_75 {dimension_numbers = #tpu.dot_dimension_numbers<[1], [0], [0], [1], [0, 0, 1, 1], [], []>} : vector<48x32xbf16>, vector<32x256xbf16>, vector<48x256xf32> -> vector<48x256xf32>
    %c1_76 = arith.constant 1 : index
    %c0_77 = arith.constant 0 : index
    %c0_78 = arith.constant 0 : index
    %85 = vector.load %arg2[%c1_76, %c0_77, %c0_78] : memref<5x32x256xbf16, #tpu.memory_space<vmem>>, vector<1x32x256xbf16>
    %86 = vector.shape_cast %85 : vector<1x32x256xbf16> to vector<32x256xbf16>
    %cst_79 = arith.constant dense<0.000000e+00> : vector<48x256xf32>
    %87 = tpu.matmul %15, %86, %cst_79 {dimension_numbers = #tpu.dot_dimension_numbers<[1], [0], [0], [1], [0, 0, 1, 1], [], []>} : vector<48x32xbf16>, vector<32x256xbf16>, vector<48x256xf32> -> vector<48x256xf32>
    %88 = arith.addf %84, %87 : vector<48x256xf32>
    %c2_80 = arith.constant 2 : index
    %c0_81 = arith.constant 0 : index
    %c0_82 = arith.constant 0 : index
    %89 = vector.load %arg2[%c2_80, %c0_81, %c0_82] : memref<5x32x256xbf16, #tpu.memory_space<vmem>>, vector<1x32x256xbf16>
    %90 = vector.shape_cast %89 : vector<1x32x256xbf16> to vector<32x256xbf16>
    %cst_83 = arith.constant dense<0.000000e+00> : vector<48x256xf32>
    %91 = tpu.matmul %19, %90, %cst_83 {dimension_numbers = #tpu.dot_dimension_numbers<[1], [0], [0], [1], [0, 0, 1, 1], [], []>} : vector<48x32xbf16>, vector<32x256xbf16>, vector<48x256xf32> -> vector<48x256xf32>
    %92 = arith.addf %88, %91 : vector<48x256xf32>
    %c3_84 = arith.constant 3 : index
    %c0_85 = arith.constant 0 : index
    %c0_86 = arith.constant 0 : index
    %93 = vector.load %arg2[%c3_84, %c0_85, %c0_86] : memref<5x32x256xbf16, #tpu.memory_space<vmem>>, vector<1x32x256xbf16>
    %94 = vector.shape_cast %93 : vector<1x32x256xbf16> to vector<32x256xbf16>
    %cst_87 = arith.constant dense<0.000000e+00> : vector<48x256xf32>
    %95 = tpu.matmul %23, %94, %cst_87 {dimension_numbers = #tpu.dot_dimension_numbers<[1], [0], [0], [1], [0, 0, 1, 1], [], []>} : vector<48x32xbf16>, vector<32x256xbf16>, vector<48x256xf32> -> vector<48x256xf32>
    %96 = arith.addf %92, %95 : vector<48x256xf32>
    %c4_88 = arith.constant 4 : index
    %c0_89 = arith.constant 0 : index
    %c0_90 = arith.constant 0 : index
    %97 = vector.load %arg2[%c4_88, %c0_89, %c0_90] : memref<5x32x256xbf16, #tpu.memory_space<vmem>>, vector<1x32x256xbf16>
    %98 = vector.shape_cast %97 : vector<1x32x256xbf16> to vector<32x256xbf16>
    %cst_91 = arith.constant dense<0.000000e+00> : vector<48x256xf32>
    %99 = tpu.matmul %27, %98, %cst_91 {dimension_numbers = #tpu.dot_dimension_numbers<[1], [0], [0], [1], [0, 0, 1, 1], [], []>} : vector<48x32xbf16>, vector<32x256xbf16>, vector<48x256xf32> -> vector<48x256xf32>
    %100 = arith.addf %96, %99 : vector<48x256xf32>
    %c0_92 = arith.constant 0 : index
    %c0_93 = arith.constant 0 : index
    %c0_94 = arith.constant 0 : index
    %101 = vector.load %arg2[%c0_92, %c0_93, %c0_94] : memref<5x32x256xbf16, #tpu.memory_space<vmem>>, vector<1x32x256xbf16>
    %102 = vector.shape_cast %101 : vector<1x32x256xbf16> to vector<32x256xbf16>
    %cst_95 = arith.constant dense<0.000000e+00> : vector<48x256xf32>
    %103 = tpu.matmul %15, %102, %cst_95 {dimension_numbers = #tpu.dot_dimension_numbers<[1], [0], [0], [1], [0, 0, 1, 1], [], []>} : vector<48x32xbf16>, vector<32x256xbf16>, vector<48x256xf32> -> vector<48x256xf32>
    %c1_96 = arith.constant 1 : index
    %c0_97 = arith.constant 0 : index
    %c0_98 = arith.constant 0 : index
    %104 = vector.load %arg2[%c1_96, %c0_97, %c0_98] : memref<5x32x256xbf16, #tpu.memory_space<vmem>>, vector<1x32x256xbf16>
    %105 = vector.shape_cast %104 : vector<1x32x256xbf16> to vector<32x256xbf16>
    %cst_99 = arith.constant dense<0.000000e+00> : vector<48x256xf32>
    %106 = tpu.matmul %19, %105, %cst_99 {dimension_numbers = #tpu.dot_dimension_numbers<[1], [0], [0], [1], [0, 0, 1, 1], [], []>} : vector<48x32xbf16>, vector<32x256xbf16>, vector<48x256xf32> -> vector<48x256xf32>
    %107 = arith.addf %103, %106 : vector<48x256xf32>
    %c2_100 = arith.constant 2 : index
    %c0_101 = arith.constant 0 : index
    %c0_102 = arith.constant 0 : index
    %108 = vector.load %arg2[%c2_100, %c0_101, %c0_102] : memref<5x32x256xbf16, #tpu.memory_space<vmem>>, vector<1x32x256xbf16>
    %109 = vector.shape_cast %108 : vector<1x32x256xbf16> to vector<32x256xbf16>
    %cst_103 = arith.constant dense<0.000000e+00> : vector<48x256xf32>
    %110 = tpu.matmul %23, %109, %cst_103 {dimension_numbers = #tpu.dot_dimension_numbers<[1], [0], [0], [1], [0, 0, 1, 1], [], []>} : vector<48x32xbf16>, vector<32x256xbf16>, vector<48x256xf32> -> vector<48x256xf32>
    %111 = arith.addf %107, %110 : vector<48x256xf32>
    %c3_104 = arith.constant 3 : index
    %c0_105 = arith.constant 0 : index
    %c0_106 = arith.constant 0 : index
    %112 = vector.load %arg2[%c3_104, %c0_105, %c0_106] : memref<5x32x256xbf16, #tpu.memory_space<vmem>>, vector<1x32x256xbf16>
    %113 = vector.shape_cast %112 : vector<1x32x256xbf16> to vector<32x256xbf16>
    %cst_107 = arith.constant dense<0.000000e+00> : vector<48x256xf32>
    %114 = tpu.matmul %27, %113, %cst_107 {dimension_numbers = #tpu.dot_dimension_numbers<[1], [0], [0], [1], [0, 0, 1, 1], [], []>} : vector<48x32xbf16>, vector<32x256xbf16>, vector<48x256xf32> -> vector<48x256xf32>
    %115 = arith.addf %111, %114 : vector<48x256xf32>
    %c4_108 = arith.constant 4 : index
    %c0_109 = arith.constant 0 : index
    %c0_110 = arith.constant 0 : index
    %116 = vector.load %arg2[%c4_108, %c0_109, %c0_110] : memref<5x32x256xbf16, #tpu.memory_space<vmem>>, vector<1x32x256xbf16>
    %117 = vector.shape_cast %116 : vector<1x32x256xbf16> to vector<32x256xbf16>
    %cst_111 = arith.constant dense<0.000000e+00> : vector<48x256xf32>
    %118 = tpu.matmul %31, %117, %cst_111 {dimension_numbers = #tpu.dot_dimension_numbers<[1], [0], [0], [1], [0, 0, 1, 1], [], []>} : vector<48x32xbf16>, vector<32x256xbf16>, vector<48x256xf32> -> vector<48x256xf32>
    %119 = arith.addf %115, %118 : vector<48x256xf32>
    %120 = arith.maximumf %100, %119 : vector<48x256xf32>
    %121 = vector.extract_strided_slice %120 {offsets = [0, 0], sizes = [48, 128], strides = [1, 1]} : vector<48x256xf32> to vector<48x128xf32>
    %122 = vector.extract_strided_slice %120 {offsets = [0, 128], sizes = [48, 128], strides = [1, 1]} : vector<48x256xf32> to vector<48x128xf32>
    %123 = arith.maximumf %121, %122 : vector<48x128xf32>
    %c0_112 = arith.constant 0 : index
    %c0_113 = arith.constant 0 : index
    %124 = vector.load %arg3[%c0_112, %c0_113] : memref<1x128xf32, #tpu.memory_space<vmem>>, vector<1x128xf32>
    %125 = vector.broadcast %124 : vector<1x128xf32> to vector<48x128xf32>
    %126 = arith.addf %123, %125 : vector<48x128xf32>
    %cst_114 = arith.constant 0.000000e+00 : f32
    %127 = vector.broadcast %cst_114 : f32 to vector<48x128xf32>
    %128 = arith.maximumf %126, %127 : vector<48x128xf32>
    %c1_115 = arith.constant 1 : index
    %c0_116 = arith.constant 0 : index
    %c0_117 = arith.constant 0 : index
    %129 = vector.load %arg13[%c1_115, %c0_116, %c0_117] : memref<2x48x128xf32, #tpu.memory_space<vmem>>, vector<1x48x128xf32>
    %130 = vector.shape_cast %129 : vector<1x48x128xf32> to vector<48x128xf32>
    %131 = vector.shape_cast %128 : vector<48x128xf32> to vector<1x48x128xf32>
    tpu.vector_store %arg13[%c1_115, %c0_116, %c0_117], %131 {strides = array<i32>} : memref<2x48x128xf32, #tpu.memory_space<vmem>>, vector<1x48x128xf32>,
    %c0_118 = arith.constant 0 : index
    %c0_119 = arith.constant 0 : index
    %c0_120 = arith.constant 0 : index
    %132 = vector.load %arg13[%c0_118, %c0_119, %c0_120] : memref<2x48x128xf32, #tpu.memory_space<vmem>>, vector<1x32x128xf32>
    %133 = vector.shape_cast %132 : vector<1x32x128xf32> to vector<32x128xf32>
    %134 = arith.truncf %133 : vector<32x128xf32> to vector<32x128xbf16>
    %c1_121 = arith.constant 1 : index
    %c0_122 = arith.constant 0 : index
    %c0_123 = arith.constant 0 : index
    %135 = vector.load %arg13[%c1_121, %c0_122, %c0_123] : memref<2x48x128xf32, #tpu.memory_space<vmem>>, vector<1x32x128xf32>
    %136 = vector.shape_cast %135 : vector<1x32x128xf32> to vector<32x128xf32>
    %137 = arith.truncf %136 : vector<32x128xf32> to vector<32x128xbf16>
    %c0_124 = arith.constant 0 : index
    %c8 = arith.constant 8 : index
    %c0_125 = arith.constant 0 : index
    %138 = vector.load %arg13[%c0_124, %c8, %c0_125] : memref<2x48x128xf32, #tpu.memory_space<vmem>>, vector<1x32x128xf32>
    %139 = vector.shape_cast %138 : vector<1x32x128xf32> to vector<32x128xf32>
    %140 = arith.truncf %139 : vector<32x128xf32> to vector<32x128xbf16>
    %c1_126 = arith.constant 1 : index
    %c8_127 = arith.constant 8 : index
    %c0_128 = arith.constant 0 : index
    %141 = vector.load %arg13[%c1_126, %c8_127, %c0_128] : memref<2x48x128xf32, #tpu.memory_space<vmem>>, vector<1x32x128xf32>
    %142 = vector.shape_cast %141 : vector<1x32x128xf32> to vector<32x128xf32>
    %143 = arith.truncf %142 : vector<32x128xf32> to vector<32x128xbf16>
    %c0_129 = arith.constant 0 : index
    %c16 = arith.constant 16 : index
    %c0_130 = arith.constant 0 : index
    %144 = vector.load %arg13[%c0_129, %c16, %c0_130] : memref<2x48x128xf32, #tpu.memory_space<vmem>>, vector<1x32x128xf32>
    %145 = vector.shape_cast %144 : vector<1x32x128xf32> to vector<32x128xf32>
    %146 = arith.truncf %145 : vector<32x128xf32> to vector<32x128xbf16>
    %c1_131 = arith.constant 1 : index
    %c16_132 = arith.constant 16 : index
    %c0_133 = arith.constant 0 : index
    %147 = vector.load %arg13[%c1_131, %c16_132, %c0_133] : memref<2x48x128xf32, #tpu.memory_space<vmem>>, vector<1x32x128xf32>
    %148 = vector.shape_cast %147 : vector<1x32x128xf32> to vector<32x128xf32>
    %149 = arith.truncf %148 : vector<32x128xf32> to vector<32x128xbf16>
    %c0_134 = arith.constant 0 : index
    %c0_135 = arith.constant 0 : index
    %c0_136 = arith.constant 0 : index
    %150 = vector.load %arg4[%c0_134, %c0_135, %c0_136] : memref<5x128x256xbf16, #tpu.memory_space<vmem>>, vector<1x128x256xbf16>
    %151 = vector.shape_cast %150 : vector<1x128x256xbf16> to vector<128x256xbf16>
    %cst_137 = arith.constant dense<0.000000e+00> : vector<32x256xf32>
    %152 = tpu.matmul %134, %151, %cst_137 {dimension_numbers = #tpu.dot_dimension_numbers<[1], [0], [0], [1], [0, 0, 1, 1], [], []>} : vector<32x128xbf16>, vector<128x256xbf16>, vector<32x256xf32> -> vector<32x256xf32>
    %c1_138 = arith.constant 1 : index
    %c0_139 = arith.constant 0 : index
    %c0_140 = arith.constant 0 : index
    %153 = vector.load %arg4[%c1_138, %c0_139, %c0_140] : memref<5x128x256xbf16, #tpu.memory_space<vmem>>, vector<1x128x256xbf16>
    %154 = vector.shape_cast %153 : vector<1x128x256xbf16> to vector<128x256xbf16>
    %cst_141 = arith.constant dense<0.000000e+00> : vector<32x256xf32>
    %155 = tpu.matmul %137, %154, %cst_141 {dimension_numbers = #tpu.dot_dimension_numbers<[1], [0], [0], [1], [0, 0, 1, 1], [], []>} : vector<32x128xbf16>, vector<128x256xbf16>, vector<32x256xf32> -> vector<32x256xf32>
    %156 = arith.addf %152, %155 : vector<32x256xf32>
    %c2_142 = arith.constant 2 : index
    %c0_143 = arith.constant 0 : index
    %c0_144 = arith.constant 0 : index
    %157 = vector.load %arg4[%c2_142, %c0_143, %c0_144] : memref<5x128x256xbf16, #tpu.memory_space<vmem>>, vector<1x128x256xbf16>
    %158 = vector.shape_cast %157 : vector<1x128x256xbf16> to vector<128x256xbf16>
    %cst_145 = arith.constant dense<0.000000e+00> : vector<32x256xf32>
    %159 = tpu.matmul %140, %158, %cst_145 {dimension_numbers = #tpu.dot_dimension_numbers<[1], [0], [0], [1], [0, 0, 1, 1], [], []>} : vector<32x128xbf16>, vector<128x256xbf16>, vector<32x256xf32> -> vector<32x256xf32>
    %160 = arith.addf %156, %159 : vector<32x256xf32>
    %c3_146 = arith.constant 3 : index
    %c0_147 = arith.constant 0 : index
    %c0_148 = arith.constant 0 : index
    %161 = vector.load %arg4[%c3_146, %c0_147, %c0_148] : memref<5x128x256xbf16, #tpu.memory_space<vmem>>, vector<1x128x256xbf16>
    %162 = vector.shape_cast %161 : vector<1x128x256xbf16> to vector<128x256xbf16>
    %cst_149 = arith.constant dense<0.000000e+00> : vector<32x256xf32>
    %163 = tpu.matmul %143, %162, %cst_149 {dimension_numbers = #tpu.dot_dimension_numbers<[1], [0], [0], [1], [0, 0, 1, 1], [], []>} : vector<32x128xbf16>, vector<128x256xbf16>, vector<32x256xf32> -> vector<32x256xf32>
    %164 = arith.addf %160, %163 : vector<32x256xf32>
    %c4_150 = arith.constant 4 : index
    %c0_151 = arith.constant 0 : index
    %c0_152 = arith.constant 0 : index
    %165 = vector.load %arg4[%c4_150, %c0_151, %c0_152] : memref<5x128x256xbf16, #tpu.memory_space<vmem>>, vector<1x128x256xbf16>
    %166 = vector.shape_cast %165 : vector<1x128x256xbf16> to vector<128x256xbf16>
    %cst_153 = arith.constant dense<0.000000e+00> : vector<32x256xf32>
    %167 = tpu.matmul %146, %166, %cst_153 {dimension_numbers = #tpu.dot_dimension_numbers<[1], [0], [0], [1], [0, 0, 1, 1], [], []>} : vector<32x128xbf16>, vector<128x256xbf16>, vector<32x256xf32> -> vector<32x256xf32>
    %168 = arith.addf %164, %167 : vector<32x256xf32>
    %c0_154 = arith.constant 0 : index
    %c0_155 = arith.constant 0 : index
    %c0_156 = arith.constant 0 : index
    %169 = vector.load %arg4[%c0_154, %c0_155, %c0_156] : memref<5x128x256xbf16, #tpu.memory_space<vmem>>, vector<1x128x256xbf16>
    %170 = vector.shape_cast %169 : vector<1x128x256xbf16> to vector<128x256xbf16>
    %cst_157 = arith.constant dense<0.000000e+00> : vector<32x256xf32>
    %171 = tpu.matmul %137, %170, %cst_157 {dimension_numbers = #tpu.dot_dimension_numbers<[1], [0], [0], [1], [0, 0, 1, 1], [], []>} : vector<32x128xbf16>, vector<128x256xbf16>, vector<32x256xf32> -> vector<32x256xf32>
    %c1_158 = arith.constant 1 : index
    %c0_159 = arith.constant 0 : index
    %c0_160 = arith.constant 0 : index
    %172 = vector.load %arg4[%c1_158, %c0_159, %c0_160] : memref<5x128x256xbf16, #tpu.memory_space<vmem>>, vector<1x128x256xbf16>
    %173 = vector.shape_cast %172 : vector<1x128x256xbf16> to vector<128x256xbf16>
    %cst_161 = arith.constant dense<0.000000e+00> : vector<32x256xf32>
    %174 = tpu.matmul %140, %173, %cst_161 {dimension_numbers = #tpu.dot_dimension_numbers<[1], [0], [0], [1], [0, 0, 1, 1], [], []>} : vector<32x128xbf16>, vector<128x256xbf16>, vector<32x256xf32> -> vector<32x256xf32>
    %175 = arith.addf %171, %174 : vector<32x256xf32>
    %c2_162 = arith.constant 2 : index
    %c0_163 = arith.constant 0 : index
    %c0_164 = arith.constant 0 : index
    %176 = vector.load %arg4[%c2_162, %c0_163, %c0_164] : memref<5x128x256xbf16, #tpu.memory_space<vmem>>, vector<1x128x256xbf16>
    %177 = vector.shape_cast %176 : vector<1x128x256xbf16> to vector<128x256xbf16>
    %cst_165 = arith.constant dense<0.000000e+00> : vector<32x256xf32>
    %178 = tpu.matmul %143, %177, %cst_165 {dimension_numbers = #tpu.dot_dimension_numbers<[1], [0], [0], [1], [0, 0, 1, 1], [], []>} : vector<32x128xbf16>, vector<128x256xbf16>, vector<32x256xf32> -> vector<32x256xf32>
    %179 = arith.addf %175, %178 : vector<32x256xf32>
    %c3_166 = arith.constant 3 : index
    %c0_167 = arith.constant 0 : index
    %c0_168 = arith.constant 0 : index
    %180 = vector.load %arg4[%c3_166, %c0_167, %c0_168] : memref<5x128x256xbf16, #tpu.memory_space<vmem>>, vector<1x128x256xbf16>
    %181 = vector.shape_cast %180 : vector<1x128x256xbf16> to vector<128x256xbf16>
    %cst_169 = arith.constant dense<0.000000e+00> : vector<32x256xf32>
    %182 = tpu.matmul %146, %181, %cst_169 {dimension_numbers = #tpu.dot_dimension_numbers<[1], [0], [0], [1], [0, 0, 1, 1], [], []>} : vector<32x128xbf16>, vector<128x256xbf16>, vector<32x256xf32> -> vector<32x256xf32>
    %183 = arith.addf %179, %182 : vector<32x256xf32>
    %c4_170 = arith.constant 4 : index
    %c0_171 = arith.constant 0 : index
    %c0_172 = arith.constant 0 : index
    %184 = vector.load %arg4[%c4_170, %c0_171, %c0_172] : memref<5x128x256xbf16, #tpu.memory_space<vmem>>, vector<1x128x256xbf16>
    %185 = vector.shape_cast %184 : vector<1x128x256xbf16> to vector<128x256xbf16>
    %cst_173 = arith.constant dense<0.000000e+00> : vector<32x256xf32>
    %186 = tpu.matmul %149, %185, %cst_173 {dimension_numbers = #tpu.dot_dimension_numbers<[1], [0], [0], [1], [0, 0, 1, 1], [], []>} : vector<32x128xbf16>, vector<128x256xbf16>, vector<32x256xf32> -> vector<32x256xf32>
    %187 = arith.addf %183, %186 : vector<32x256xf32>
    %188 = arith.maximumf %168, %187 : vector<32x256xf32>
    %189 = vector.extract_strided_slice %188 {offsets = [0, 0], sizes = [32, 128], strides = [1, 1]} : vector<32x256xf32> to vector<32x128xf32>
    %190 = vector.extract_strided_slice %188 {offsets = [0, 128], sizes = [32, 128], strides = [1, 1]} : vector<32x256xf32> to vector<32x128xf32>
    %191 = arith.maximumf %189, %190 : vector<32x128xf32>
    %c0_174 = arith.constant 0 : index
    %c0_175 = arith.constant 0 : index
    %192 = vector.load %arg5[%c0_174, %c0_175] : memref<1x128xf32, #tpu.memory_space<vmem>>, vector<1x128xf32>
    %193 = vector.broadcast %192 : vector<1x128xf32> to vector<32x128xf32>
    %194 = arith.addf %191, %193 : vector<32x128xf32>
    %cst_176 = arith.constant 0.000000e+00 : f32
    %195 = vector.broadcast %cst_176 : f32 to vector<32x128xf32>
    %196 = arith.maximumf %194, %195 : vector<32x128xf32>
    %197 = vector.extract_strided_slice %196 {offsets = [0, 0], sizes = [8, 128], strides = [1, 1]} : vector<32x128xf32> to vector<8x128xf32>
    %c0_177 = arith.constant 0 : index
    %c0_178 = arith.constant 0 : index
    %198 = vector.load %arg14[%c0_177, %c0_178] : memref<8x512xf32, #tpu.memory_space<vmem>>, vector<8x128xf32>
    tpu.vector_store %arg14[%c0_177, %c0_178], %197 {strides = array<i32>} : memref<8x512xf32, #tpu.memory_space<vmem>>, vector<8x128xf32>,
    %199 = vector.extract_strided_slice %196 {offsets = [8, 0], sizes = [8, 128], strides = [1, 1]} : vector<32x128xf32> to vector<8x128xf32>
    %c0_179 = arith.constant 0 : index
    %c128 = arith.constant 128 : index
    %200 = vector.load %arg14[%c0_179, %c128] : memref<8x512xf32, #tpu.memory_space<vmem>>, vector<8x128xf32>
    tpu.vector_store %arg14[%c0_179, %c128], %199 {strides = array<i32>} : memref<8x512xf32, #tpu.memory_space<vmem>>, vector<8x128xf32>,
    %201 = vector.extract_strided_slice %196 {offsets = [16, 0], sizes = [8, 128], strides = [1, 1]} : vector<32x128xf32> to vector<8x128xf32>
    %c0_180 = arith.constant 0 : index
    %c256 = arith.constant 256 : index
    %202 = vector.load %arg14[%c0_180, %c256] : memref<8x512xf32, #tpu.memory_space<vmem>>, vector<8x128xf32>
    tpu.vector_store %arg14[%c0_180, %c256], %201 {strides = array<i32>} : memref<8x512xf32, #tpu.memory_space<vmem>>, vector<8x128xf32>,
    %203 = vector.extract_strided_slice %196 {offsets = [24, 0], sizes = [8, 128], strides = [1, 1]} : vector<32x128xf32> to vector<8x128xf32>
    %c0_181 = arith.constant 0 : index
    %c384 = arith.constant 384 : index
    %204 = vector.load %arg14[%c0_181, %c384] : memref<8x512xf32, #tpu.memory_space<vmem>>, vector<8x128xf32>
    tpu.vector_store %arg14[%c0_181, %c384], %203 {strides = array<i32>} : memref<8x512xf32, #tpu.memory_space<vmem>>, vector<8x128xf32>,
    %c0_182 = arith.constant 0 : index
    %c0_183 = arith.constant 0 : index
    %205 = vector.load %arg14[%c0_182, %c0_183] : memref<8x512xf32, #tpu.memory_space<vmem>>, vector<8x512xf32>
    %206 = arith.truncf %205 : vector<8x512xf32> to vector<8x512xbf16>
    %c0_184 = arith.constant 0 : index
    %c0_185 = arith.constant 0 : index
    %207 = vector.load %arg6[%c0_184, %c0_185] : memref<512x128xbf16, #tpu.memory_space<vmem>>, vector<512x128xbf16>
    %cst_186 = arith.constant dense<0.000000e+00> : vector<8x128xf32>
    %208 = tpu.matmul %206, %207, %cst_186 {dimension_numbers = #tpu.dot_dimension_numbers<[1], [0], [0], [1], [0, 0, 1, 1], [], []>} : vector<8x512xbf16>, vector<512x128xbf16>, vector<8x128xf32> -> vector<8x128xf32>
    %c0_187 = arith.constant 0 : index
    %c0_188 = arith.constant 0 : index
    %209 = vector.load %arg7[%c0_187, %c0_188] : memref<1x128xf32, #tpu.memory_space<vmem>>, vector<1x128xf32>
    %210 = vector.broadcast %209 : vector<1x128xf32> to vector<8x128xf32>
    %211 = arith.addf %208, %210 : vector<8x128xf32>
    %cst_189 = arith.constant 0.000000e+00 : f32
    %212 = vector.broadcast %cst_189 : f32 to vector<8x128xf32>
    %213 = arith.maximumf %211, %212 : vector<8x128xf32>
    %214 = arith.truncf %213 : vector<8x128xf32> to vector<8x128xbf16>
    %c0_190 = arith.constant 0 : index
    %c0_191 = arith.constant 0 : index
    %215 = vector.load %arg8[%c0_190, %c0_191] : memref<128x128xbf16, #tpu.memory_space<vmem>>, vector<128x128xbf16>
    %cst_192 = arith.constant dense<0.000000e+00> : vector<8x128xf32>
    %216 = tpu.matmul %214, %215, %cst_192 {dimension_numbers = #tpu.dot_dimension_numbers<[1], [0], [0], [1], [0, 0, 1, 1], [], []>} : vector<8x128xbf16>, vector<128x128xbf16>, vector<8x128xf32> -> vector<8x128xf32>
    %c0_193 = arith.constant 0 : index
    %c0_194 = arith.constant 0 : index
    %217 = vector.load %arg9[%c0_193, %c0_194] : memref<1x128xf32, #tpu.memory_space<vmem>>, vector<1x128xf32>
    %218 = vector.broadcast %217 : vector<1x128xf32> to vector<8x128xf32>
    %219 = arith.addf %216, %218 : vector<8x128xf32>
    %cst_195 = arith.constant 0.000000e+00 : f32
    %220 = vector.broadcast %cst_195 : f32 to vector<8x128xf32>
    %221 = arith.maximumf %219, %220 : vector<8x128xf32>
    %222 = arith.truncf %221 : vector<8x128xf32> to vector<8x128xbf16>
    %c0_196 = arith.constant 0 : index
    %c0_197 = arith.constant 0 : index
    %223 = vector.load %arg10[%c0_196, %c0_197] : memref<128x128xbf16, #tpu.memory_space<vmem>>, vector<128x128xbf16>
    %cst_198 = arith.constant dense<0.000000e+00> : vector<8x128xf32>
    %224 = tpu.matmul %222, %223, %cst_198 {dimension_numbers = #tpu.dot_dimension_numbers<[1], [0], [0], [1], [0, 0, 1, 1], [], []>} : vector<8x128xbf16>, vector<128x128xbf16>, vector<8x128xf32> -> vector<8x128xf32>
    %c0_199 = arith.constant 0 : index
    %c0_200 = arith.constant 0 : index
    %225 = vector.load %arg11[%c0_199, %c0_200] : memref<1x128xf32, #tpu.memory_space<vmem>>, vector<1x128xf32>
    %226 = vector.broadcast %225 : vector<1x128xf32> to vector<8x128xf32>
    %227 = arith.addf %224, %226 : vector<8x128xf32>
    %cst_201 = arith.constant 0.000000e+00 : f32
    %228 = vector.broadcast %cst_201 : f32 to vector<8x128xf32>
    %229 = arith.maximumf %227, %228 : vector<8x128xf32>
    %c0_202 = arith.constant 0 : index
    %c0_203 = arith.constant 0 : index
    %230 = vector.load %arg12[%c0_202, %c0_203] : memref<8x128xf32, #tpu.memory_space<vmem>>, vector<8x128xf32>
    tpu.vector_store %arg12[%c0_202, %c0_203], %229 {strides = array<i32>} : memref<8x128xf32, #tpu.memory_space<vmem>>, vector<8x128xf32>,
    return
  }
  func.func @transform_0(%arg0: i32) -> (i32, i32, i32, i32) {
    %c0_i32 = arith.constant 0 : i32
    %c0_i32_0 = arith.constant 0 : i32
    %c0_i32_1 = arith.constant 0 : i32
    %c0_i32_2 = arith.constant 0 : i32
    return %c0_i32, %c0_i32_0, %arg0, %c0_i32_1 : i32, i32, i32, i32
  }
  func.func @transform_1(%arg0: i32) -> (i32, i32, i32) {
    %c0_i32 = arith.constant 0 : i32
    %c0_i32_0 = arith.constant 0 : i32
    %c0_i32_1 = arith.constant 0 : i32
    %c0_i32_2 = arith.constant 0 : i32
    return %c0_i32, %c0_i32_0, %c0_i32_1 : i32, i32, i32
  }
  func.func @transform_2(%arg0: i32) -> (i32, i32) {
    %c0_i32 = arith.constant 0 : i32
    %c0_i32_0 = arith.constant 0 : i32
    %c0_i32_1 = arith.constant 0 : i32
    return %c0_i32, %c0_i32_0 : i32, i32
  }
  func.func @transform_3(%arg0: i32) -> (i32, i32, i32) {
    %c0_i32 = arith.constant 0 : i32
    %c0_i32_0 = arith.constant 0 : i32
    %c0_i32_1 = arith.constant 0 : i32
    %c0_i32_2 = arith.constant 0 : i32
    return %c0_i32, %c0_i32_0, %c0_i32_1 : i32, i32, i32
  }
  func.func @transform_4(%arg0: i32) -> (i32, i32) {
    %c0_i32 = arith.constant 0 : i32
    %c0_i32_0 = arith.constant 0 : i32
    %c0_i32_1 = arith.constant 0 : i32
    return %c0_i32, %c0_i32_0 : i32, i32
  }
  func.func @transform_5(%arg0: i32) -> (i32, i32) {
    %c0_i32 = arith.constant 0 : i32
    %c0_i32_0 = arith.constant 0 : i32
    %c0_i32_1 = arith.constant 0 : i32
    return %c0_i32, %c0_i32_0 : i32, i32
  }
  func.func @transform_6(%arg0: i32) -> (i32, i32) {
    %c0_i32 = arith.constant 0 : i32
    %c0_i32_0 = arith.constant 0 : i32
    %c0_i32_1 = arith.constant 0 : i32
    return %c0_i32, %c0_i32_0 : i32, i32
  }
  func.func @transform_7(%arg0: i32) -> (i32, i32) {
    %c0_i32 = arith.constant 0 : i32
    %c0_i32_0 = arith.constant 0 : i32
    %c0_i32_1 = arith.constant 0 : i32
    return %c0_i32, %c0_i32_0 : i32, i32
  }
  func.func @transform_8(%arg0: i32) -> (i32, i32) {
    %c0_i32 = arith.constant 0 : i32
    %c0_i32_0 = arith.constant 0 : i32
    %c0_i32_1 = arith.constant 0 : i32
    return %c0_i32, %c0_i32_0 : i32, i32
  }
  func.func @transform_9(%arg0: i32) -> (i32, i32) {
    %c0_i32 = arith.constant 0 : i32
    %c0_i32_0 = arith.constant 0 : i32
    %c0_i32_1 = arith.constant 0 : i32
    return %c0_i32, %c0_i32_0 : i32, i32
  }
  func.func @transform_10(%arg0: i32) -> (i32, i32) {
    %c0_i32 = arith.constant 0 : i32
    %c0_i32_0 = arith.constant 0 : i32
    %c0_i32_1 = arith.constant 0 : i32
    return %c0_i32, %c0_i32_0 : i32, i32
  }
  func.func @transform_11(%arg0: i32) -> (i32, i32) {
    %c0_i32 = arith.constant 0 : i32
    %c0_i32_0 = arith.constant 0 : i32
    return %arg0, %c0_i32 : i32, i32
  }
}

</mosaic_0001>

<llo_original>
// kernel: lenet_forward.1
$region0: #{lenet_forward.1}
  #allocation0 [shape = 'u32[]', space=smem, size = 0x4, offset = 0x4, fixed_abs, tag = 'smem constant byte address 0x4 - core index']
  #allocation1 [shape = 'u32[144,128]{1,0:T(1,128)}', space=vmem, size = 0x12000, scoped, tag = 'internal scratch']
  #allocation2 [shape = 'f32[2,48,128]{2,1,0:T(8,128)}', space=vmem, size = 0xc000, scoped, tag = 'scratch operand']
  #allocation3 [shape = 'f32[8,512]{1,0:T(8,128)}', space=vmem, size = 0x4000, scoped, tag = 'scratch operand']
  %s0 = inlined_call_operand.vmem [shape: f32[4,7,8,32], index: 0, kind: input, shape index: {}]
  %s1 = inlined_call_operand.vmem [shape: bf16[5,32,256], index: 1, kind: input, shape index: {}]
  %s2 = inlined_call_operand.vmem [shape: f32[1,128], index: 2, kind: input, shape index: {}]
  %s3 = inlined_call_operand.vmem [shape: bf16[5,128,256], index: 3, kind: input, shape index: {}]
  %s4 = inlined_call_operand.vmem [shape: f32[1,128], index: 4, kind: input, shape index: {}]
  %s5 = inlined_call_operand.vmem [shape: bf16[512,128], index: 5, kind: input, shape index: {}]
  %s6 = inlined_call_operand.vmem [shape: f32[1,128], index: 6, kind: input, shape index: {}]
  %s7 = inlined_call_operand.vmem [shape: bf16[128,128], index: 7, kind: input, shape index: {}]
  %s8 = inlined_call_operand.vmem [shape: f32[1,128], index: 8, kind: input, shape index: {}]
  %s9 = inlined_call_operand.vmem [shape: bf16[128,128], index: 9, kind: input, shape index: {}]
  %s10 = inlined_call_operand.vmem [shape: f32[1,128], index: 10, kind: input, shape index: {}]
  %s11 = inlined_call_operand.vmem [shape: f32[8,128], index: 11, kind: output, shape index: {}]
  %s12 = sld [smem:[#allocation0]]
  $region54: #{lenet_forward.1} parent=0
    _
  %s14 = ssub.s32 1, %s12
  %s15 = scalar_select 0, %s14, %s12
  // Predicated region
  $region2: #{lenet_forward.1} parent=0 // pred_check
    _
  $region3: #{lenet_forward.1} parent=0 // pred_check_branch
    %17 = sbr.rel (0) target = $region5
  $region4: #{lenet_forward.1} parent=0 // pred_region
    _
  $region5: #{lenet_forward.1} parent=0 // pred_fallthru
    _
  // Predicated region
  $region6: #{lenet_forward.1} parent=0 // pred_check
    _
  $region7: #{lenet_forward.1} parent=0 // pred_check_branch
    %19 = sbr.rel (0) target = $region9
  $region8: #{lenet_forward.1} parent=0 // pred_region
    _
  $region9: #{lenet_forward.1} parent=0 // pred_fallthru
    _
  // Predicated region
  $region10: #{lenet_forward.1} parent=0 // pred_check
    _
  $region11: #{lenet_forward.1} parent=0 // pred_check_branch
    %21 = sbr.rel (0) target = $region13
  $region12: #{lenet_forward.1} parent=0 // pred_region
    _
  $region13: #{lenet_forward.1} parent=0 // pred_fallthru
    _
  // Predicated region
  $region14: #{lenet_forward.1} parent=0 // pred_check
    _
  $region15: #{lenet_forward.1} parent=0 // pred_check_branch
    %23 = sbr.rel (0) target = $region17
  $region16: #{lenet_forward.1} parent=0 // pred_region
    _
  $region17: #{lenet_forward.1} parent=0 // pred_fallthru
    _
  // Predicated region
  $region18: #{lenet_forward.1} parent=0 // pred_check
    _
  $region19: #{lenet_forward.1} parent=0 // pred_check_branch
    %25 = sbr.rel (0) target = $region21
  $region20: #{lenet_forward.1} parent=0 // pred_region
    _
  $region21: #{lenet_forward.1} parent=0 // pred_fallthru
    _
  // Predicated region
  $region22: #{lenet_forward.1} parent=0 // pred_check
    _
  $region23: #{lenet_forward.1} parent=0 // pred_check_branch
    %27 = sbr.rel (0) target = $region25
  $region24: #{lenet_forward.1} parent=0 // pred_region
    _
  $region25: #{lenet_forward.1} parent=0 // pred_fallthru
    _
  // Predicated region
  $region26: #{lenet_forward.1} parent=0 // pred_check
    _
  $region27: #{lenet_forward.1} parent=0 // pred_check_branch
    %29 = sbr.rel (0) target = $region29
  $region28: #{lenet_forward.1} parent=0 // pred_region
    _
  $region29: #{lenet_forward.1} parent=0 // pred_fallthru
    _
  // Predicated region
  $region30: #{lenet_forward.1} parent=0 // pred_check
    _
  $region31: #{lenet_forward.1} parent=0 // pred_check_branch
    %31 = sbr.rel (0) target = $region33
  $region32: #{lenet_forward.1} parent=0 // pred_region
    _
  $region33: #{lenet_forward.1} parent=0 // pred_fallthru
    _
  // Predicated region
  $region34: #{lenet_forward.1} parent=0 // pred_check
    _
  $region35: #{lenet_forward.1} parent=0 // pred_check_branch
    %33 = sbr.rel (0) target = $region37
  $region36: #{lenet_forward.1} parent=0 // pred_region
    _
  $region37: #{lenet_forward.1} parent=0 // pred_fallthru
    _
  // Predicated region
  $region38: #{lenet_forward.1} parent=0 // pred_check
    _
  $region39: #{lenet_forward.1} parent=0 // pred_check_branch
    %35 = sbr.rel (0) target = $region41
  $region40: #{lenet_forward.1} parent=0 // pred_region
    _
  $region41: #{lenet_forward.1} parent=0 // pred_fallthru
    _
  // Predicated region
  $region42: #{lenet_forward.1} parent=0 // pred_check
    _
  $region43: #{lenet_forward.1} parent=0 // pred_check_branch
    %37 = sbr.rel (0) target = $region45
  $region44: #{lenet_forward.1} parent=0 // pred_region
    _
  $region45: #{lenet_forward.1} parent=0 // pred_fallthru
    _
  %v39 = vld [vmem:[%s0] sm:$0xff]
  %v40 = vld [vmem:[%s0 + $0x8] sm:$0xff]
  %v41 = vld [vmem:[%s0 + $0x10] sm:$0xff]
  %v42 = vld [vmem:[%s0 + $0x18] sm:$0xff]
  %v43 = vld [vmem:[%s0 + $0x20] sm:$0xff]
  %v44 = vld [vmem:[%s0 + $0x28] sm:$0xff]
  %v45 = vpack.c.bf16 %v40, %v39
  %v46 = vpack.c.bf16 %v42, %v41
  %v47 = vpack.c.bf16 %v44, %v43
  %s48 = scalar_lea.vmem %s0, 56
  %v49 = vld [vmem:[%s48] sm:$0xff]
  %v50 = vld [vmem:[%s48 + $0x8] sm:$0xff]
  %v51 = vld [vmem:[%s48 + $0x10] sm:$0xff]
  %v52 = vld [vmem:[%s48 + $0x18] sm:$0xff]
  %v53 = vld [vmem:[%s48 + $0x20] sm:$0xff]
  %v54 = vld [vmem:[%s48 + $0x28] sm:$0xff]
  %v55 = vpack.c.bf16 %v50, %v49
  %v56 = vpack.c.bf16 %v52, %v51
  %v57 = vpack.c.bf16 %v54, %v53
  %s58 = scalar_lea.vmem %s0, 112
  %v59 = vld [vmem:[%s58] sm:$0xff]
  %v60 = vld [vmem:[%s58 + $0x8] sm:$0xff]
  %v61 = vld [vmem:[%s58 + $0x10] sm:$0xff]
  %v62 = vld [vmem:[%s58 + $0x18] sm:$0xff]
  %v63 = vld [vmem:[%s58 + $0x20] sm:$0xff]
  %v64 = vld [vmem:[%s58 + $0x28] sm:$0xff]
  %v65 = vpack.c.bf16 %v60, %v59
  %v66 = vpack.c.bf16 %v62, %v61
  %v67 = vpack.c.bf16 %v64, %v63
  %s68 = scalar_lea.vmem %s0, 168
  %v69 = vld [vmem:[%s68] sm:$0xff]
  %v70 = vld [vmem:[%s68 + $0x8] sm:$0xff]
  %v71 = vld [vmem:[%s68 + $0x10] sm:$0xff]
  %v72 = vld [vmem:[%s68 + $0x18] sm:$0xff]
  %v73 = vld [vmem:[%s68 + $0x20] sm:$0xff]
  %v74 = vld [vmem:[%s68 + $0x28] sm:$0xff]
  %v75 = vpack.c.bf16 %v70, %v69
  %v76 = vpack.c.bf16 %v72, %v71
  %v77 = vpack.c.bf16 %v74, %v73
  %s78 = scalar_lea.vmem %s0, 8
  %v79 = vld [vmem:[%s78] sm:$0xff]
  %v80 = vld [vmem:[%s78 + $0x8] sm:$0xff]
  %v81 = vld [vmem:[%s78 + $0x10] sm:$0xff]
  %v82 = vld [vmem:[%s78 + $0x18] sm:$0xff]
  %v83 = vld [vmem:[%s78 + $0x20] sm:$0xff]
  %v84 = vld [vmem:[%s78 + $0x28] sm:$0xff]
  %v85 = vpack.c.bf16 %v80, %v79
  %v86 = vpack.c.bf16 %v82, %v81
  %v87 = vpack.c.bf16 %v84, %v83
  %s88 = scalar_lea.vmem %s0, 64
  %v89 = vld [vmem:[%s88] sm:$0xff]
  %v90 = vld [vmem:[%s88 + $0x8] sm:$0xff]
  %v91 = vld [vmem:[%s88 + $0x10] sm:$0xff]
  %v92 = vld [vmem:[%s88 + $0x18] sm:$0xff]
  %v93 = vld [vmem:[%s88 + $0x20] sm:$0xff]
  %v94 = vld [vmem:[%s88 + $0x28] sm:$0xff]
  %v95 = vpack.c.bf16 %v90, %v89
  %v96 = vpack.c.bf16 %v92, %v91
  %v97 = vpack.c.bf16 %v94, %v93
  %s98 = scalar_lea.vmem %s0, 120
  %v99 = vld [vmem:[%s98] sm:$0xff]
  %v100 = vld [vmem:[%s98 + $0x8] sm:$0xff]
  %v101 = vld [vmem:[%s98 + $0x10] sm:$0xff]
  %v102 = vld [vmem:[%s98 + $0x18] sm:$0xff]
  %v103 = vld [vmem:[%s98 + $0x20] sm:$0xff]
  %v104 = vld [vmem:[%s98 + $0x28] sm:$0xff]
  %v105 = vpack.c.bf16 %v100, %v99
  %v106 = vpack.c.bf16 %v102, %v101
  %v107 = vpack.c.bf16 %v104, %v103
  %s108 = scalar_lea.vmem %s0, 176
  %v109 = vld [vmem:[%s108] sm:$0xff]
  %v110 = vld [vmem:[%s108 + $0x8] sm:$0xff]
  %v111 = vld [vmem:[%s108 + $0x10] sm:$0xff]
  %v112 = vld [vmem:[%s108 + $0x18] sm:$0xff]
  %v113 = vld [vmem:[%s108 + $0x20] sm:$0xff]
  %v114 = vld [vmem:[%s108 + $0x28] sm:$0xff]
  %v115 = vpack.c.bf16 %v110, %v109
  %v116 = vpack.c.bf16 %v112, %v111
  %v117 = vpack.c.bf16 %v114, %v113
  %v118 = vld [vmem:[%s1] sm:$0xff]
  %v119 = vld [vmem:[%s1 + $0x8] sm:$0xff]
  %v120 = vld [vmem:[%s1 + $0x10] sm:$0xff]
  %v121 = vld [vmem:[%s1 + $0x18] sm:$0xff]
  %s122 = scalar_lea.vmem %s1, 32
  %v123 = vld [vmem:[%s122] sm:$0xff]
  %v124 = vld [vmem:[%s122 + $0x8] sm:$0xff]
  %v125 = vld [vmem:[%s122 + $0x10] sm:$0xff]
  %v126 = vld [vmem:[%s122 + $0x18] sm:$0xff]
  %v131 = vunpack.c.l.b16 %v123
  %v132 = vunpack.c.h.b16 %v123
  %v133 = vunpack.c.l.b16 %v124
  %v134 = vunpack.c.h.b16 %v124
  %v135 = vunpack.c.l.b16 %v125
  %v136 = vunpack.c.h.b16 %v125
  %v137 = vunpack.c.l.b16 %v126
  %v138 = vunpack.c.h.b16 %v126
  %v139 = vpack.c.b16 %v133, %v131
  %v140 = vpack.c.b16 %v134, %v132
  %v141 = vpack.c.b16 %v137, %v135
  %v142 = vpack.c.b16 %v138, %v136
  %vm147 = vcmask 261120
  %v149 = vsel %vm147, %v55, 0
  %v152 = vsel %vm147, %v56, 0
  %v155 = vsel %vm147, %v57, 0
  %157 = vmatprep.subr.bf16.mxu0 0
  %158 = vmatpush1.bf16.msra.mxu0 0
  %159 = vmatprep.subr.bf16.mxu0 0
  %160 = vmatpush1.bf16.msra.mxu0 0
  %161 = vmatprep.subr.bf16.mxu0 0
  %162 = vmatpush1.bf16.msra.mxu0 0
  %163 = vmatprep.subr.bf16.mxu0 0
  %164 = vmatpush1.bf16.msra.mxu0 0
  %165 = vmatprep.subr.bf16.mxu0 0
  %166 = vmatpush1.bf16.msra.mxu0 0
  %167 = vmatprep.subr.bf16.mxu0 0
  %168 = vmatpush1.bf16.msra.mxu0 0
  %169 = vmatprep.subr.bf16.mxu0 %v142
  %170 = vmatpush1.bf16.msra.mxu0 %v141
  %171 = vmatprep.subr.bf16.mxu0 %v140
  %172 = vmatpush1.bf16.msra.mxu0 %v139
  %173 = vmatprep.subr.bf16.mxu0 0
  %174 = vmatpush2.bf16.msra.mxu0 0
  %175 = vmatprep.subr.bf16.mxu0 0
  %176 = vmatpush2.bf16.msra.mxu0 0
  %177 = vmatprep.subr.bf16.mxu0 0
  %178 = vmatpush2.bf16.msra.mxu0 0
  %179 = vmatprep.subr.bf16.mxu0 0
  %180 = vmatpush2.bf16.msra.mxu0 0
  %181 = vmatprep.subr.bf16.mxu0 0
  %182 = vmatpush2.bf16.msra.mxu0 0
  %183 = vmatprep.subr.bf16.mxu0 0
  %184 = vmatpush2.bf16.msra.mxu0 0
  %185 = vmatprep.subr.bf16.mxu0 0
  %186 = vmatpush2.bf16.msra.mxu0 0
  %187 = vmatprep.subr.bf16.mxu0 0
  %188 = vmatpush2.bf16.msra.mxu0 0
  %189 = vmatprep.mubr.bf16.mxu0 0
  %190 = vmatmul.mubr.bf16.gmra.mxu0 %v149
  %v191 = vpop.f32.mrf.mxu0
  %v192 = vadd.f32 0.0, %v191
  %v193 = vpop.f32.mrf.mxu0
  %v194 = vadd.f32 0.0, %v193
  %v195 = vpop.f32.mrf.mxu0
  %v196 = vadd.f32 0.0, %v195
  %v197 = vpop.f32.mrf.mxu0
  %v198 = vadd.f32 0.0, %v197
  %199 = vmatprep.mubr.bf16.mxu0 0
  %200 = vmatmul.mubr.bf16.gmra.mxu0 %v152
  %v201 = vpop.f32.mrf.mxu0
  %v202 = vadd.f32 0.0, %v201
  %v203 = vpop.f32.mrf.mxu0
  %v204 = vadd.f32 0.0, %v203
  %v205 = vpop.f32.mrf.mxu0
  %v206 = vadd.f32 0.0, %v205
  %v207 = vpop.f32.mrf.mxu0
  %v208 = vadd.f32 0.0, %v207
  %209 = vmatprep.mubr.bf16.mxu0 0
  %210 = vmatmul.mubr.bf16.gmra.mxu0 %v155
  %v211 = vpop.f32.mrf.mxu0
  %v212 = vadd.f32 0.0, %v211
  %v213 = vpop.f32.mrf.mxu0
  %v214 = vadd.f32 0.0, %v213
  %v215 = vpop.f32.mrf.mxu0
  %v216 = vadd.f32 0.0, %v215
  %v217 = vpop.f32.mrf.mxu0
  %v218 = vadd.f32 0.0, %v217
  %219 = vdwg.mxu0
  %v224 = vunpack.c.l.b16 %v118
  %v225 = vunpack.c.h.b16 %v118
  %v226 = vunpack.c.l.b16 %v119
  %v227 = vunpack.c.h.b16 %v119
  %v228 = vunpack.c.l.b16 %v120
  %v229 = vunpack.c.h.b16 %v120
  %v230 = vunpack.c.l.b16 %v121
  %v231 = vunpack.c.h.b16 %v121
  %v232 = vpack.c.b16 %v226, %v224
  %v233 = vpack.c.b16 %v227, %v225
  %v234 = vpack.c.b16 %v230, %v228
  %v235 = vpack.c.b16 %v231, %v229
  %v241 = vsel %vm147, %v45, 0
  %v244 = vsel %vm147, %v46, 0
  %v247 = vsel %vm147, %v47, 0
  %249 = vmatprep.subr.bf16.mxu0 0
  %250 = vmatpush1.bf16.msra.mxu0 0
  %251 = vmatprep.subr.bf16.mxu0 0
  %252 = vmatpush1.bf16.msra.mxu0 0
  %253 = vmatprep.subr.bf16.mxu0 0
  %254 = vmatpush1.bf16.msra.mxu0 0
  %255 = vmatprep.subr.bf16.mxu0 0
  %256 = vmatpush1.bf16.msra.mxu0 0
  %257 = vmatprep.subr.bf16.mxu0 0
  %258 = vmatpush1.bf16.msra.mxu0 0
  %259 = vmatprep.subr.bf16.mxu0 0
  %260 = vmatpush1.bf16.msra.mxu0 0
  %261 = vmatprep.subr.bf16.mxu0 %v235
  %262 = vmatpush1.bf16.msra.mxu0 %v234
  %263 = vmatprep.subr.bf16.mxu0 %v233
  %264 = vmatpush1.bf16.msra.mxu0 %v232
  %265 = vmatprep.subr.bf16.mxu0 0
  %266 = vmatpush2.bf16.msra.mxu0 0
  %267 = vmatprep.subr.bf16.mxu0 0
  %268 = vmatpush2.bf16.msra.mxu0 0
  %269 = vmatprep.subr.bf16.mxu0 0
  %270 = vmatpush2.bf16.msra.mxu0 0
  %271 = vmatprep.subr.bf16.mxu0 0
  %272 = vmatpush2.bf16.msra.mxu0 0
  %273 = vmatprep.subr.bf16.mxu0 0
  %274 = vmatpush2.bf16.msra.mxu0 0
  %275 = vmatprep.subr.bf16.mxu0 0
  %276 = vmatpush2.bf16.msra.mxu0 0
  %277 = vmatprep.subr.bf16.mxu0 0
  %278 = vmatpush2.bf16.msra.mxu0 0
  %279 = vmatprep.subr.bf16.mxu0 0
  %280 = vmatpush2.bf16.msra.mxu0 0
  %281 = vmatprep.mubr.bf16.mxu0 0
  %282 = vmatmul.mubr.bf16.gmra.mxu0 %v241
  %v283 = vpop.f32.mrf.mxu0
  %v284 = vadd.f32 %v192, %v283
  %v285 = vpop.f32.mrf.mxu0
  %v286 = vadd.f32 %v194, %v285
  %v287 = vpop.f32.mrf.mxu0
  %v288 = vadd.f32 %v196, %v287
  %v289 = vpop.f32.mrf.mxu0
  %v290 = vadd.f32 %v198, %v289
  %291 = vmatprep.mubr.bf16.mxu0 0
  %292 = vmatmul.mubr.bf16.gmra.mxu0 %v244
  %v293 = vpop.f32.mrf.mxu0
  %v294 = vadd.f32 %v202, %v293
  %v295 = vpop.f32.mrf.mxu0
  %v296 = vadd.f32 %v204, %v295
  %v297 = vpop.f32.mrf.mxu0
  %v298 = vadd.f32 %v206, %v297
  %v299 = vpop.f32.mrf.mxu0
  %v300 = vadd.f32 %v208, %v299
  %301 = vmatprep.mubr.bf16.mxu0 0
  %302 = vmatmul.mubr.bf16.gmra.mxu0 %v247
  %v303 = vpop.f32.mrf.mxu0
  %v304 = vadd.f32 %v212, %v303
  %v305 = vpop.f32.mrf.mxu0
  %v306 = vadd.f32 %v214, %v305
  %v307 = vpop.f32.mrf.mxu0
  %v308 = vadd.f32 %v216, %v307
  %v309 = vpop.f32.mrf.mxu0
  %v310 = vadd.f32 %v218, %v309
  %311 = vdwg.mxu0
  %s312 = scalar_lea.vmem %s1, 64
  %v313 = vld [vmem:[%s312] sm:$0xff]
  %v314 = vld [vmem:[%s312 + $0x8] sm:$0xff]
  %v315 = vld [vmem:[%s312 + $0x10] sm:$0xff]
  %v316 = vld [vmem:[%s312 + $0x18] sm:$0xff]
  %v321 = vunpack.c.l.b16 %v313
  %v322 = vunpack.c.h.b16 %v313
  %v323 = vunpack.c.l.b16 %v314
  %v324 = vunpack.c.h.b16 %v314
  %v325 = vunpack.c.l.b16 %v315
  %v326 = vunpack.c.h.b16 %v315
  %v327 = vunpack.c.l.b16 %v316
  %v328 = vunpack.c.h.b16 %v316
  %v329 = vpack.c.b16 %v323, %v321
  %v330 = vpack.c.b16 %v324, %v322
  %v331 = vpack.c.b16 %v327, %v325
  %v332 = vpack.c.b16 %v328, %v326
  %v338 = vsel %vm147, %v65, 0
  %v341 = vsel %vm147, %v66, 0
  %v344 = vsel %vm147, %v67, 0
  %346 = vmatprep.subr.bf16.mxu0 0
  %347 = vmatpush1.bf16.msra.mxu0 0
  %348 = vmatprep.subr.bf16.mxu0 0
  %349 = vmatpush1.bf16.msra.mxu0 0
  %350 = vmatprep.subr.bf16.mxu0 0
  %351 = vmatpush1.bf16.msra.mxu0 0
  %352 = vmatprep.subr.bf16.mxu0 0
  %353 = vmatpush1.bf16.msra.mxu0 0
  %354 = vmatprep.subr.bf16.mxu0 0
  %355 = vmatpush1.bf16.msra.mxu0 0
  %356 = vmatprep.subr.bf16.mxu0 0
  %357 = vmatpush1.bf16.msra.mxu0 0
  %358 = vmatprep.subr.bf16.mxu0 %v332
  %359 = vmatpush1.bf16.msra.mxu0 %v331
  %360 = vmatprep.subr.bf16.mxu0 %v330
  %361 = vmatpush1.bf16.msra.mxu0 %v329
  %362 = vmatprep.subr.bf16.mxu0 0
  %363 = vmatpush2.bf16.msra.mxu0 0
  %364 = vmatprep.subr.bf16.mxu0 0
  %365 = vmatpush2.bf16.msra.mxu0 0
  %366 = vmatprep.subr.bf16.mxu0 0
  %367 = vmatpush2.bf16.msra.mxu0 0
  %368 = vmatprep.subr.bf16.mxu0 0
  %369 = vmatpush2.bf16.msra.mxu0 0
  %370 = vmatprep.subr.bf16.mxu0 0
  %371 = vmatpush2.bf16.msra.mxu0 0
  %372 = vmatprep.subr.bf16.mxu0 0
  %373 = vmatpush2.bf16.msra.mxu0 0
  %374 = vmatprep.subr.bf16.mxu0 0
  %375 = vmatpush2.bf16.msra.mxu0 0
  %376 = vmatprep.subr.bf16.mxu0 0
  %377 = vmatpush2.bf16.msra.mxu0 0
  %378 = vmatprep.mubr.bf16.mxu0 0
  %379 = vmatmul.mubr.bf16.gmra.mxu0 %v338
  %v380 = vpop.f32.mrf.mxu0
  %v381 = vadd.f32 0.0, %v380
  %v382 = vpop.f32.mrf.mxu0
  %v383 = vadd.f32 0.0, %v382
  %v384 = vpop.f32.mrf.mxu0
  %v385 = vadd.f32 0.0, %v384
  %v386 = vpop.f32.mrf.mxu0
  %v387 = vadd.f32 0.0, %v386
  %388 = vmatprep.mubr.bf16.mxu0 0
  %389 = vmatmul.mubr.bf16.gmra.mxu0 %v341
  %v390 = vpop.f32.mrf.mxu0
  %v391 = vadd.f32 0.0, %v390
  %v392 = vpop.f32.mrf.mxu0
  %v393 = vadd.f32 0.0, %v392
  %v394 = vpop.f32.mrf.mxu0
  %v395 = vadd.f32 0.0, %v394
  %v396 = vpop.f32.mrf.mxu0
  %v397 = vadd.f32 0.0, %v396
  %398 = vmatprep.mubr.bf16.mxu0 0
  %399 = vmatmul.mubr.bf16.gmra.mxu0 %v344
  %v400 = vpop.f32.mrf.mxu0
  %v401 = vadd.f32 0.0, %v400
  %v402 = vpop.f32.mrf.mxu0
  %v403 = vadd.f32 0.0, %v402
  %v404 = vpop.f32.mrf.mxu0
  %v405 = vadd.f32 0.0, %v404
  %v406 = vpop.f32.mrf.mxu0
  %v407 = vadd.f32 0.0, %v406
  %408 = vdwg.mxu0
  %v409 = vadd.f32 %v284, %v381
  %v410 = vadd.f32 %v286, %v383
  %v411 = vadd.f32 %v288, %v385
  %v412 = vadd.f32 %v290, %v387
  %v413 = vadd.f32 %v294, %v391
  %v414 = vadd.f32 %v296, %v393
  %v415 = vadd.f32 %v298, %v395
  %v416 = vadd.f32 %v300, %v397
  %v417 = vadd.f32 %v304, %v401
  %v418 = vadd.f32 %v306, %v403
  %v419 = vadd.f32 %v308, %v405
  %v420 = vadd.f32 %v310, %v407
  %s421 = scalar_lea.vmem %s1, 96
  %v422 = vld [vmem:[%s421] sm:$0xff]
  %v423 = vld [vmem:[%s421 + $0x8] sm:$0xff]
  %v424 = vld [vmem:[%s421 + $0x10] sm:$0xff]
  %v425 = vld [vmem:[%s421 + $0x18] sm:$0xff]
  %v430 = vunpack.c.l.b16 %v422
  %v431 = vunpack.c.h.b16 %v422
  %v432 = vunpack.c.l.b16 %v423
  %v433 = vunpack.c.h.b16 %v423
  %v434 = vunpack.c.l.b16 %v424
  %v435 = vunpack.c.h.b16 %v424
  %v436 = vunpack.c.l.b16 %v425
  %v437 = vunpack.c.h.b16 %v425
  %v438 = vpack.c.b16 %v432, %v430
  %v439 = vpack.c.b16 %v433, %v431
  %v440 = vpack.c.b16 %v436, %v434
  %v441 = vpack.c.b16 %v437, %v435
  %v447 = vsel %vm147, %v75, 0
  %v450 = vsel %vm147, %v76, 0
  %v453 = vsel %vm147, %v77, 0
  %455 = vmatprep.subr.bf16.mxu0 0
  %456 = vmatpush1.bf16.msra.mxu0 0
  %457 = vmatprep.subr.bf16.mxu0 0
  %458 = vmatpush1.bf16.msra.mxu0 0
  %459 = vmatprep.subr.bf16.mxu0 0
  %460 = vmatpush1.bf16.msra.mxu0 0
  %461 = vmatprep.subr.bf16.mxu0 0
  %462 = vmatpush1.bf16.msra.mxu0 0
  %463 = vmatprep.subr.bf16.mxu0 0
  %464 = vmatpush1.bf16.msra.mxu0 0
  %465 = vmatprep.subr.bf16.mxu0 0
  %466 = vmatpush1.bf16.msra.mxu0 0
  %467 = vmatprep.subr.bf16.mxu0 %v441
  %468 = vmatpush1.bf16.msra.mxu0 %v440
  %469 = vmatprep.subr.bf16.mxu0 %v439
  %470 = vmatpush1.bf16.msra.mxu0 %v438
  %471 = vmatprep.subr.bf16.mxu0 0
  %472 = vmatpush2.bf16.msra.mxu0 0
  %473 = vmatprep.subr.bf16.mxu0 0
  %474 = vmatpush2.bf16.msra.mxu0 0
  %475 = vmatprep.subr.bf16.mxu0 0
  %476 = vmatpush2.bf16.msra.mxu0 0
  %477 = vmatprep.subr.bf16.mxu0 0
  %478 = vmatpush2.bf16.msra.mxu0 0
  %479 = vmatprep.subr.bf16.mxu0 0
  %480 = vmatpush2.bf16.msra.mxu0 0
  %481 = vmatprep.subr.bf16.mxu0 0
  %482 = vmatpush2.bf16.msra.mxu0 0
  %483 = vmatprep.subr.bf16.mxu0 0
  %484 = vmatpush2.bf16.msra.mxu0 0
  %485 = vmatprep.subr.bf16.mxu0 0
  %486 = vmatpush2.bf16.msra.mxu0 0
  %487 = vmatprep.mubr.bf16.mxu0 0
  %488 = vmatmul.mubr.bf16.gmra.mxu0 %v447
  %v489 = vpop.f32.mrf.mxu0
  %v490 = vadd.f32 0.0, %v489
  %v491 = vpop.f32.mrf.mxu0
  %v492 = vadd.f32 0.0, %v491
  %v493 = vpop.f32.mrf.mxu0
  %v494 = vadd.f32 0.0, %v493
  %v495 = vpop.f32.mrf.mxu0
  %v496 = vadd.f32 0.0, %v495
  %497 = vmatprep.mubr.bf16.mxu0 0
  %498 = vmatmul.mubr.bf16.gmra.mxu0 %v450
  %v499 = vpop.f32.mrf.mxu0
  %v500 = vadd.f32 0.0, %v499
  %v501 = vpop.f32.mrf.mxu0
  %v502 = vadd.f32 0.0, %v501
  %v503 = vpop.f32.mrf.mxu0
  %v504 = vadd.f32 0.0, %v503
  %v505 = vpop.f32.mrf.mxu0
  %v506 = vadd.f32 0.0, %v505
  %507 = vmatprep.mubr.bf16.mxu0 0
  %508 = vmatmul.mubr.bf16.gmra.mxu0 %v453
  %v509 = vpop.f32.mrf.mxu0
  %v510 = vadd.f32 0.0, %v509
  %v511 = vpop.f32.mrf.mxu0
  %v512 = vadd.f32 0.0, %v511
  %v513 = vpop.f32.mrf.mxu0
  %v514 = vadd.f32 0.0, %v513
  %v515 = vpop.f32.mrf.mxu0
  %v516 = vadd.f32 0.0, %v515
  %517 = vdwg.mxu0
  %v518 = vadd.f32 %v409, %v490
  %v519 = vadd.f32 %v410, %v492
  %v520 = vadd.f32 %v411, %v494
  %v521 = vadd.f32 %v412, %v496
  %v522 = vadd.f32 %v413, %v500
  %v523 = vadd.f32 %v414, %v502
  %v524 = vadd.f32 %v415, %v504
  %v525 = vadd.f32 %v416, %v506
  %v526 = vadd.f32 %v417, %v510
  %v527 = vadd.f32 %v418, %v512
  %v528 = vadd.f32 %v419, %v514
  %v529 = vadd.f32 %v420, %v516
  %s530 = scalar_lea.vmem %s1, 128
  %v531 = vld [vmem:[%s530] sm:$0xff]
  %v532 = vld [vmem:[%s530 + $0x8] sm:$0xff]
  %v533 = vld [vmem:[%s530 + $0x10] sm:$0xff]
  %v534 = vld [vmem:[%s530 + $0x18] sm:$0xff]
  %v539 = vunpack.c.l.b16 %v531
  %v540 = vunpack.c.h.b16 %v531
  %v541 = vunpack.c.l.b16 %v532
  %v542 = vunpack.c.h.b16 %v532
  %v543 = vunpack.c.l.b16 %v533
  %v544 = vunpack.c.h.b16 %v533
  %v545 = vunpack.c.l.b16 %v534
  %v546 = vunpack.c.h.b16 %v534
  %v547 = vpack.c.b16 %v541, %v539
  %v548 = vpack.c.b16 %v542, %v540
  %v549 = vpack.c.b16 %v545, %v543
  %v550 = vpack.c.b16 %v546, %v544
  %v556 = vsel %vm147, %v85, 0
  %v559 = vsel %vm147, %v86, 0
  %v562 = vsel %vm147, %v87, 0
  %564 = vmatprep.subr.bf16.mxu0 0
  %565 = vmatpush1.bf16.msra.mxu0 0
  %566 = vmatprep.subr.bf16.mxu0 0
  %567 = vmatpush1.bf16.msra.mxu0 0
  %568 = vmatprep.subr.bf16.mxu0 0
  %569 = vmatpush1.bf16.msra.mxu0 0
  %570 = vmatprep.subr.bf16.mxu0 0
  %571 = vmatpush1.bf16.msra.mxu0 0
  %572 = vmatprep.subr.bf16.mxu0 0
  %573 = vmatpush1.bf16.msra.mxu0 0
  %574 = vmatprep.subr.bf16.mxu0 0
  %575 = vmatpush1.bf16.msra.mxu0 0
  %576 = vmatprep.subr.bf16.mxu0 %v550
  %577 = vmatpush1.bf16.msra.mxu0 %v549
  %578 = vmatprep.subr.bf16.mxu0 %v548
  %579 = vmatpush1.bf16.msra.mxu0 %v547
  %580 = vmatprep.subr.bf16.mxu0 0
  %581 = vmatpush2.bf16.msra.mxu0 0
  %582 = vmatprep.subr.bf16.mxu0 0
  %583 = vmatpush2.bf16.msra.mxu0 0
  %584 = vmatprep.subr.bf16.mxu0 0
  %585 = vmatpush2.bf16.msra.mxu0 0
  %586 = vmatprep.subr.bf16.mxu0 0
  %587 = vmatpush2.bf16.msra.mxu0 0
  %588 = vmatprep.subr.bf16.mxu0 0
  %589 = vmatpush2.bf16.msra.mxu0 0
  %590 = vmatprep.subr.bf16.mxu0 0
  %591 = vmatpush2.bf16.msra.mxu0 0
  %592 = vmatprep.subr.bf16.mxu0 0
  %593 = vmatpush2.bf16.msra.mxu0 0
  %594 = vmatprep.subr.bf16.mxu0 0
  %595 = vmatpush2.bf16.msra.mxu0 0
  %596 = vmatprep.mubr.bf16.mxu0 0
  %597 = vmatmul.mubr.bf16.gmra.mxu0 %v556
  %v598 = vpop.f32.mrf.mxu0
  %v599 = vadd.f32 0.0, %v598
  %v600 = vpop.f32.mrf.mxu0
  %v601 = vadd.f32 0.0, %v600
  %v602 = vpop.f32.mrf.mxu0
  %v603 = vadd.f32 0.0, %v602
  %v604 = vpop.f32.mrf.mxu0
  %v605 = vadd.f32 0.0, %v604
  %606 = vmatprep.mubr.bf16.mxu0 0
  %607 = vmatmul.mubr.bf16.gmra.mxu0 %v559
  %v608 = vpop.f32.mrf.mxu0
  %v609 = vadd.f32 0.0, %v608
  %v610 = vpop.f32.mrf.mxu0
  %v611 = vadd.f32 0.0, %v610
  %v612 = vpop.f32.mrf.mxu0
  %v613 = vadd.f32 0.0, %v612
  %v614 = vpop.f32.mrf.mxu0
  %v615 = vadd.f32 0.0, %v614
  %616 = vmatprep.mubr.bf16.mxu0 0
  %617 = vmatmul.mubr.bf16.gmra.mxu0 %v562
  %v618 = vpop.f32.mrf.mxu0
  %v619 = vadd.f32 0.0, %v618
  %v620 = vpop.f32.mrf.mxu0
  %v621 = vadd.f32 0.0, %v620
  %v622 = vpop.f32.mrf.mxu0
  %v623 = vadd.f32 0.0, %v622
  %v624 = vpop.f32.mrf.mxu0
  %v625 = vadd.f32 0.0, %v624
  %626 = vdwg.mxu0
  %v627 = vadd.f32 %v518, %v599
  %v628 = vadd.f32 %v519, %v601
  %v629 = vadd.f32 %v520, %v603
  %v630 = vadd.f32 %v521, %v605
  %v631 = vadd.f32 %v522, %v609
  %v632 = vadd.f32 %v523, %v611
  %v633 = vadd.f32 %v524, %v613
  %v634 = vadd.f32 %v525, %v615
  %v635 = vadd.f32 %v526, %v619
  %v636 = vadd.f32 %v527, %v621
  %v637 = vadd.f32 %v528, %v623
  %v638 = vadd.f32 %v529, %v625
  %639 = vmatprep.subr.bf16.mxu0 0
  %640 = vmatpush1.bf16.msra.mxu0 0
  %641 = vmatprep.subr.bf16.mxu0 0
  %642 = vmatpush1.bf16.msra.mxu0 0
  %643 = vmatprep.subr.bf16.mxu0 0
  %644 = vmatpush1.bf16.msra.mxu0 0
  %645 = vmatprep.subr.bf16.mxu0 0
  %646 = vmatpush1.bf16.msra.mxu0 0
  %647 = vmatprep.subr.bf16.mxu0 0
  %648 = vmatpush1.bf16.msra.mxu0 0
  %649 = vmatprep.subr.bf16.mxu0 0
  %650 = vmatpush1.bf16.msra.mxu0 0
  %651 = vmatprep.subr.bf16.mxu0 %v142
  %652 = vmatpush1.bf16.msra.mxu0 %v141
  %653 = vmatprep.subr.bf16.mxu0 %v140
  %654 = vmatpush1.bf16.msra.mxu0 %v139
  %655 = vmatprep.subr.bf16.mxu0 0
  %656 = vmatpush2.bf16.msra.mxu0 0
  %657 = vmatprep.subr.bf16.mxu0 0
  %658 = vmatpush2.bf16.msra.mxu0 0
  %659 = vmatprep.subr.bf16.mxu0 0
  %660 = vmatpush2.bf16.msra.mxu0 0
  %661 = vmatprep.subr.bf16.mxu0 0
  %662 = vmatpush2.bf16.msra.mxu0 0
  %663 = vmatprep.subr.bf16.mxu0 0
  %664 = vmatpush2.bf16.msra.mxu0 0
  %665 = vmatprep.subr.bf16.mxu0 0
  %666 = vmatpush2.bf16.msra.mxu0 0
  %667 = vmatprep.subr.bf16.mxu0 0
  %668 = vmatpush2.bf16.msra.mxu0 0
  %669 = vmatprep.subr.bf16.mxu0 0
  %670 = vmatpush2.bf16.msra.mxu0 0
  %671 = vmatprep.mubr.bf16.mxu0 0
  %672 = vmatmul.mubr.bf16.gmra.mxu0 %v338
  %v673 = vpop.f32.mrf.mxu0
  %v674 = vadd.f32 0.0, %v673
  %v675 = vpop.f32.mrf.mxu0
  %v676 = vadd.f32 0.0, %v675
  %v677 = vpop.f32.mrf.mxu0
  %v678 = vadd.f32 0.0, %v677
  %v679 = vpop.f32.mrf.mxu0
  %v680 = vadd.f32 0.0, %v679
  %681 = vmatprep.mubr.bf16.mxu0 0
  %682 = vmatmul.mubr.bf16.gmra.mxu0 %v341
  %v683 = vpop.f32.mrf.mxu0
  %v684 = vadd.f32 0.0, %v683
  %v685 = vpop.f32.mrf.mxu0
  %v686 = vadd.f32 0.0, %v685
  %v687 = vpop.f32.mrf.mxu0
  %v688 = vadd.f32 0.0, %v687
  %v689 = vpop.f32.mrf.mxu0
  %v690 = vadd.f32 0.0, %v689
  %691 = vmatprep.mubr.bf16.mxu0 0
  %692 = vmatmul.mubr.bf16.gmra.mxu0 %v344
  %v693 = vpop.f32.mrf.mxu0
  %v694 = vadd.f32 0.0, %v693
  %v695 = vpop.f32.mrf.mxu0
  %v696 = vadd.f32 0.0, %v695
  %v697 = vpop.f32.mrf.mxu0
  %v698 = vadd.f32 0.0, %v697
  %v699 = vpop.f32.mrf.mxu0
  %v700 = vadd.f32 0.0, %v699
  %701 = vdwg.mxu0
  %702 = vmatprep.subr.bf16.mxu0 0
  %703 = vmatpush1.bf16.msra.mxu0 0
  %704 = vmatprep.subr.bf16.mxu0 0
  %705 = vmatpush1.bf16.msra.mxu0 0
  %706 = vmatprep.subr.bf16.mxu0 0
  %707 = vmatpush1.bf16.msra.mxu0 0
  %708 = vmatprep.subr.bf16.mxu0 0
  %709 = vmatpush1.bf16.msra.mxu0 0
  %710 = vmatprep.subr.bf16.mxu0 0
  %711 = vmatpush1.bf16.msra.mxu0 0
  %712 = vmatprep.subr.bf16.mxu0 0
  %713 = vmatpush1.bf16.msra.mxu0 0
  %714 = vmatprep.subr.bf16.mxu0 %v235
  %715 = vmatpush1.bf16.msra.mxu0 %v234
  %716 = vmatprep.subr.bf16.mxu0 %v233
  %717 = vmatpush1.bf16.msra.mxu0 %v232
  %718 = vmatprep.subr.bf16.mxu0 0
  %719 = vmatpush2.bf16.msra.mxu0 0
  %720 = vmatprep.subr.bf16.mxu0 0
  %721 = vmatpush2.bf16.msra.mxu0 0
  %722 = vmatprep.subr.bf16.mxu0 0
  %723 = vmatpush2.bf16.msra.mxu0 0
  %724 = vmatprep.subr.bf16.mxu0 0
  %725 = vmatpush2.bf16.msra.mxu0 0
  %726 = vmatprep.subr.bf16.mxu0 0
  %727 = vmatpush2.bf16.msra.mxu0 0
  %728 = vmatprep.subr.bf16.mxu0 0
  %729 = vmatpush2.bf16.msra.mxu0 0
  %730 = vmatprep.subr.bf16.mxu0 0
  %731 = vmatpush2.bf16.msra.mxu0 0
  %732 = vmatprep.subr.bf16.mxu0 0
  %733 = vmatpush2.bf16.msra.mxu0 0
  %734 = vmatprep.mubr.bf16.mxu0 0
  %735 = vmatmul.mubr.bf16.gmra.mxu0 %v149
  %v736 = vpop.f32.mrf.mxu0
  %v737 = vadd.f32 %v674, %v736
  %v738 = vpop.f32.mrf.mxu0
  %v739 = vadd.f32 %v676, %v738
  %v740 = vpop.f32.mrf.mxu0
  %v741 = vadd.f32 %v678, %v740
  %v742 = vpop.f32.mrf.mxu0
  %v743 = vadd.f32 %v680, %v742
  %744 = vmatprep.mubr.bf16.mxu0 0
  %745 = vmatmul.mubr.bf16.gmra.mxu0 %v152
  %v746 = vpop.f32.mrf.mxu0
  %v747 = vadd.f32 %v684, %v746
  %v748 = vpop.f32.mrf.mxu0
  %v749 = vadd.f32 %v686, %v748
  %v750 = vpop.f32.mrf.mxu0
  %v751 = vadd.f32 %v688, %v750
  %v752 = vpop.f32.mrf.mxu0
  %v753 = vadd.f32 %v690, %v752
  %754 = vmatprep.mubr.bf16.mxu0 0
  %755 = vmatmul.mubr.bf16.gmra.mxu0 %v155
  %v756 = vpop.f32.mrf.mxu0
  %v757 = vadd.f32 %v694, %v756
  %v758 = vpop.f32.mrf.mxu0
  %v759 = vadd.f32 %v696, %v758
  %v760 = vpop.f32.mrf.mxu0
  %v761 = vadd.f32 %v698, %v760
  %v762 = vpop.f32.mrf.mxu0
  %v763 = vadd.f32 %v700, %v762
  %764 = vdwg.mxu0
  %765 = vmatprep.subr.bf16.mxu0 0
  %766 = vmatpush1.bf16.msra.mxu0 0
  %767 = vmatprep.subr.bf16.mxu0 0
  %768 = vmatpush1.bf16.msra.mxu0 0
  %769 = vmatprep.subr.bf16.mxu0 0
  %770 = vmatpush1.bf16.msra.mxu0 0
  %771 = vmatprep.subr.bf16.mxu0 0
  %772 = vmatpush1.bf16.msra.mxu0 0
  %773 = vmatprep.subr.bf16.mxu0 0
  %774 = vmatpush1.bf16.msra.mxu0 0
  %775 = vmatprep.subr.bf16.mxu0 0
  %776 = vmatpush1.bf16.msra.mxu0 0
  %777 = vmatprep.subr.bf16.mxu0 %v332
  %778 = vmatpush1.bf16.msra.mxu0 %v331
  %779 = vmatprep.subr.bf16.mxu0 %v330
  %780 = vmatpush1.bf16.msra.mxu0 %v329
  %781 = vmatprep.subr.bf16.mxu0 0
  %782 = vmatpush2.bf16.msra.mxu0 0
  %783 = vmatprep.subr.bf16.mxu0 0
  %784 = vmatpush2.bf16.msra.mxu0 0
  %785 = vmatprep.subr.bf16.mxu0 0
  %786 = vmatpush2.bf16.msra.mxu0 0
  %787 = vmatprep.subr.bf16.mxu0 0
  %788 = vmatpush2.bf16.msra.mxu0 0
  %789 = vmatprep.subr.bf16.mxu0 0
  %790 = vmatpush2.bf16.msra.mxu0 0
  %791 = vmatprep.subr.bf16.mxu0 0
  %792 = vmatpush2.bf16.msra.mxu0 0
  %793 = vmatprep.subr.bf16.mxu0 0
  %794 = vmatpush2.bf16.msra.mxu0 0
  %795 = vmatprep.subr.bf16.mxu0 0
  %796 = vmatpush2.bf16.msra.mxu0 0
  %797 = vmatprep.mubr.bf16.mxu0 0
  %798 = vmatmul.mubr.bf16.gmra.mxu0 %v447
  %v799 = vpop.f32.mrf.mxu0
  %v800 = vadd.f32 0.0, %v799
  %v801 = vpop.f32.mrf.mxu0
  %v802 = vadd.f32 0.0, %v801
  %v803 = vpop.f32.mrf.mxu0
  %v804 = vadd.f32 0.0, %v803
  %v805 = vpop.f32.mrf.mxu0
  %v806 = vadd.f32 0.0, %v805
  %807 = vmatprep.mubr.bf16.mxu0 0
  %808 = vmatmul.mubr.bf16.gmra.mxu0 %v450
  %v809 = vpop.f32.mrf.mxu0
  %v810 = vadd.f32 0.0, %v809
  %v811 = vpop.f32.mrf.mxu0
  %v812 = vadd.f32 0.0, %v811
  %v813 = vpop.f32.mrf.mxu0
  %v814 = vadd.f32 0.0, %v813
  %v815 = vpop.f32.mrf.mxu0
  %v816 = vadd.f32 0.0, %v815
  %817 = vmatprep.mubr.bf16.mxu0 0
  %818 = vmatmul.mubr.bf16.gmra.mxu0 %v453
  %v819 = vpop.f32.mrf.mxu0
  %v820 = vadd.f32 0.0, %v819
  %v821 = vpop.f32.mrf.mxu0
  %v822 = vadd.f32 0.0, %v821
  %v823 = vpop.f32.mrf.mxu0
  %v824 = vadd.f32 0.0, %v823
  %v825 = vpop.f32.mrf.mxu0
  %v826 = vadd.f32 0.0, %v825
  %827 = vdwg.mxu0
  %v828 = vadd.f32 %v737, %v800
  %v829 = vadd.f32 %v739, %v802
  %v830 = vadd.f32 %v741, %v804
  %v831 = vadd.f32 %v743, %v806
  %v832 = vadd.f32 %v747, %v810
  %v833 = vadd.f32 %v749, %v812
  %v834 = vadd.f32 %v751, %v814
  %v835 = vadd.f32 %v753, %v816
  %v836 = vadd.f32 %v757, %v820
  %v837 = vadd.f32 %v759, %v822
  %v838 = vadd.f32 %v761, %v824
  %v839 = vadd.f32 %v763, %v826
  %840 = vmatprep.subr.bf16.mxu0 0
  %841 = vmatpush1.bf16.msra.mxu0 0
  %842 = vmatprep.subr.bf16.mxu0 0
  %843 = vmatpush1.bf16.msra.mxu0 0
  %844 = vmatprep.subr.bf16.mxu0 0
  %845 = vmatpush1.bf16.msra.mxu0 0
  %846 = vmatprep.subr.bf16.mxu0 0
  %847 = vmatpush1.bf16.msra.mxu0 0
  %848 = vmatprep.subr.bf16.mxu0 0
  %849 = vmatpush1.bf16.msra.mxu0 0
  %850 = vmatprep.subr.bf16.mxu0 0
  %851 = vmatpush1.bf16.msra.mxu0 0
  %852 = vmatprep.subr.bf16.mxu0 %v441
  %853 = vmatpush1.bf16.msra.mxu0 %v440
  %854 = vmatprep.subr.bf16.mxu0 %v439
  %855 = vmatpush1.bf16.msra.mxu0 %v438
  %856 = vmatprep.subr.bf16.mxu0 0
  %857 = vmatpush2.bf16.msra.mxu0 0
  %858 = vmatprep.subr.bf16.mxu0 0
  %859 = vmatpush2.bf16.msra.mxu0 0
  %860 = vmatprep.subr.bf16.mxu0 0
  %861 = vmatpush2.bf16.msra.mxu0 0
  %862 = vmatprep.subr.bf16.mxu0 0
  %863 = vmatpush2.bf16.msra.mxu0 0
  %864 = vmatprep.subr.bf16.mxu0 0
  %865 = vmatpush2.bf16.msra.mxu0 0
  %866 = vmatprep.subr.bf16.mxu0 0
  %867 = vmatpush2.bf16.msra.mxu0 0
  %868 = vmatprep.subr.bf16.mxu0 0
  %869 = vmatpush2.bf16.msra.mxu0 0
  %870 = vmatprep.subr.bf16.mxu0 0
  %871 = vmatpush2.bf16.msra.mxu0 0
  %872 = vmatprep.mubr.bf16.mxu0 0
  %873 = vmatmul.mubr.bf16.gmra.mxu0 %v556
  %v874 = vpop.f32.mrf.mxu0
  %v875 = vadd.f32 0.0, %v874
  %v876 = vpop.f32.mrf.mxu0
  %v877 = vadd.f32 0.0, %v876
  %v878 = vpop.f32.mrf.mxu0
  %v879 = vadd.f32 0.0, %v878
  %v880 = vpop.f32.mrf.mxu0
  %v881 = vadd.f32 0.0, %v880
  %882 = vmatprep.mubr.bf16.mxu0 0
  %883 = vmatmul.mubr.bf16.gmra.mxu0 %v559
  %v884 = vpop.f32.mrf.mxu0
  %v885 = vadd.f32 0.0, %v884
  %v886 = vpop.f32.mrf.mxu0
  %v887 = vadd.f32 0.0, %v886
  %v888 = vpop.f32.mrf.mxu0
  %v889 = vadd.f32 0.0, %v888
  %v890 = vpop.f32.mrf.mxu0
  %v891 = vadd.f32 0.0, %v890
  %892 = vmatprep.mubr.bf16.mxu0 0
  %893 = vmatmul.mubr.bf16.gmra.mxu0 %v562
  %v894 = vpop.f32.mrf.mxu0
  %v895 = vadd.f32 0.0, %v894
  %v896 = vpop.f32.mrf.mxu0
  %v897 = vadd.f32 0.0, %v896
  %v898 = vpop.f32.mrf.mxu0
  %v899 = vadd.f32 0.0, %v898
  %v900 = vpop.f32.mrf.mxu0
  %v901 = vadd.f32 0.0, %v900
  %902 = vdwg.mxu0
  %v903 = vadd.f32 %v828, %v875
  %v904 = vadd.f32 %v829, %v877
  %v905 = vadd.f32 %v830, %v879
  %v906 = vadd.f32 %v831, %v881
  %v907 = vadd.f32 %v832, %v885
  %v908 = vadd.f32 %v833, %v887
  %v909 = vadd.f32 %v834, %v889
  %v910 = vadd.f32 %v835, %v891
  %v911 = vadd.f32 %v836, %v895
  %v912 = vadd.f32 %v837, %v897
  %v913 = vadd.f32 %v838, %v899
  %v914 = vadd.f32 %v839, %v901
  %v916 = vsel %vm147, %v95, 0
  %v919 = vsel %vm147, %v96, 0
  %v922 = vsel %vm147, %v97, 0
  %924 = vmatprep.subr.bf16.mxu0 0
  %925 = vmatpush1.bf16.msra.mxu0 0
  %926 = vmatprep.subr.bf16.mxu0 0
  %927 = vmatpush1.bf16.msra.mxu0 0
  %928 = vmatprep.subr.bf16.mxu0 0
  %929 = vmatpush1.bf16.msra.mxu0 0
  %930 = vmatprep.subr.bf16.mxu0 0
  %931 = vmatpush1.bf16.msra.mxu0 0
  %932 = vmatprep.subr.bf16.mxu0 0
  %933 = vmatpush1.bf16.msra.mxu0 0
  %934 = vmatprep.subr.bf16.mxu0 0
  %935 = vmatpush1.bf16.msra.mxu0 0
  %936 = vmatprep.subr.bf16.mxu0 %v550
  %937 = vmatpush1.bf16.msra.mxu0 %v549
  %938 = vmatprep.subr.bf16.mxu0 %v548
  %939 = vmatpush1.bf16.msra.mxu0 %v547
  %940 = vmatprep.subr.bf16.mxu0 0
  %941 = vmatpush2.bf16.msra.mxu0 0
  %942 = vmatprep.subr.bf16.mxu0 0
  %943 = vmatpush2.bf16.msra.mxu0 0
  %944 = vmatprep.subr.bf16.mxu0 0
  %945 = vmatpush2.bf16.msra.mxu0 0
  %946 = vmatprep.subr.bf16.mxu0 0
  %947 = vmatpush2.bf16.msra.mxu0 0
  %948 = vmatprep.subr.bf16.mxu0 0
  %949 = vmatpush2.bf16.msra.mxu0 0
  %950 = vmatprep.subr.bf16.mxu0 0
  %951 = vmatpush2.bf16.msra.mxu0 0
  %952 = vmatprep.subr.bf16.mxu0 0
  %953 = vmatpush2.bf16.msra.mxu0 0
  %954 = vmatprep.subr.bf16.mxu0 0
  %955 = vmatpush2.bf16.msra.mxu0 0
  %956 = vmatprep.mubr.bf16.mxu0 0
  %957 = vmatmul.mubr.bf16.gmra.mxu0 %v916
  %v958 = vpop.f32.mrf.mxu0
  %v959 = vadd.f32 0.0, %v958
  %v960 = vpop.f32.mrf.mxu0
  %v961 = vadd.f32 0.0, %v960
  %v962 = vpop.f32.mrf.mxu0
  %v963 = vadd.f32 0.0, %v962
  %v964 = vpop.f32.mrf.mxu0
  %v965 = vadd.f32 0.0, %v964
  %966 = vmatprep.mubr.bf16.mxu0 0
  %967 = vmatmul.mubr.bf16.gmra.mxu0 %v919
  %v968 = vpop.f32.mrf.mxu0
  %v969 = vadd.f32 0.0, %v968
  %v970 = vpop.f32.mrf.mxu0
  %v971 = vadd.f32 0.0, %v970
  %v972 = vpop.f32.mrf.mxu0
  %v973 = vadd.f32 0.0, %v972
  %v974 = vpop.f32.mrf.mxu0
  %v975 = vadd.f32 0.0, %v974
  %976 = vmatprep.mubr.bf16.mxu0 0
  %977 = vmatmul.mubr.bf16.gmra.mxu0 %v922
  %v978 = vpop.f32.mrf.mxu0
  %v979 = vadd.f32 0.0, %v978
  %v980 = vpop.f32.mrf.mxu0
  %v981 = vadd.f32 0.0, %v980
  %v982 = vpop.f32.mrf.mxu0
  %v983 = vadd.f32 0.0, %v982
  %v984 = vpop.f32.mrf.mxu0
  %v985 = vadd.f32 0.0, %v984
  %986 = vdwg.mxu0
  %v987 = vadd.f32 %v903, %v959
  %v988 = vadd.f32 %v904, %v961
  %v989 = vadd.f32 %v905, %v963
  %v990 = vadd.f32 %v906, %v965
  %v991 = vadd.f32 %v907, %v969
  %v992 = vadd.f32 %v908, %v971
  %v993 = vadd.f32 %v909, %v973
  %v994 = vadd.f32 %v910, %v975
  %v995 = vadd.f32 %v911, %v979
  %v996 = vadd.f32 %v912, %v981
  %v997 = vadd.f32 %v913, %v983
  %v998 = vadd.f32 %v914, %v985
  %v999 = vmax.f32 %v627, %v987
  %v1000 = vmax.f32 %v628, %v988
  %v1001 = vmax.f32 %v629, %v989
  %v1002 = vmax.f32 %v630, %v990
  %v1003 = vmax.f32 %v631, %v991
  %v1004 = vmax.f32 %v632, %v992
  %v1005 = vmax.f32 %v633, %v993
  %v1006 = vmax.f32 %v634, %v994
  %v1007 = vmax.f32 %v635, %v995
  %v1008 = vmax.f32 %v636, %v996
  %v1009 = vmax.f32 %v637, %v997
  %v1010 = vmax.f32 %v638, %v998
  %v1011 = vmax.f32 %v999, %v1000
  %v1012 = vmax.f32 %v1001, %v1002
  %v1013 = vmax.f32 %v1003, %v1004
  %v1014 = vmax.f32 %v1005, %v1006
  %v1015 = vmax.f32 %v1007, %v1008
  %v1016 = vmax.f32 %v1009, %v1010
  %v1017 = vld [vmem:[%s2] sm:$0x1]
  %v1019 = vlaneseq
  %v1020 = vshrl.u32 %v1019, 7
  %v1021 = vsub.s32 0, %v1020
  %v1022 = vrot.slane %v1017, %v1021
  %v1024 = vadd.f32 %v1011, %v1022
  %v1025 = vadd.f32 %v1012, %v1022
  %v1026 = vadd.f32 %v1013, %v1022
  %v1027 = vadd.f32 %v1014, %v1022
  %v1028 = vadd.f32 %v1015, %v1022
  %v1029 = vadd.f32 %v1016, %v1022
  %v1030 = vmax.f32 %v1024, 0.0
  %v1031 = vmax.f32 %v1025, 0.0
  %v1032 = vmax.f32 %v1026, 0.0
  %v1033 = vmax.f32 %v1027, 0.0
  %v1034 = vmax.f32 %v1028, 0.0
  %v1035 = vmax.f32 %v1029, 0.0
  %1036 = vst [vmem:[#allocation2] sm:$0xff] %v1030
  %1037 = vst [vmem:[#allocation2 + $0x8] sm:$0xff] %v1031
  %1038 = vst [vmem:[#allocation2 + $0x10] sm:$0xff] %v1032
  %1039 = vst [vmem:[#allocation2 + $0x18] sm:$0xff] %v1033
  %1040 = vst [vmem:[#allocation2 + $0x20] sm:$0xff] %v1034
  %1041 = vst [vmem:[#allocation2 + $0x28] sm:$0xff] %v1035
  %v1042 = vld [vmem:[%s1] sm:$0xff]
  %v1043 = vld [vmem:[%s1 + $0x8] sm:$0xff]
  %v1044 = vld [vmem:[%s1 + $0x10] sm:$0xff]
  %v1045 = vld [vmem:[%s1 + $0x18] sm:$0xff]
  %v1046 = vld [vmem:[%s122] sm:$0xff]
  %v1047 = vld [vmem:[%s122 + $0x8] sm:$0xff]
  %v1048 = vld [vmem:[%s122 + $0x10] sm:$0xff]
  %v1049 = vld [vmem:[%s122 + $0x18] sm:$0xff]
  %v1054 = vunpack.c.l.b16 %v1046
  %v1055 = vunpack.c.h.b16 %v1046
  %v1056 = vunpack.c.l.b16 %v1047
  %v1057 = vunpack.c.h.b16 %v1047
  %v1058 = vunpack.c.l.b16 %v1048
  %v1059 = vunpack.c.h.b16 %v1048
  %v1060 = vunpack.c.l.b16 %v1049
  %v1061 = vunpack.c.h.b16 %v1049
  %v1062 = vpack.c.b16 %v1056, %v1054
  %v1063 = vpack.c.b16 %v1057, %v1055
  %v1064 = vpack.c.b16 %v1060, %v1058
  %v1065 = vpack.c.b16 %v1061, %v1059
  %1070 = vmatprep.subr.bf16.mxu0 0
  %1071 = vmatpush1.bf16.msra.mxu0 0
  %1072 = vmatprep.subr.bf16.mxu0 0
  %1073 = vmatpush1.bf16.msra.mxu0 0
  %1074 = vmatprep.subr.bf16.mxu0 0
  %1075 = vmatpush1.bf16.msra.mxu0 0
  %1076 = vmatprep.subr.bf16.mxu0 0
  %1077 = vmatpush1.bf16.msra.mxu0 0
  %1078 = vmatprep.subr.bf16.mxu0 0
  %1079 = vmatpush1.bf16.msra.mxu0 0
  %1080 = vmatprep.subr.bf16.mxu0 0
  %1081 = vmatpush1.bf16.msra.mxu0 0
  %1082 = vmatprep.subr.bf16.mxu0 %v1065
  %1083 = vmatpush1.bf16.msra.mxu0 %v1064
  %1084 = vmatprep.subr.bf16.mxu0 %v1063
  %1085 = vmatpush1.bf16.msra.mxu0 %v1062
  %1086 = vmatprep.subr.bf16.mxu0 0
  %1087 = vmatpush2.bf16.msra.mxu0 0
  %1088 = vmatprep.subr.bf16.mxu0 0
  %1089 = vmatpush2.bf16.msra.mxu0 0
  %1090 = vmatprep.subr.bf16.mxu0 0
  %1091 = vmatpush2.bf16.msra.mxu0 0
  %1092 = vmatprep.subr.bf16.mxu0 0
  %1093 = vmatpush2.bf16.msra.mxu0 0
  %1094 = vmatprep.subr.bf16.mxu0 0
  %1095 = vmatpush2.bf16.msra.mxu0 0
  %1096 = vmatprep.subr.bf16.mxu0 0
  %1097 = vmatpush2.bf16.msra.mxu0 0
  %1098 = vmatprep.subr.bf16.mxu0 0
  %1099 = vmatpush2.bf16.msra.mxu0 0
  %1100 = vmatprep.subr.bf16.mxu0 0
  %1101 = vmatpush2.bf16.msra.mxu0 0
  %1102 = vmatprep.mubr.bf16.mxu0 0
  %1103 = vmatmul.mubr.bf16.gmra.mxu0 %v447
  %v1104 = vpop.f32.mrf.mxu0
  %v1105 = vadd.f32 0.0, %v1104
  %v1106 = vpop.f32.mrf.mxu0
  %v1107 = vadd.f32 0.0, %v1106
  %v1108 = vpop.f32.mrf.mxu0
  %v1109 = vadd.f32 0.0, %v1108
  %v1110 = vpop.f32.mrf.mxu0
  %v1111 = vadd.f32 0.0, %v1110
  %1112 = vmatprep.mubr.bf16.mxu0 0
  %1113 = vmatmul.mubr.bf16.gmra.mxu0 %v450
  %v1114 = vpop.f32.mrf.mxu0
  %v1115 = vadd.f32 0.0, %v1114
  %v1116 = vpop.f32.mrf.mxu0
  %v1117 = vadd.f32 0.0, %v1116
  %v1118 = vpop.f32.mrf.mxu0
  %v1119 = vadd.f32 0.0, %v1118
  %v1120 = vpop.f32.mrf.mxu0
  %v1121 = vadd.f32 0.0, %v1120
  %1122 = vmatprep.mubr.bf16.mxu0 0
  %1123 = vmatmul.mubr.bf16.gmra.mxu0 %v453
  %v1124 = vpop.f32.mrf.mxu0
  %v1125 = vadd.f32 0.0, %v1124
  %v1126 = vpop.f32.mrf.mxu0
  %v1127 = vadd.f32 0.0, %v1126
  %v1128 = vpop.f32.mrf.mxu0
  %v1129 = vadd.f32 0.0, %v1128
  %v1130 = vpop.f32.mrf.mxu0
  %v1131 = vadd.f32 0.0, %v1130
  %1132 = vdwg.mxu0
  %v1137 = vunpack.c.l.b16 %v1042
  %v1138 = vunpack.c.h.b16 %v1042
  %v1139 = vunpack.c.l.b16 %v1043
  %v1140 = vunpack.c.h.b16 %v1043
  %v1141 = vunpack.c.l.b16 %v1044
  %v1142 = vunpack.c.h.b16 %v1044
  %v1143 = vunpack.c.l.b16 %v1045
  %v1144 = vunpack.c.h.b16 %v1045
  %v1145 = vpack.c.b16 %v1139, %v1137
  %v1146 = vpack.c.b16 %v1140, %v1138
  %v1147 = vpack.c.b16 %v1143, %v1141
  %v1148 = vpack.c.b16 %v1144, %v1142
  %1153 = vmatprep.subr.bf16.mxu0 0
  %1154 = vmatpush1.bf16.msra.mxu0 0
  %1155 = vmatprep.subr.bf16.mxu0 0
  %1156 = vmatpush1.bf16.msra.mxu0 0
  %1157 = vmatprep.subr.bf16.mxu0 0
  %1158 = vmatpush1.bf16.msra.mxu0 0
  %1159 = vmatprep.subr.bf16.mxu0 0
  %1160 = vmatpush1.bf16.msra.mxu0 0
  %1161 = vmatprep.subr.bf16.mxu0 0
  %1162 = vmatpush1.bf16.msra.mxu0 0
  %1163 = vmatprep.subr.bf16.mxu0 0
  %1164 = vmatpush1.bf16.msra.mxu0 0
  %1165 = vmatprep.subr.bf16.mxu0 %v1148
  %1166 = vmatpush1.bf16.msra.mxu0 %v1147
  %1167 = vmatprep.subr.bf16.mxu0 %v1146
  %1168 = vmatpush1.bf16.msra.mxu0 %v1145
  %1169 = vmatprep.subr.bf16.mxu0 0
  %1170 = vmatpush2.bf16.msra.mxu0 0
  %1171 = vmatprep.subr.bf16.mxu0 0
  %1172 = vmatpush2.bf16.msra.mxu0 0
  %1173 = vmatprep.subr.bf16.mxu0 0
  %1174 = vmatpush2.bf16.msra.mxu0 0
  %1175 = vmatprep.subr.bf16.mxu0 0
  %1176 = vmatpush2.bf16.msra.mxu0 0
  %1177 = vmatprep.subr.bf16.mxu0 0
  %1178 = vmatpush2.bf16.msra.mxu0 0
  %1179 = vmatprep.subr.bf16.mxu0 0
  %1180 = vmatpush2.bf16.msra.mxu0 0
  %1181 = vmatprep.subr.bf16.mxu0 0
  %1182 = vmatpush2.bf16.msra.mxu0 0
  %1183 = vmatprep.subr.bf16.mxu0 0
  %1184 = vmatpush2.bf16.msra.mxu0 0
  %1185 = vmatprep.mubr.bf16.mxu0 0
  %1186 = vmatmul.mubr.bf16.gmra.mxu0 %v338
  %v1187 = vpop.f32.mrf.mxu0
  %v1188 = vadd.f32 %v1105, %v1187
  %v1189 = vpop.f32.mrf.mxu0
  %v1190 = vadd.f32 %v1107, %v1189
  %v1191 = vpop.f32.mrf.mxu0
  %v1192 = vadd.f32 %v1109, %v1191
  %v1193 = vpop.f32.mrf.mxu0
  %v1194 = vadd.f32 %v1111, %v1193
  %1195 = vmatprep.mubr.bf16.mxu0 0
  %1196 = vmatmul.mubr.bf16.gmra.mxu0 %v341
  %v1197 = vpop.f32.mrf.mxu0
  %v1198 = vadd.f32 %v1115, %v1197
  %v1199 = vpop.f32.mrf.mxu0
  %v1200 = vadd.f32 %v1117, %v1199
  %v1201 = vpop.f32.mrf.mxu0
  %v1202 = vadd.f32 %v1119, %v1201
  %v1203 = vpop.f32.mrf.mxu0
  %v1204 = vadd.f32 %v1121, %v1203
  %1205 = vmatprep.mubr.bf16.mxu0 0
  %1206 = vmatmul.mubr.bf16.gmra.mxu0 %v344
  %v1207 = vpop.f32.mrf.mxu0
  %v1208 = vadd.f32 %v1125, %v1207
  %v1209 = vpop.f32.mrf.mxu0
  %v1210 = vadd.f32 %v1127, %v1209
  %v1211 = vpop.f32.mrf.mxu0
  %v1212 = vadd.f32 %v1129, %v1211
  %v1213 = vpop.f32.mrf.mxu0
  %v1214 = vadd.f32 %v1131, %v1213
  %1215 = vdwg.mxu0
  %v1216 = vld [vmem:[%s312] sm:$0xff]
  %v1217 = vld [vmem:[%s312 + $0x8] sm:$0xff]
  %v1218 = vld [vmem:[%s312 + $0x10] sm:$0xff]
  %v1219 = vld [vmem:[%s312 + $0x18] sm:$0xff]
  %v1224 = vunpack.c.l.b16 %v1216
  %v1225 = vunpack.c.h.b16 %v1216
  %v1226 = vunpack.c.l.b16 %v1217
  %v1227 = vunpack.c.h.b16 %v1217
  %v1228 = vunpack.c.l.b16 %v1218
  %v1229 = vunpack.c.h.b16 %v1218
  %v1230 = vunpack.c.l.b16 %v1219
  %v1231 = vunpack.c.h.b16 %v1219
  %v1232 = vpack.c.b16 %v1226, %v1224
  %v1233 = vpack.c.b16 %v1227, %v1225
  %v1234 = vpack.c.b16 %v1230, %v1228
  %v1235 = vpack.c.b16 %v1231, %v1229
  %1240 = vmatprep.subr.bf16.mxu0 0
  %1241 = vmatpush1.bf16.msra.mxu0 0
  %1242 = vmatprep.subr.bf16.mxu0 0
  %1243 = vmatpush1.bf16.msra.mxu0 0
  %1244 = vmatprep.subr.bf16.mxu0 0
  %1245 = vmatpush1.bf16.msra.mxu0 0
  %1246 = vmatprep.subr.bf16.mxu0 0
  %1247 = vmatpush1.bf16.msra.mxu0 0
  %1248 = vmatprep.subr.bf16.mxu0 0
  %1249 = vmatpush1.bf16.msra.mxu0 0
  %1250 = vmatprep.subr.bf16.mxu0 0
  %1251 = vmatpush1.bf16.msra.mxu0 0
  %1252 = vmatprep.subr.bf16.mxu0 %v1235
  %1253 = vmatpush1.bf16.msra.mxu0 %v1234
  %1254 = vmatprep.subr.bf16.mxu0 %v1233
  %1255 = vmatpush1.bf16.msra.mxu0 %v1232
  %1256 = vmatprep.subr.bf16.mxu0 0
  %1257 = vmatpush2.bf16.msra.mxu0 0
  %1258 = vmatprep.subr.bf16.mxu0 0
  %1259 = vmatpush2.bf16.msra.mxu0 0
  %1260 = vmatprep.subr.bf16.mxu0 0
  %1261 = vmatpush2.bf16.msra.mxu0 0
  %1262 = vmatprep.subr.bf16.mxu0 0
  %1263 = vmatpush2.bf16.msra.mxu0 0
  %1264 = vmatprep.subr.bf16.mxu0 0
  %1265 = vmatpush2.bf16.msra.mxu0 0
  %1266 = vmatprep.subr.bf16.mxu0 0
  %1267 = vmatpush2.bf16.msra.mxu0 0
  %1268 = vmatprep.subr.bf16.mxu0 0
  %1269 = vmatpush2.bf16.msra.mxu0 0
  %1270 = vmatprep.subr.bf16.mxu0 0
  %1271 = vmatpush2.bf16.msra.mxu0 0
  %1272 = vmatprep.mubr.bf16.mxu0 0
  %1273 = vmatmul.mubr.bf16.gmra.mxu0 %v556
  %v1274 = vpop.f32.mrf.mxu0
  %v1275 = vadd.f32 0.0, %v1274
  %v1276 = vpop.f32.mrf.mxu0
  %v1277 = vadd.f32 0.0, %v1276
  %v1278 = vpop.f32.mrf.mxu0
  %v1279 = vadd.f32 0.0, %v1278
  %v1280 = vpop.f32.mrf.mxu0
  %v1281 = vadd.f32 0.0, %v1280
  %1282 = vmatprep.mubr.bf16.mxu0 0
  %1283 = vmatmul.mubr.bf16.gmra.mxu0 %v559
  %v1284 = vpop.f32.mrf.mxu0
  %v1285 = vadd.f32 0.0, %v1284
  %v1286 = vpop.f32.mrf.mxu0
  %v1287 = vadd.f32 0.0, %v1286
  %v1288 = vpop.f32.mrf.mxu0
  %v1289 = vadd.f32 0.0, %v1288
  %v1290 = vpop.f32.mrf.mxu0
  %v1291 = vadd.f32 0.0, %v1290
  %1292 = vmatprep.mubr.bf16.mxu0 0
  %1293 = vmatmul.mubr.bf16.gmra.mxu0 %v562
  %v1294 = vpop.f32.mrf.mxu0
  %v1295 = vadd.f32 0.0, %v1294
  %v1296 = vpop.f32.mrf.mxu0
  %v1297 = vadd.f32 0.0, %v1296
  %v1298 = vpop.f32.mrf.mxu0
  %v1299 = vadd.f32 0.0, %v1298
  %v1300 = vpop.f32.mrf.mxu0
  %v1301 = vadd.f32 0.0, %v1300
  %1302 = vdwg.mxu0
  %v1303 = vadd.f32 %v1188, %v1275
  %v1304 = vadd.f32 %v1190, %v1277
  %v1305 = vadd.f32 %v1192, %v1279
  %v1306 = vadd.f32 %v1194, %v1281
  %v1307 = vadd.f32 %v1198, %v1285
  %v1308 = vadd.f32 %v1200, %v1287
  %v1309 = vadd.f32 %v1202, %v1289
  %v1310 = vadd.f32 %v1204, %v1291
  %v1311 = vadd.f32 %v1208, %v1295
  %v1312 = vadd.f32 %v1210, %v1297
  %v1313 = vadd.f32 %v1212, %v1299
  %v1314 = vadd.f32 %v1214, %v1301
  %v1315 = vld [vmem:[%s421] sm:$0xff]
  %v1316 = vld [vmem:[%s421 + $0x8] sm:$0xff]
  %v1317 = vld [vmem:[%s421 + $0x10] sm:$0xff]
  %v1318 = vld [vmem:[%s421 + $0x18] sm:$0xff]
  %v1323 = vunpack.c.l.b16 %v1315
  %v1324 = vunpack.c.h.b16 %v1315
  %v1325 = vunpack.c.l.b16 %v1316
  %v1326 = vunpack.c.h.b16 %v1316
  %v1327 = vunpack.c.l.b16 %v1317
  %v1328 = vunpack.c.h.b16 %v1317
  %v1329 = vunpack.c.l.b16 %v1318
  %v1330 = vunpack.c.h.b16 %v1318
  %v1331 = vpack.c.b16 %v1325, %v1323
  %v1332 = vpack.c.b16 %v1326, %v1324
  %v1333 = vpack.c.b16 %v1329, %v1327
  %v1334 = vpack.c.b16 %v1330, %v1328
  %1339 = vmatprep.subr.bf16.mxu0 0
  %1340 = vmatpush1.bf16.msra.mxu0 0
  %1341 = vmatprep.subr.bf16.mxu0 0
  %1342 = vmatpush1.bf16.msra.mxu0 0
  %1343 = vmatprep.subr.bf16.mxu0 0
  %1344 = vmatpush1.bf16.msra.mxu0 0
  %1345 = vmatprep.subr.bf16.mxu0 0
  %1346 = vmatpush1.bf16.msra.mxu0 0
  %1347 = vmatprep.subr.bf16.mxu0 0
  %1348 = vmatpush1.bf16.msra.mxu0 0
  %1349 = vmatprep.subr.bf16.mxu0 0
  %1350 = vmatpush1.bf16.msra.mxu0 0
  %1351 = vmatprep.subr.bf16.mxu0 %v1334
  %1352 = vmatpush1.bf16.msra.mxu0 %v1333
  %1353 = vmatprep.subr.bf16.mxu0 %v1332
  %1354 = vmatpush1.bf16.msra.mxu0 %v1331
  %1355 = vmatprep.subr.bf16.mxu0 0
  %1356 = vmatpush2.bf16.msra.mxu0 0
  %1357 = vmatprep.subr.bf16.mxu0 0
  %1358 = vmatpush2.bf16.msra.mxu0 0
  %1359 = vmatprep.subr.bf16.mxu0 0
  %1360 = vmatpush2.bf16.msra.mxu0 0
  %1361 = vmatprep.subr.bf16.mxu0 0
  %1362 = vmatpush2.bf16.msra.mxu0 0
  %1363 = vmatprep.subr.bf16.mxu0 0
  %1364 = vmatpush2.bf16.msra.mxu0 0
  %1365 = vmatprep.subr.bf16.mxu0 0
  %1366 = vmatpush2.bf16.msra.mxu0 0
  %1367 = vmatprep.subr.bf16.mxu0 0
  %1368 = vmatpush2.bf16.msra.mxu0 0
  %1369 = vmatprep.subr.bf16.mxu0 0
  %1370 = vmatpush2.bf16.msra.mxu0 0
  %1371 = vmatprep.mubr.bf16.mxu0 0
  %1372 = vmatmul.mubr.bf16.gmra.mxu0 %v916
  %v1373 = vpop.f32.mrf.mxu0
  %v1374 = vadd.f32 0.0, %v1373
  %v1375 = vpop.f32.mrf.mxu0
  %v1376 = vadd.f32 0.0, %v1375
  %v1377 = vpop.f32.mrf.mxu0
  %v1378 = vadd.f32 0.0, %v1377
  %v1379 = vpop.f32.mrf.mxu0
  %v1380 = vadd.f32 0.0, %v1379
  %1381 = vmatprep.mubr.bf16.mxu0 0
  %1382 = vmatmul.mubr.bf16.gmra.mxu0 %v919
  %v1383 = vpop.f32.mrf.mxu0
  %v1384 = vadd.f32 0.0, %v1383
  %v1385 = vpop.f32.mrf.mxu0
  %v1386 = vadd.f32 0.0, %v1385
  %v1387 = vpop.f32.mrf.mxu0
  %v1388 = vadd.f32 0.0, %v1387
  %v1389 = vpop.f32.mrf.mxu0
  %v1390 = vadd.f32 0.0, %v1389
  %1391 = vmatprep.mubr.bf16.mxu0 0
  %1392 = vmatmul.mubr.bf16.gmra.mxu0 %v922
  %v1393 = vpop.f32.mrf.mxu0
  %v1394 = vadd.f32 0.0, %v1393
  %v1395 = vpop.f32.mrf.mxu0
  %v1396 = vadd.f32 0.0, %v1395
  %v1397 = vpop.f32.mrf.mxu0
  %v1398 = vadd.f32 0.0, %v1397
  %v1399 = vpop.f32.mrf.mxu0
  %v1400 = vadd.f32 0.0, %v1399
  %1401 = vdwg.mxu0
  %v1402 = vadd.f32 %v1303, %v1374
  %v1403 = vadd.f32 %v1304, %v1376
  %v1404 = vadd.f32 %v1305, %v1378
  %v1405 = vadd.f32 %v1306, %v1380
  %v1406 = vadd.f32 %v1307, %v1384
  %v1407 = vadd.f32 %v1308, %v1386
  %v1408 = vadd.f32 %v1309, %v1388
  %v1409 = vadd.f32 %v1310, %v1390
  %v1410 = vadd.f32 %v1311, %v1394
  %v1411 = vadd.f32 %v1312, %v1396
  %v1412 = vadd.f32 %v1313, %v1398
  %v1413 = vadd.f32 %v1314, %v1400
  %v1414 = vld [vmem:[%s530] sm:$0xff]
  %v1415 = vld [vmem:[%s530 + $0x8] sm:$0xff]
  %v1416 = vld [vmem:[%s530 + $0x10] sm:$0xff]
  %v1417 = vld [vmem:[%s530 + $0x18] sm:$0xff]
  %v1422 = vunpack.c.l.b16 %v1414
  %v1423 = vunpack.c.h.b16 %v1414
  %v1424 = vunpack.c.l.b16 %v1415
  %v1425 = vunpack.c.h.b16 %v1415
  %v1426 = vunpack.c.l.b16 %v1416
  %v1427 = vunpack.c.h.b16 %v1416
  %v1428 = vunpack.c.l.b16 %v1417
  %v1429 = vunpack.c.h.b16 %v1417
  %v1430 = vpack.c.b16 %v1424, %v1422
  %v1431 = vpack.c.b16 %v1425, %v1423
  %v1432 = vpack.c.b16 %v1428, %v1426
  %v1433 = vpack.c.b16 %v1429, %v1427
  %v1439 = vsel %vm147, %v105, 0
  %v1442 = vsel %vm147, %v106, 0
  %v1445 = vsel %vm147, %v107, 0
  %1447 = vmatprep.subr.bf16.mxu0 0
  %1448 = vmatpush1.bf16.msra.mxu0 0
  %1449 = vmatprep.subr.bf16.mxu0 0
  %1450 = vmatpush1.bf16.msra.mxu0 0
  %1451 = vmatprep.subr.bf16.mxu0 0
  %1452 = vmatpush1.bf16.msra.mxu0 0
  %1453 = vmatprep.subr.bf16.mxu0 0
  %1454 = vmatpush1.bf16.msra.mxu0 0
  %1455 = vmatprep.subr.bf16.mxu0 0
  %1456 = vmatpush1.bf16.msra.mxu0 0
  %1457 = vmatprep.subr.bf16.mxu0 0
  %1458 = vmatpush1.bf16.msra.mxu0 0
  %1459 = vmatprep.subr.bf16.mxu0 %v1433
  %1460 = vmatpush1.bf16.msra.mxu0 %v1432
  %1461 = vmatprep.subr.bf16.mxu0 %v1431
  %1462 = vmatpush1.bf16.msra.mxu0 %v1430
  %1463 = vmatprep.subr.bf16.mxu0 0
  %1464 = vmatpush2.bf16.msra.mxu0 0
  %1465 = vmatprep.subr.bf16.mxu0 0
  %1466 = vmatpush2.bf16.msra.mxu0 0
  %1467 = vmatprep.subr.bf16.mxu0 0
  %1468 = vmatpush2.bf16.msra.mxu0 0
  %1469 = vmatprep.subr.bf16.mxu0 0
  %1470 = vmatpush2.bf16.msra.mxu0 0
  %1471 = vmatprep.subr.bf16.mxu0 0
  %1472 = vmatpush2.bf16.msra.mxu0 0
  %1473 = vmatprep.subr.bf16.mxu0 0
  %1474 = vmatpush2.bf16.msra.mxu0 0
  %1475 = vmatprep.subr.bf16.mxu0 0
  %1476 = vmatpush2.bf16.msra.mxu0 0
  %1477 = vmatprep.subr.bf16.mxu0 0
  %1478 = vmatpush2.bf16.msra.mxu0 0
  %1479 = vmatprep.mubr.bf16.mxu0 0
  %1480 = vmatmul.mubr.bf16.gmra.mxu0 %v1439
  %v1481 = vpop.f32.mrf.mxu0
  %v1482 = vadd.f32 0.0, %v1481
  %v1483 = vpop.f32.mrf.mxu0
  %v1484 = vadd.f32 0.0, %v1483
  %v1485 = vpop.f32.mrf.mxu0
  %v1486 = vadd.f32 0.0, %v1485
  %v1487 = vpop.f32.mrf.mxu0
  %v1488 = vadd.f32 0.0, %v1487
  %1489 = vmatprep.mubr.bf16.mxu0 0
  %1490 = vmatmul.mubr.bf16.gmra.mxu0 %v1442
  %v1491 = vpop.f32.mrf.mxu0
  %v1492 = vadd.f32 0.0, %v1491
  %v1493 = vpop.f32.mrf.mxu0
  %v1494 = vadd.f32 0.0, %v1493
  %v1495 = vpop.f32.mrf.mxu0
  %v1496 = vadd.f32 0.0, %v1495
  %v1497 = vpop.f32.mrf.mxu0
  %v1498 = vadd.f32 0.0, %v1497
  %1499 = vmatprep.mubr.bf16.mxu0 0
  %1500 = vmatmul.mubr.bf16.gmra.mxu0 %v1445
  %v1501 = vpop.f32.mrf.mxu0
  %v1502 = vadd.f32 0.0, %v1501
  %v1503 = vpop.f32.mrf.mxu0
  %v1504 = vadd.f32 0.0, %v1503
  %v1505 = vpop.f32.mrf.mxu0
  %v1506 = vadd.f32 0.0, %v1505
  %v1507 = vpop.f32.mrf.mxu0
  %v1508 = vadd.f32 0.0, %v1507
  %1509 = vdwg.mxu0
  %v1510 = vadd.f32 %v1402, %v1482
  %v1511 = vadd.f32 %v1403, %v1484
  %v1512 = vadd.f32 %v1404, %v1486
  %v1513 = vadd.f32 %v1405, %v1488
  %v1514 = vadd.f32 %v1406, %v1492
  %v1515 = vadd.f32 %v1407, %v1494
  %v1516 = vadd.f32 %v1408, %v1496
  %v1517 = vadd.f32 %v1409, %v1498
  %v1518 = vadd.f32 %v1410, %v1502
  %v1519 = vadd.f32 %v1411, %v1504
  %v1520 = vadd.f32 %v1412, %v1506
  %v1521 = vadd.f32 %v1413, %v1508
  %1522 = vmatprep.subr.bf16.mxu0 0
  %1523 = vmatpush1.bf16.msra.mxu0 0
  %1524 = vmatprep.subr.bf16.mxu0 0
  %1525 = vmatpush1.bf16.msra.mxu0 0
  %1526 = vmatprep.subr.bf16.mxu0 0
  %1527 = vmatpush1.bf16.msra.mxu0 0
  %1528 = vmatprep.subr.bf16.mxu0 0
  %1529 = vmatpush1.bf16.msra.mxu0 0
  %1530 = vmatprep.subr.bf16.mxu0 0
  %1531 = vmatpush1.bf16.msra.mxu0 0
  %1532 = vmatprep.subr.bf16.mxu0 0
  %1533 = vmatpush1.bf16.msra.mxu0 0
  %1534 = vmatprep.subr.bf16.mxu0 %v1065
  %1535 = vmatpush1.bf16.msra.mxu0 %v1064
  %1536 = vmatprep.subr.bf16.mxu0 %v1063
  %1537 = vmatpush1.bf16.msra.mxu0 %v1062
  %1538 = vmatprep.subr.bf16.mxu0 0
  %1539 = vmatpush2.bf16.msra.mxu0 0
  %1540 = vmatprep.subr.bf16.mxu0 0
  %1541 = vmatpush2.bf16.msra.mxu0 0
  %1542 = vmatprep.subr.bf16.mxu0 0
  %1543 = vmatpush2.bf16.msra.mxu0 0
  %1544 = vmatprep.subr.bf16.mxu0 0
  %1545 = vmatpush2.bf16.msra.mxu0 0
  %1546 = vmatprep.subr.bf16.mxu0 0
  %1547 = vmatpush2.bf16.msra.mxu0 0
  %1548 = vmatprep.subr.bf16.mxu0 0
  %1549 = vmatpush2.bf16.msra.mxu0 0
  %1550 = vmatprep.subr.bf16.mxu0 0
  %1551 = vmatpush2.bf16.msra.mxu0 0
  %1552 = vmatprep.subr.bf16.mxu0 0
  %1553 = vmatpush2.bf16.msra.mxu0 0
  %1554 = vmatprep.mubr.bf16.mxu0 0
  %1555 = vmatmul.mubr.bf16.gmra.mxu0 %v556
  %v1556 = vpop.f32.mrf.mxu0
  %v1557 = vadd.f32 0.0, %v1556
  %v1558 = vpop.f32.mrf.mxu0
  %v1559 = vadd.f32 0.0, %v1558
  %v1560 = vpop.f32.mrf.mxu0
  %v1561 = vadd.f32 0.0, %v1560
  %v1562 = vpop.f32.mrf.mxu0
  %v1563 = vadd.f32 0.0, %v1562
  %1564 = vmatprep.mubr.bf16.mxu0 0
  %1565 = vmatmul.mubr.bf16.gmra.mxu0 %v559
  %v1566 = vpop.f32.mrf.mxu0
  %v1567 = vadd.f32 0.0, %v1566
  %v1568 = vpop.f32.mrf.mxu0
  %v1569 = vadd.f32 0.0, %v1568
  %v1570 = vpop.f32.mrf.mxu0
  %v1571 = vadd.f32 0.0, %v1570
  %v1572 = vpop.f32.mrf.mxu0
  %v1573 = vadd.f32 0.0, %v1572
  %1574 = vmatprep.mubr.bf16.mxu0 0
  %1575 = vmatmul.mubr.bf16.gmra.mxu0 %v562
  %v1576 = vpop.f32.mrf.mxu0
  %v1577 = vadd.f32 0.0, %v1576
  %v1578 = vpop.f32.mrf.mxu0
  %v1579 = vadd.f32 0.0, %v1578
  %v1580 = vpop.f32.mrf.mxu0
  %v1581 = vadd.f32 0.0, %v1580
  %v1582 = vpop.f32.mrf.mxu0
  %v1583 = vadd.f32 0.0, %v1582
  %1584 = vdwg.mxu0
  %1585 = vmatprep.subr.bf16.mxu0 0
  %1586 = vmatpush1.bf16.msra.mxu0 0
  %1587 = vmatprep.subr.bf16.mxu0 0
  %1588 = vmatpush1.bf16.msra.mxu0 0
  %1589 = vmatprep.subr.bf16.mxu0 0
  %1590 = vmatpush1.bf16.msra.mxu0 0
  %1591 = vmatprep.subr.bf16.mxu0 0
  %1592 = vmatpush1.bf16.msra.mxu0 0
  %1593 = vmatprep.subr.bf16.mxu0 0
  %1594 = vmatpush1.bf16.msra.mxu0 0
  %1595 = vmatprep.subr.bf16.mxu0 0
  %1596 = vmatpush1.bf16.msra.mxu0 0
  %1597 = vmatprep.subr.bf16.mxu0 %v1148
  %1598 = vmatpush1.bf16.msra.mxu0 %v1147
  %1599 = vmatprep.subr.bf16.mxu0 %v1146
  %1600 = vmatpush1.bf16.msra.mxu0 %v1145
  %1601 = vmatprep.subr.bf16.mxu0 0
  %1602 = vmatpush2.bf16.msra.mxu0 0
  %1603 = vmatprep.subr.bf16.mxu0 0
  %1604 = vmatpush2.bf16.msra.mxu0 0
  %1605 = vmatprep.subr.bf16.mxu0 0
  %1606 = vmatpush2.bf16.msra.mxu0 0
  %1607 = vmatprep.subr.bf16.mxu0 0
  %1608 = vmatpush2.bf16.msra.mxu0 0
  %1609 = vmatprep.subr.bf16.mxu0 0
  %1610 = vmatpush2.bf16.msra.mxu0 0
  %1611 = vmatprep.subr.bf16.mxu0 0
  %1612 = vmatpush2.bf16.msra.mxu0 0
  %1613 = vmatprep.subr.bf16.mxu0 0
  %1614 = vmatpush2.bf16.msra.mxu0 0
  %1615 = vmatprep.subr.bf16.mxu0 0
  %1616 = vmatpush2.bf16.msra.mxu0 0
  %1617 = vmatprep.mubr.bf16.mxu0 0
  %1618 = vmatmul.mubr.bf16.gmra.mxu0 %v447
  %v1619 = vpop.f32.mrf.mxu0
  %v1620 = vadd.f32 %v1557, %v1619
  %v1621 = vpop.f32.mrf.mxu0
  %v1622 = vadd.f32 %v1559, %v1621
  %v1623 = vpop.f32.mrf.mxu0
  %v1624 = vadd.f32 %v1561, %v1623
  %v1625 = vpop.f32.mrf.mxu0
  %v1626 = vadd.f32 %v1563, %v1625
  %1627 = vmatprep.mubr.bf16.mxu0 0
  %1628 = vmatmul.mubr.bf16.gmra.mxu0 %v450
  %v1629 = vpop.f32.mrf.mxu0
  %v1630 = vadd.f32 %v1567, %v1629
  %v1631 = vpop.f32.mrf.mxu0
  %v1632 = vadd.f32 %v1569, %v1631
  %v1633 = vpop.f32.mrf.mxu0
  %v1634 = vadd.f32 %v1571, %v1633
  %v1635 = vpop.f32.mrf.mxu0
  %v1636 = vadd.f32 %v1573, %v1635
  %1637 = vmatprep.mubr.bf16.mxu0 0
  %1638 = vmatmul.mubr.bf16.gmra.mxu0 %v453
  %v1639 = vpop.f32.mrf.mxu0
  %v1640 = vadd.f32 %v1577, %v1639
  %v1641 = vpop.f32.mrf.mxu0
  %v1642 = vadd.f32 %v1579, %v1641
  %v1643 = vpop.f32.mrf.mxu0
  %v1644 = vadd.f32 %v1581, %v1643
  %v1645 = vpop.f32.mrf.mxu0
  %v1646 = vadd.f32 %v1583, %v1645
  %1647 = vdwg.mxu0
  %1648 = vmatprep.subr.bf16.mxu0 0
  %1649 = vmatpush1.bf16.msra.mxu0 0
  %1650 = vmatprep.subr.bf16.mxu0 0
  %1651 = vmatpush1.bf16.msra.mxu0 0
  %1652 = vmatprep.subr.bf16.mxu0 0
  %1653 = vmatpush1.bf16.msra.mxu0 0
  %1654 = vmatprep.subr.bf16.mxu0 0
  %1655 = vmatpush1.bf16.msra.mxu0 0
  %1656 = vmatprep.subr.bf16.mxu0 0
  %1657 = vmatpush1.bf16.msra.mxu0 0
  %1658 = vmatprep.subr.bf16.mxu0 0
  %1659 = vmatpush1.bf16.msra.mxu0 0
  %1660 = vmatprep.subr.bf16.mxu0 %v1235
  %1661 = vmatpush1.bf16.msra.mxu0 %v1234
  %1662 = vmatprep.subr.bf16.mxu0 %v1233
  %1663 = vmatpush1.bf16.msra.mxu0 %v1232
  %1664 = vmatprep.subr.bf16.mxu0 0
  %1665 = vmatpush2.bf16.msra.mxu0 0
  %1666 = vmatprep.subr.bf16.mxu0 0
  %1667 = vmatpush2.bf16.msra.mxu0 0
  %1668 = vmatprep.subr.bf16.mxu0 0
  %1669 = vmatpush2.bf16.msra.mxu0 0
  %1670 = vmatprep.subr.bf16.mxu0 0
  %1671 = vmatpush2.bf16.msra.mxu0 0
  %1672 = vmatprep.subr.bf16.mxu0 0
  %1673 = vmatpush2.bf16.msra.mxu0 0
  %1674 = vmatprep.subr.bf16.mxu0 0
  %1675 = vmatpush2.bf16.msra.mxu0 0
  %1676 = vmatprep.subr.bf16.mxu0 0
  %1677 = vmatpush2.bf16.msra.mxu0 0
  %1678 = vmatprep.subr.bf16.mxu0 0
  %1679 = vmatpush2.bf16.msra.mxu0 0
  %1680 = vmatprep.mubr.bf16.mxu0 0
  %1681 = vmatmul.mubr.bf16.gmra.mxu0 %v916
  %v1682 = vpop.f32.mrf.mxu0
  %v1683 = vadd.f32 0.0, %v1682
  %v1684 = vpop.f32.mrf.mxu0
  %v1685 = vadd.f32 0.0, %v1684
  %v1686 = vpop.f32.mrf.mxu0
  %v1687 = vadd.f32 0.0, %v1686
  %v1688 = vpop.f32.mrf.mxu0
  %v1689 = vadd.f32 0.0, %v1688
  %1690 = vmatprep.mubr.bf16.mxu0 0
  %1691 = vmatmul.mubr.bf16.gmra.mxu0 %v919
  %v1692 = vpop.f32.mrf.mxu0
  %v1693 = vadd.f32 0.0, %v1692
  %v1694 = vpop.f32.mrf.mxu0
  %v1695 = vadd.f32 0.0, %v1694
  %v1696 = vpop.f32.mrf.mxu0
  %v1697 = vadd.f32 0.0, %v1696
  %v1698 = vpop.f32.mrf.mxu0
  %v1699 = vadd.f32 0.0, %v1698
  %1700 = vmatprep.mubr.bf16.mxu0 0
  %1701 = vmatmul.mubr.bf16.gmra.mxu0 %v922
  %v1702 = vpop.f32.mrf.mxu0
  %v1703 = vadd.f32 0.0, %v1702
  %v1704 = vpop.f32.mrf.mxu0
  %v1705 = vadd.f32 0.0, %v1704
  %v1706 = vpop.f32.mrf.mxu0
  %v1707 = vadd.f32 0.0, %v1706
  %v1708 = vpop.f32.mrf.mxu0
  %v1709 = vadd.f32 0.0, %v1708
  %1710 = vdwg.mxu0
  %v1711 = vadd.f32 %v1620, %v1683
  %v1712 = vadd.f32 %v1622, %v1685
  %v1713 = vadd.f32 %v1624, %v1687
  %v1714 = vadd.f32 %v1626, %v1689
  %v1715 = vadd.f32 %v1630, %v1693
  %v1716 = vadd.f32 %v1632, %v1695
  %v1717 = vadd.f32 %v1634, %v1697
  %v1718 = vadd.f32 %v1636, %v1699
  %v1719 = vadd.f32 %v1640, %v1703
  %v1720 = vadd.f32 %v1642, %v1705
  %v1721 = vadd.f32 %v1644, %v1707
  %v1722 = vadd.f32 %v1646, %v1709
  %1723 = vmatprep.subr.bf16.mxu0 0
  %1724 = vmatpush1.bf16.msra.mxu0 0
  %1725 = vmatprep.subr.bf16.mxu0 0
  %1726 = vmatpush1.bf16.msra.mxu0 0
  %1727 = vmatprep.subr.bf16.mxu0 0
  %1728 = vmatpush1.bf16.msra.mxu0 0
  %1729 = vmatprep.subr.bf16.mxu0 0
  %1730 = vmatpush1.bf16.msra.mxu0 0
  %1731 = vmatprep.subr.bf16.mxu0 0
  %1732 = vmatpush1.bf16.msra.mxu0 0
  %1733 = vmatprep.subr.bf16.mxu0 0
  %1734 = vmatpush1.bf16.msra.mxu0 0
  %1735 = vmatprep.subr.bf16.mxu0 %v1334
  %1736 = vmatpush1.bf16.msra.mxu0 %v1333
  %1737 = vmatprep.subr.bf16.mxu0 %v1332
  %1738 = vmatpush1.bf16.msra.mxu0 %v1331
  %1739 = vmatprep.subr.bf16.mxu0 0
  %1740 = vmatpush2.bf16.msra.mxu0 0
  %1741 = vmatprep.subr.bf16.mxu0 0
  %1742 = vmatpush2.bf16.msra.mxu0 0
  %1743 = vmatprep.subr.bf16.mxu0 0
  %1744 = vmatpush2.bf16.msra.mxu0 0
  %1745 = vmatprep.subr.bf16.mxu0 0
  %1746 = vmatpush2.bf16.msra.mxu0 0
  %1747 = vmatprep.subr.bf16.mxu0 0
  %1748 = vmatpush2.bf16.msra.mxu0 0
  %1749 = vmatprep.subr.bf16.mxu0 0
  %1750 = vmatpush2.bf16.msra.mxu0 0
  %1751 = vmatprep.subr.bf16.mxu0 0
  %1752 = vmatpush2.bf16.msra.mxu0 0
  %1753 = vmatprep.subr.bf16.mxu0 0
  %1754 = vmatpush2.bf16.msra.mxu0 0
  %1755 = vmatprep.mubr.bf16.mxu0 0
  %1756 = vmatmul.mubr.bf16.gmra.mxu0 %v1439
  %v1757 = vpop.f32.mrf.mxu0
  %v1758 = vadd.f32 0.0, %v1757
  %v1759 = vpop.f32.mrf.mxu0
  %v1760 = vadd.f32 0.0, %v1759
  %v1761 = vpop.f32.mrf.mxu0
  %v1762 = vadd.f32 0.0, %v1761
  %v1763 = vpop.f32.mrf.mxu0
  %v1764 = vadd.f32 0.0, %v1763
  %1765 = vmatprep.mubr.bf16.mxu0 0
  %1766 = vmatmul.mubr.bf16.gmra.mxu0 %v1442
  %v1767 = vpop.f32.mrf.mxu0
  %v1768 = vadd.f32 0.0, %v1767
  %v1769 = vpop.f32.mrf.mxu0
  %v1770 = vadd.f32 0.0, %v1769
  %v1771 = vpop.f32.mrf.mxu0
  %v1772 = vadd.f32 0.0, %v1771
  %v1773 = vpop.f32.mrf.mxu0
  %v1774 = vadd.f32 0.0, %v1773
  %1775 = vmatprep.mubr.bf16.mxu0 0
  %1776 = vmatmul.mubr.bf16.gmra.mxu0 %v1445
  %v1777 = vpop.f32.mrf.mxu0
  %v1778 = vadd.f32 0.0, %v1777
  %v1779 = vpop.f32.mrf.mxu0
  %v1780 = vadd.f32 0.0, %v1779
  %v1781 = vpop.f32.mrf.mxu0
  %v1782 = vadd.f32 0.0, %v1781
  %v1783 = vpop.f32.mrf.mxu0
  %v1784 = vadd.f32 0.0, %v1783
  %1785 = vdwg.mxu0
  %v1786 = vadd.f32 %v1711, %v1758
  %v1787 = vadd.f32 %v1712, %v1760
  %v1788 = vadd.f32 %v1713, %v1762
  %v1789 = vadd.f32 %v1714, %v1764
  %v1790 = vadd.f32 %v1715, %v1768
  %v1791 = vadd.f32 %v1716, %v1770
  %v1792 = vadd.f32 %v1717, %v1772
  %v1793 = vadd.f32 %v1718, %v1774
  %v1794 = vadd.f32 %v1719, %v1778
  %v1795 = vadd.f32 %v1720, %v1780
  %v1796 = vadd.f32 %v1721, %v1782
  %v1797 = vadd.f32 %v1722, %v1784
  %v1799 = vsel %vm147, %v115, 0
  %v1802 = vsel %vm147, %v116, 0
  %v1805 = vsel %vm147, %v117, 0
  %1807 = vmatprep.subr.bf16.mxu0 0
  %1808 = vmatpush1.bf16.msra.mxu0 0
  %1809 = vmatprep.subr.bf16.mxu0 0
  %1810 = vmatpush1.bf16.msra.mxu0 0
  %1811 = vmatprep.subr.bf16.mxu0 0
  %1812 = vmatpush1.bf16.msra.mxu0 0
  %1813 = vmatprep.subr.bf16.mxu0 0
  %1814 = vmatpush1.bf16.msra.mxu0 0
  %1815 = vmatprep.subr.bf16.mxu0 0
  %1816 = vmatpush1.bf16.msra.mxu0 0
  %1817 = vmatprep.subr.bf16.mxu0 0
  %1818 = vmatpush1.bf16.msra.mxu0 0
  %1819 = vmatprep.subr.bf16.mxu0 %v1433
  %1820 = vmatpush1.bf16.msra.mxu0 %v1432
  %1821 = vmatprep.subr.bf16.mxu0 %v1431
  %1822 = vmatpush1.bf16.msra.mxu0 %v1430
  %1823 = vmatprep.subr.bf16.mxu0 0
  %1824 = vmatpush2.bf16.msra.mxu0 0
  %1825 = vmatprep.subr.bf16.mxu0 0
  %1826 = vmatpush2.bf16.msra.mxu0 0
  %1827 = vmatprep.subr.bf16.mxu0 0
  %1828 = vmatpush2.bf16.msra.mxu0 0
  %1829 = vmatprep.subr.bf16.mxu0 0
  %1830 = vmatpush2.bf16.msra.mxu0 0
  %1831 = vmatprep.subr.bf16.mxu0 0
  %1832 = vmatpush2.bf16.msra.mxu0 0
  %1833 = vmatprep.subr.bf16.mxu0 0
  %1834 = vmatpush2.bf16.msra.mxu0 0
  %1835 = vmatprep.subr.bf16.mxu0 0
  %1836 = vmatpush2.bf16.msra.mxu0 0
  %1837 = vmatprep.subr.bf16.mxu0 0
  %1838 = vmatpush2.bf16.msra.mxu0 0
  %1839 = vmatprep.mubr.bf16.mxu0 0
  %1840 = vmatmul.mubr.bf16.gmra.mxu0 %v1799
  %v1841 = vpop.f32.mrf.mxu0
  %v1842 = vadd.f32 0.0, %v1841
  %v1843 = vpop.f32.mrf.mxu0
  %v1844 = vadd.f32 0.0, %v1843
  %v1845 = vpop.f32.mrf.mxu0
  %v1846 = vadd.f32 0.0, %v1845
  %v1847 = vpop.f32.mrf.mxu0
  %v1848 = vadd.f32 0.0, %v1847
  %1849 = vmatprep.mubr.bf16.mxu0 0
  %1850 = vmatmul.mubr.bf16.gmra.mxu0 %v1802
  %v1851 = vpop.f32.mrf.mxu0
  %v1852 = vadd.f32 0.0, %v1851
  %v1853 = vpop.f32.mrf.mxu0
  %v1854 = vadd.f32 0.0, %v1853
  %v1855 = vpop.f32.mrf.mxu0
  %v1856 = vadd.f32 0.0, %v1855
  %v1857 = vpop.f32.mrf.mxu0
  %v1858 = vadd.f32 0.0, %v1857
  %1859 = vmatprep.mubr.bf16.mxu0 0
  %1860 = vmatmul.mubr.bf16.gmra.mxu0 %v1805
  %v1861 = vpop.f32.mrf.mxu0
  %v1862 = vadd.f32 0.0, %v1861
  %v1863 = vpop.f32.mrf.mxu0
  %v1864 = vadd.f32 0.0, %v1863
  %v1865 = vpop.f32.mrf.mxu0
  %v1866 = vadd.f32 0.0, %v1865
  %v1867 = vpop.f32.mrf.mxu0
  %v1868 = vadd.f32 0.0, %v1867
  %1869 = vdwg.mxu0
  %v1870 = vadd.f32 %v1786, %v1842
  %v1871 = vadd.f32 %v1787, %v1844
  %v1872 = vadd.f32 %v1788, %v1846
  %v1873 = vadd.f32 %v1789, %v1848
  %v1874 = vadd.f32 %v1790, %v1852
  %v1875 = vadd.f32 %v1791, %v1854
  %v1876 = vadd.f32 %v1792, %v1856
  %v1877 = vadd.f32 %v1793, %v1858
  %v1878 = vadd.f32 %v1794, %v1862
  %v1879 = vadd.f32 %v1795, %v1864
  %v1880 = vadd.f32 %v1796, %v1866
  %v1881 = vadd.f32 %v1797, %v1868
  %v1882 = vmax.f32 %v1510, %v1870
  %v1883 = vmax.f32 %v1511, %v1871
  %v1884 = vmax.f32 %v1512, %v1872
  %v1885 = vmax.f32 %v1513, %v1873
  %v1886 = vmax.f32 %v1514, %v1874
  %v1887 = vmax.f32 %v1515, %v1875
  %v1888 = vmax.f32 %v1516, %v1876
  %v1889 = vmax.f32 %v1517, %v1877
  %v1890 = vmax.f32 %v1518, %v1878
  %v1891 = vmax.f32 %v1519, %v1879
  %v1892 = vmax.f32 %v1520, %v1880
  %v1893 = vmax.f32 %v1521, %v1881
  %v1894 = vmax.f32 %v1882, %v1883
  %v1895 = vmax.f32 %v1884, %v1885
  %v1896 = vmax.f32 %v1886, %v1887
  %v1897 = vmax.f32 %v1888, %v1889
  %v1898 = vmax.f32 %v1890, %v1891
  %v1899 = vmax.f32 %v1892, %v1893
  %v1900 = vld [vmem:[%s2] sm:$0x1]
  %v1902 = vlaneseq
  %v1903 = vshrl.u32 %v1902, 7
  %v1904 = vsub.s32 0, %v1903
  %v1905 = vrot.slane %v1900, %v1904
  %v1907 = vadd.f32 %v1894, %v1905
  %v1908 = vadd.f32 %v1895, %v1905
  %v1909 = vadd.f32 %v1896, %v1905
  %v1910 = vadd.f32 %v1897, %v1905
  %v1911 = vadd.f32 %v1898, %v1905
  %v1912 = vadd.f32 %v1899, %v1905
  %v1913 = vmax.f32 %v1907, 0.0
  %v1914 = vmax.f32 %v1908, 0.0
  %v1915 = vmax.f32 %v1909, 0.0
  %v1916 = vmax.f32 %v1910, 0.0
  %v1917 = vmax.f32 %v1911, 0.0
  %v1918 = vmax.f32 %v1912, 0.0
  %s1919 = scalar_lea.vmem [#allocation2], 48
  %1920 = vst [vmem:[%s1919] sm:$0xff] %v1913
  %1921 = vst [vmem:[%s1919 + $0x8] sm:$0xff] %v1914
  %1922 = vst [vmem:[%s1919 + $0x10] sm:$0xff] %v1915
  %1923 = vst [vmem:[%s1919 + $0x18] sm:$0xff] %v1916
  %1924 = vst [vmem:[%s1919 + $0x20] sm:$0xff] %v1917
  %1925 = vst [vmem:[%s1919 + $0x28] sm:$0xff] %v1918
  %v1926 = vld [vmem:[#allocation2] sm:$0xff]
  %v1927 = vld [vmem:[#allocation2 + $0x8] sm:$0xff]
  %v1928 = vld [vmem:[#allocation2 + $0x10] sm:$0xff]
  %v1929 = vld [vmem:[#allocation2 + $0x18] sm:$0xff]
  %v1930 = vpack.c.bf16 %v1927, %v1926
  %v1931 = vpack.c.bf16 %v1929, %v1928
  %v1932 = vld [vmem:[%s1919] sm:$0xff]
  %v1933 = vld [vmem:[%s1919 + $0x8] sm:$0xff]
  %v1934 = vld [vmem:[%s1919 + $0x10] sm:$0xff]
  %v1935 = vld [vmem:[%s1919 + $0x18] sm:$0xff]
  %v1936 = vpack.c.bf16 %v1933, %v1932
  %v1937 = vpack.c.bf16 %v1935, %v1934
  %v1938 = vld [vmem:[#allocation2 + $0x20] sm:$0xff]
  %v1939 = vpack.c.bf16 %v1928, %v1927
  %v1940 = vpack.c.bf16 %v1938, %v1929
  %v1941 = vld [vmem:[%s1919 + $0x20] sm:$0xff]
  %v1942 = vpack.c.bf16 %v1934, %v1933
  %v1943 = vpack.c.bf16 %v1941, %v1935
  %v1944 = vld [vmem:[#allocation2 + $0x28] sm:$0xff]
  %v1945 = vpack.c.bf16 %v1944, %v1938
  %v1946 = vld [vmem:[%s1919 + $0x28] sm:$0xff]
  %v1947 = vpack.c.bf16 %v1946, %v1941
  %v1948 = vld [vmem:[%s3] sm:$0xff]
  %v1949 = vld [vmem:[%s3 + $0x8] sm:$0xff]
  %v1950 = vld [vmem:[%s3 + $0x10] sm:$0xff]
  %v1951 = vld [vmem:[%s3 + $0x18] sm:$0xff]
  %v1952 = vld [vmem:[%s3 + $0x20] sm:$0xff]
  %v1953 = vld [vmem:[%s3 + $0x28] sm:$0xff]
  %v1954 = vld [vmem:[%s3 + $0x30] sm:$0xff]
  %v1955 = vld [vmem:[%s3 + $0x38] sm:$0xff]
  %v1956 = vld [vmem:[%s3 + $0x40] sm:$0xff]
  %v1957 = vld [vmem:[%s3 + $0x48] sm:$0xff]
  %v1958 = vld [vmem:[%s3 + $0x50] sm:$0xff]
  %v1959 = vld [vmem:[%s3 + $0x58] sm:$0xff]
  %v1960 = vld [vmem:[%s3 + $0x60] sm:$0xff]
  %v1961 = vld [vmem:[%s3 + $0x68] sm:$0xff]
  %v1962 = vld [vmem:[%s3 + $0x70] sm:$0xff]
  %v1963 = vld [vmem:[%s3 + $0x78] sm:$0xff]
  %s1964 = scalar_lea.vmem %s3, 128
  %v1965 = vld [vmem:[%s1964] sm:$0xff]
  %v1966 = vld [vmem:[%s1964 + $0x8] sm:$0xff]
  %v1967 = vld [vmem:[%s1964 + $0x10] sm:$0xff]
  %v1968 = vld [vmem:[%s1964 + $0x18] sm:$0xff]
  %v1969 = vld [vmem:[%s1964 + $0x20] sm:$0xff]
  %v1970 = vld [vmem:[%s1964 + $0x28] sm:$0xff]
  %v1971 = vld [vmem:[%s1964 + $0x30] sm:$0xff]
  %v1972 = vld [vmem:[%s1964 + $0x38] sm:$0xff]
  %v1973 = vld [vmem:[%s1964 + $0x40] sm:$0xff]
  %v1974 = vld [vmem:[%s1964 + $0x48] sm:$0xff]
  %v1975 = vld [vmem:[%s1964 + $0x50] sm:$0xff]
  %v1976 = vld [vmem:[%s1964 + $0x58] sm:$0xff]
  %v1977 = vld [vmem:[%s1964 + $0x60] sm:$0xff]
  %v1978 = vld [vmem:[%s1964 + $0x68] sm:$0xff]
  %v1979 = vld [vmem:[%s1964 + $0x70] sm:$0xff]
  %v1980 = vld [vmem:[%s1964 + $0x78] sm:$0xff]
  %v1997 = vunpack.c.l.b16 %v1965
  %v1998 = vunpack.c.h.b16 %v1965
  %v1999 = vunpack.c.l.b16 %v1966
  %v2000 = vunpack.c.h.b16 %v1966
  %v2001 = vunpack.c.l.b16 %v1967
  %v2002 = vunpack.c.h.b16 %v1967
  %v2003 = vunpack.c.l.b16 %v1968
  %v2004 = vunpack.c.h.b16 %v1968
  %v2005 = vunpack.c.l.b16 %v1969
  %v2006 = vunpack.c.h.b16 %v1969
  %v2007 = vunpack.c.l.b16 %v1970
  %v2008 = vunpack.c.h.b16 %v1970
  %v2009 = vunpack.c.l.b16 %v1971
  %v2010 = vunpack.c.h.b16 %v1971
  %v2011 = vunpack.c.l.b16 %v1972
  %v2012 = vunpack.c.h.b16 %v1972
  %v2013 = vunpack.c.l.b16 %v1973
  %v2014 = vunpack.c.h.b16 %v1973
  %v2015 = vunpack.c.l.b16 %v1974
  %v2016 = vunpack.c.h.b16 %v1974
  %v2017 = vunpack.c.l.b16 %v1975
  %v2018 = vunpack.c.h.b16 %v1975
  %v2019 = vunpack.c.l.b16 %v1976
  %v2020 = vunpack.c.h.b16 %v1976
  %v2021 = vunpack.c.l.b16 %v1977
  %v2022 = vunpack.c.h.b16 %v1977
  %v2023 = vunpack.c.l.b16 %v1978
  %v2024 = vunpack.c.h.b16 %v1978
  %v2025 = vunpack.c.l.b16 %v1979
  %v2026 = vunpack.c.h.b16 %v1979
  %v2027 = vunpack.c.l.b16 %v1980
  %v2028 = vunpack.c.h.b16 %v1980
  %v2029 = vpack.c.b16 %v1999, %v1997
  %v2030 = vpack.c.b16 %v2000, %v1998
  %v2031 = vpack.c.b16 %v2003, %v2001
  %v2032 = vpack.c.b16 %v2004, %v2002
  %v2033 = vpack.c.b16 %v2007, %v2005
  %v2034 = vpack.c.b16 %v2008, %v2006
  %v2035 = vpack.c.b16 %v2011, %v2009
  %v2036 = vpack.c.b16 %v2012, %v2010
  %v2037 = vpack.c.b16 %v2015, %v2013
  %v2038 = vpack.c.b16 %v2016, %v2014
  %v2039 = vpack.c.b16 %v2019, %v2017
  %v2040 = vpack.c.b16 %v2020, %v2018
  %v2041 = vpack.c.b16 %v2023, %v2021
  %v2042 = vpack.c.b16 %v2024, %v2022
  %v2043 = vpack.c.b16 %v2027, %v2025
  %v2044 = vpack.c.b16 %v2028, %v2026
  %2061 = vmatprep.subr.bf16.mxu0 %v2044
  %2062 = vmatpush1.bf16.msra.mxu0 %v2043
  %2063 = vmatprep.subr.bf16.mxu0 %v2042
  %2064 = vmatpush1.bf16.msra.mxu0 %v2041
  %2065 = vmatprep.subr.bf16.mxu0 %v2040
  %2066 = vmatpush1.bf16.msra.mxu0 %v2039
  %2067 = vmatprep.subr.bf16.mxu0 %v2038
  %2068 = vmatpush1.bf16.msra.mxu0 %v2037
  %2069 = vmatprep.subr.bf16.mxu0 %v2036
  %2070 = vmatpush1.bf16.msra.mxu0 %v2035
  %2071 = vmatprep.subr.bf16.mxu0 %v2034
  %2072 = vmatpush1.bf16.msra.mxu0 %v2033
  %2073 = vmatprep.subr.bf16.mxu0 %v2032
  %2074 = vmatpush1.bf16.msra.mxu0 %v2031
  %2075 = vmatprep.subr.bf16.mxu0 %v2030
  %2076 = vmatpush1.bf16.msra.mxu0 %v2029
  %2077 = vmatprep.subr.bf16.mxu0 0
  %2078 = vmatpush2.bf16.msra.mxu0 0
  %2079 = vmatprep.subr.bf16.mxu0 0
  %2080 = vmatpush2.bf16.msra.mxu0 0
  %2081 = vmatprep.subr.bf16.mxu0 0
  %2082 = vmatpush2.bf16.msra.mxu0 0
  %2083 = vmatprep.subr.bf16.mxu0 0
  %2084 = vmatpush2.bf16.msra.mxu0 0
  %2085 = vmatprep.subr.bf16.mxu0 0
  %2086 = vmatpush2.bf16.msra.mxu0 0
  %2087 = vmatprep.subr.bf16.mxu0 0
  %2088 = vmatpush2.bf16.msra.mxu0 0
  %2089 = vmatprep.subr.bf16.mxu0 0
  %2090 = vmatpush2.bf16.msra.mxu0 0
  %2091 = vmatprep.subr.bf16.mxu0 0
  %2092 = vmatpush2.bf16.msra.mxu0 0
  %2093 = vmatprep.mubr.bf16.mxu0 0
  %2094 = vmatmul.mubr.bf16.gmra.mxu0 %v1936
  %v2095 = vpop.f32.mrf.mxu0
  %v2096 = vadd.f32 0.0, %v2095
  %v2097 = vpop.f32.mrf.mxu0
  %v2098 = vadd.f32 0.0, %v2097
  %v2099 = vpop.f32.mrf.mxu0
  %v2100 = vadd.f32 0.0, %v2099
  %v2101 = vpop.f32.mrf.mxu0
  %v2102 = vadd.f32 0.0, %v2101
  %2103 = vmatprep.mubr.bf16.mxu0 0
  %2104 = vmatmul.mubr.bf16.gmra.mxu0 %v1937
  %v2105 = vpop.f32.mrf.mxu0
  %v2106 = vadd.f32 0.0, %v2105
  %v2107 = vpop.f32.mrf.mxu0
  %v2108 = vadd.f32 0.0, %v2107
  %v2109 = vpop.f32.mrf.mxu0
  %v2110 = vadd.f32 0.0, %v2109
  %v2111 = vpop.f32.mrf.mxu0
  %v2112 = vadd.f32 0.0, %v2111
  %2113 = vdwg.mxu0
  %v2130 = vunpack.c.l.b16 %v1948
  %v2131 = vunpack.c.h.b16 %v1948
  %v2132 = vunpack.c.l.b16 %v1949
  %v2133 = vunpack.c.h.b16 %v1949
  %v2134 = vunpack.c.l.b16 %v1950
  %v2135 = vunpack.c.h.b16 %v1950
  %v2136 = vunpack.c.l.b16 %v1951
  %v2137 = vunpack.c.h.b16 %v1951
  %v2138 = vunpack.c.l.b16 %v1952
  %v2139 = vunpack.c.h.b16 %v1952
  %v2140 = vunpack.c.l.b16 %v1953
  %v2141 = vunpack.c.h.b16 %v1953
  %v2142 = vunpack.c.l.b16 %v1954
  %v2143 = vunpack.c.h.b16 %v1954
  %v2144 = vunpack.c.l.b16 %v1955
  %v2145 = vunpack.c.h.b16 %v1955
  %v2146 = vunpack.c.l.b16 %v1956
  %v2147 = vunpack.c.h.b16 %v1956
  %v2148 = vunpack.c.l.b16 %v1957
  %v2149 = vunpack.c.h.b16 %v1957
  %v2150 = vunpack.c.l.b16 %v1958
  %v2151 = vunpack.c.h.b16 %v1958
  %v2152 = vunpack.c.l.b16 %v1959
  %v2153 = vunpack.c.h.b16 %v1959
  %v2154 = vunpack.c.l.b16 %v1960
  %v2155 = vunpack.c.h.b16 %v1960
  %v2156 = vunpack.c.l.b16 %v1961
  %v2157 = vunpack.c.h.b16 %v1961
  %v2158 = vunpack.c.l.b16 %v1962
  %v2159 = vunpack.c.h.b16 %v1962
  %v2160 = vunpack.c.l.b16 %v1963
  %v2161 = vunpack.c.h.b16 %v1963
  %v2162 = vpack.c.b16 %v2132, %v2130
  %v2163 = vpack.c.b16 %v2133, %v2131
  %v2164 = vpack.c.b16 %v2136, %v2134
  %v2165 = vpack.c.b16 %v2137, %v2135
  %v2166 = vpack.c.b16 %v2140, %v2138
  %v2167 = vpack.c.b16 %v2141, %v2139
  %v2168 = vpack.c.b16 %v2144, %v2142
  %v2169 = vpack.c.b16 %v2145, %v2143
  %v2170 = vpack.c.b16 %v2148, %v2146
  %v2171 = vpack.c.b16 %v2149, %v2147
  %v2172 = vpack.c.b16 %v2152, %v2150
  %v2173 = vpack.c.b16 %v2153, %v2151
  %v2174 = vpack.c.b16 %v2156, %v2154
  %v2175 = vpack.c.b16 %v2157, %v2155
  %v2176 = vpack.c.b16 %v2160, %v2158
  %v2177 = vpack.c.b16 %v2161, %v2159
  %2194 = vmatprep.subr.bf16.mxu0 %v2177
  %2195 = vmatpush1.bf16.msra.mxu0 %v2176
  %2196 = vmatprep.subr.bf16.mxu0 %v2175
  %2197 = vmatpush1.bf16.msra.mxu0 %v2174
  %2198 = vmatprep.subr.bf16.mxu0 %v2173
  %2199 = vmatpush1.bf16.msra.mxu0 %v2172
  %2200 = vmatprep.subr.bf16.mxu0 %v2171
  %2201 = vmatpush1.bf16.msra.mxu0 %v2170
  %2202 = vmatprep.subr.bf16.mxu0 %v2169
  %2203 = vmatpush1.bf16.msra.mxu0 %v2168
  %2204 = vmatprep.subr.bf16.mxu0 %v2167
  %2205 = vmatpush1.bf16.msra.mxu0 %v2166
  %2206 = vmatprep.subr.bf16.mxu0 %v2165
  %2207 = vmatpush1.bf16.msra.mxu0 %v2164
  %2208 = vmatprep.subr.bf16.mxu0 %v2163
  %2209 = vmatpush1.bf16.msra.mxu0 %v2162
  %2210 = vmatprep.subr.bf16.mxu0 0
  %2211 = vmatpush2.bf16.msra.mxu0 0
  %2212 = vmatprep.subr.bf16.mxu0 0
  %2213 = vmatpush2.bf16.msra.mxu0 0
  %2214 = vmatprep.subr.bf16.mxu0 0
  %2215 = vmatpush2.bf16.msra.mxu0 0
  %2216 = vmatprep.subr.bf16.mxu0 0
  %2217 = vmatpush2.bf16.msra.mxu0 0
  %2218 = vmatprep.subr.bf16.mxu0 0
  %2219 = vmatpush2.bf16.msra.mxu0 0
  %2220 = vmatprep.subr.bf16.mxu0 0
  %2221 = vmatpush2.bf16.msra.mxu0 0
  %2222 = vmatprep.subr.bf16.mxu0 0
  %2223 = vmatpush2.bf16.msra.mxu0 0
  %2224 = vmatprep.subr.bf16.mxu0 0
  %2225 = vmatpush2.bf16.msra.mxu0 0
  %2226 = vmatprep.mubr.bf16.mxu0 0
  %2227 = vmatmul.mubr.bf16.gmra.mxu0 %v1930
  %v2228 = vpop.f32.mrf.mxu0
  %v2229 = vadd.f32 %v2096, %v2228
  %v2230 = vpop.f32.mrf.mxu0
  %v2231 = vadd.f32 %v2098, %v2230
  %v2232 = vpop.f32.mrf.mxu0
  %v2233 = vadd.f32 %v2100, %v2232
  %v2234 = vpop.f32.mrf.mxu0
  %v2235 = vadd.f32 %v2102, %v2234
  %2236 = vmatprep.mubr.bf16.mxu0 0
  %2237 = vmatmul.mubr.bf16.gmra.mxu0 %v1931
  %v2238 = vpop.f32.mrf.mxu0
  %v2239 = vadd.f32 %v2106, %v2238
  %v2240 = vpop.f32.mrf.mxu0
  %v2241 = vadd.f32 %v2108, %v2240
  %v2242 = vpop.f32.mrf.mxu0
  %v2243 = vadd.f32 %v2110, %v2242
  %v2244 = vpop.f32.mrf.mxu0
  %v2245 = vadd.f32 %v2112, %v2244
  %2246 = vdwg.mxu0
  %s2247 = scalar_lea.vmem %s3, 256
  %v2248 = vld [vmem:[%s2247] sm:$0xff]
  %v2249 = vld [vmem:[%s2247 + $0x8] sm:$0xff]
  %v2250 = vld [vmem:[%s2247 + $0x10] sm:$0xff]
  %v2251 = vld [vmem:[%s2247 + $0x18] sm:$0xff]
  %v2252 = vld [vmem:[%s2247 + $0x20] sm:$0xff]
  %v2253 = vld [vmem:[%s2247 + $0x28] sm:$0xff]
  %v2254 = vld [vmem:[%s2247 + $0x30] sm:$0xff]
  %v2255 = vld [vmem:[%s2247 + $0x38] sm:$0xff]
  %v2256 = vld [vmem:[%s2247 + $0x40] sm:$0xff]
  %v2257 = vld [vmem:[%s2247 + $0x48] sm:$0xff]
  %v2258 = vld [vmem:[%s2247 + $0x50] sm:$0xff]
  %v2259 = vld [vmem:[%s2247 + $0x58] sm:$0xff]
  %v2260 = vld [vmem:[%s2247 + $0x60] sm:$0xff]
  %v2261 = vld [vmem:[%s2247 + $0x68] sm:$0xff]
  %v2262 = vld [vmem:[%s2247 + $0x70] sm:$0xff]
  %v2263 = vld [vmem:[%s2247 + $0x78] sm:$0xff]
  %v2280 = vunpack.c.l.b16 %v2248
  %v2281 = vunpack.c.h.b16 %v2248
  %v2282 = vunpack.c.l.b16 %v2249
  %v2283 = vunpack.c.h.b16 %v2249
  %v2284 = vunpack.c.l.b16 %v2250
  %v2285 = vunpack.c.h.b16 %v2250
  %v2286 = vunpack.c.l.b16 %v2251
  %v2287 = vunpack.c.h.b16 %v2251
  %v2288 = vunpack.c.l.b16 %v2252
  %v2289 = vunpack.c.h.b16 %v2252
  %v2290 = vunpack.c.l.b16 %v2253
  %v2291 = vunpack.c.h.b16 %v2253
  %v2292 = vunpack.c.l.b16 %v2254
  %v2293 = vunpack.c.h.b16 %v2254
  %v2294 = vunpack.c.l.b16 %v2255
  %v2295 = vunpack.c.h.b16 %v2255
  %v2296 = vunpack.c.l.b16 %v2256
  %v2297 = vunpack.c.h.b16 %v2256
  %v2298 = vunpack.c.l.b16 %v2257
  %v2299 = vunpack.c.h.b16 %v2257
  %v2300 = vunpack.c.l.b16 %v2258
  %v2301 = vunpack.c.h.b16 %v2258
  %v2302 = vunpack.c.l.b16 %v2259
  %v2303 = vunpack.c.h.b16 %v2259
  %v2304 = vunpack.c.l.b16 %v2260
  %v2305 = vunpack.c.h.b16 %v2260
  %v2306 = vunpack.c.l.b16 %v2261
  %v2307 = vunpack.c.h.b16 %v2261
  %v2308 = vunpack.c.l.b16 %v2262
  %v2309 = vunpack.c.h.b16 %v2262
  %v2310 = vunpack.c.l.b16 %v2263
  %v2311 = vunpack.c.h.b16 %v2263
  %v2312 = vpack.c.b16 %v2282, %v2280
  %v2313 = vpack.c.b16 %v2283, %v2281
  %v2314 = vpack.c.b16 %v2286, %v2284
  %v2315 = vpack.c.b16 %v2287, %v2285
  %v2316 = vpack.c.b16 %v2290, %v2288
  %v2317 = vpack.c.b16 %v2291, %v2289
  %v2318 = vpack.c.b16 %v2294, %v2292
  %v2319 = vpack.c.b16 %v2295, %v2293
  %v2320 = vpack.c.b16 %v2298, %v2296
  %v2321 = vpack.c.b16 %v2299, %v2297
  %v2322 = vpack.c.b16 %v2302, %v2300
  %v2323 = vpack.c.b16 %v2303, %v2301
  %v2324 = vpack.c.b16 %v2306, %v2304
  %v2325 = vpack.c.b16 %v2307, %v2305
  %v2326 = vpack.c.b16 %v2310, %v2308
  %v2327 = vpack.c.b16 %v2311, %v2309
  %2344 = vmatprep.subr.bf16.mxu0 %v2327
  %2345 = vmatpush1.bf16.msra.mxu0 %v2326
  %2346 = vmatprep.subr.bf16.mxu0 %v2325
  %2347 = vmatpush1.bf16.msra.mxu0 %v2324
  %2348 = vmatprep.subr.bf16.mxu0 %v2323
  %2349 = vmatpush1.bf16.msra.mxu0 %v2322
  %2350 = vmatprep.subr.bf16.mxu0 %v2321
  %2351 = vmatpush1.bf16.msra.mxu0 %v2320
  %2352 = vmatprep.subr.bf16.mxu0 %v2319
  %2353 = vmatpush1.bf16.msra.mxu0 %v2318
  %2354 = vmatprep.subr.bf16.mxu0 %v2317
  %2355 = vmatpush1.bf16.msra.mxu0 %v2316
  %2356 = vmatprep.subr.bf16.mxu0 %v2315
  %2357 = vmatpush1.bf16.msra.mxu0 %v2314
  %2358 = vmatprep.subr.bf16.mxu0 %v2313
  %2359 = vmatpush1.bf16.msra.mxu0 %v2312
  %2360 = vmatprep.subr.bf16.mxu0 0
  %2361 = vmatpush2.bf16.msra.mxu0 0
  %2362 = vmatprep.subr.bf16.mxu0 0
  %2363 = vmatpush2.bf16.msra.mxu0 0
  %2364 = vmatprep.subr.bf16.mxu0 0
  %2365 = vmatpush2.bf16.msra.mxu0 0
  %2366 = vmatprep.subr.bf16.mxu0 0
  %2367 = vmatpush2.bf16.msra.mxu0 0
  %2368 = vmatprep.subr.bf16.mxu0 0
  %2369 = vmatpush2.bf16.msra.mxu0 0
  %2370 = vmatprep.subr.bf16.mxu0 0
  %2371 = vmatpush2.bf16.msra.mxu0 0
  %2372 = vmatprep.subr.bf16.mxu0 0
  %2373 = vmatpush2.bf16.msra.mxu0 0
  %2374 = vmatprep.subr.bf16.mxu0 0
  %2375 = vmatpush2.bf16.msra.mxu0 0
  %2376 = vmatprep.mubr.bf16.mxu0 0
  %2377 = vmatmul.mubr.bf16.gmra.mxu0 %v1939
  %v2378 = vpop.f32.mrf.mxu0
  %v2379 = vadd.f32 0.0, %v2378
  %v2380 = vpop.f32.mrf.mxu0
  %v2381 = vadd.f32 0.0, %v2380
  %v2382 = vpop.f32.mrf.mxu0
  %v2383 = vadd.f32 0.0, %v2382
  %v2384 = vpop.f32.mrf.mxu0
  %v2385 = vadd.f32 0.0, %v2384
  %2386 = vmatprep.mubr.bf16.mxu0 0
  %2387 = vmatmul.mubr.bf16.gmra.mxu0 %v1940
  %v2388 = vpop.f32.mrf.mxu0
  %v2389 = vadd.f32 0.0, %v2388
  %v2390 = vpop.f32.mrf.mxu0
  %v2391 = vadd.f32 0.0, %v2390
  %v2392 = vpop.f32.mrf.mxu0
  %v2393 = vadd.f32 0.0, %v2392
  %v2394 = vpop.f32.mrf.mxu0
  %v2395 = vadd.f32 0.0, %v2394
  %2396 = vdwg.mxu0
  %v2397 = vadd.f32 %v2229, %v2379
  %v2398 = vadd.f32 %v2231, %v2381
  %v2399 = vadd.f32 %v2233, %v2383
  %v2400 = vadd.f32 %v2235, %v2385
  %v2401 = vadd.f32 %v2239, %v2389
  %v2402 = vadd.f32 %v2241, %v2391
  %v2403 = vadd.f32 %v2243, %v2393
  %v2404 = vadd.f32 %v2245, %v2395
  %s2405 = scalar_lea.vmem %s3, 384
  %v2406 = vld [vmem:[%s2405] sm:$0xff]
  %v2407 = vld [vmem:[%s2405 + $0x8] sm:$0xff]
  %v2408 = vld [vmem:[%s2405 + $0x10] sm:$0xff]
  %v2409 = vld [vmem:[%s2405 + $0x18] sm:$0xff]
  %v2410 = vld [vmem:[%s2405 + $0x20] sm:$0xff]
  %v2411 = vld [vmem:[%s2405 + $0x28] sm:$0xff]
  %v2412 = vld [vmem:[%s2405 + $0x30] sm:$0xff]
  %v2413 = vld [vmem:[%s2405 + $0x38] sm:$0xff]
  %v2414 = vld [vmem:[%s2405 + $0x40] sm:$0xff]
  %v2415 = vld [vmem:[%s2405 + $0x48] sm:$0xff]
  %v2416 = vld [vmem:[%s2405 + $0x50] sm:$0xff]
  %v2417 = vld [vmem:[%s2405 + $0x58] sm:$0xff]
  %v2418 = vld [vmem:[%s2405 + $0x60] sm:$0xff]
  %v2419 = vld [vmem:[%s2405 + $0x68] sm:$0xff]
  %v2420 = vld [vmem:[%s2405 + $0x70] sm:$0xff]
  %v2421 = vld [vmem:[%s2405 + $0x78] sm:$0xff]
  %v2438 = vunpack.c.l.b16 %v2406
  %v2439 = vunpack.c.h.b16 %v2406
  %v2440 = vunpack.c.l.b16 %v2407
  %v2441 = vunpack.c.h.b16 %v2407
  %v2442 = vunpack.c.l.b16 %v2408
  %v2443 = vunpack.c.h.b16 %v2408
  %v2444 = vunpack.c.l.b16 %v2409
  %v2445 = vunpack.c.h.b16 %v2409
  %v2446 = vunpack.c.l.b16 %v2410
  %v2447 = vunpack.c.h.b16 %v2410
  %v2448 = vunpack.c.l.b16 %v2411
  %v2449 = vunpack.c.h.b16 %v2411
  %v2450 = vunpack.c.l.b16 %v2412
  %v2451 = vunpack.c.h.b16 %v2412
  %v2452 = vunpack.c.l.b16 %v2413
  %v2453 = vunpack.c.h.b16 %v2413
  %v2454 = vunpack.c.l.b16 %v2414
  %v2455 = vunpack.c.h.b16 %v2414
  %v2456 = vunpack.c.l.b16 %v2415
  %v2457 = vunpack.c.h.b16 %v2415
  %v2458 = vunpack.c.l.b16 %v2416
  %v2459 = vunpack.c.h.b16 %v2416
  %v2460 = vunpack.c.l.b16 %v2417
  %v2461 = vunpack.c.h.b16 %v2417
  %v2462 = vunpack.c.l.b16 %v2418
  %v2463 = vunpack.c.h.b16 %v2418
  %v2464 = vunpack.c.l.b16 %v2419
  %v2465 = vunpack.c.h.b16 %v2419
  %v2466 = vunpack.c.l.b16 %v2420
  %v2467 = vunpack.c.h.b16 %v2420
  %v2468 = vunpack.c.l.b16 %v2421
  %v2469 = vunpack.c.h.b16 %v2421
  %v2470 = vpack.c.b16 %v2440, %v2438
  %v2471 = vpack.c.b16 %v2441, %v2439
  %v2472 = vpack.c.b16 %v2444, %v2442
  %v2473 = vpack.c.b16 %v2445, %v2443
  %v2474 = vpack.c.b16 %v2448, %v2446
  %v2475 = vpack.c.b16 %v2449, %v2447
  %v2476 = vpack.c.b16 %v2452, %v2450
  %v2477 = vpack.c.b16 %v2453, %v2451
  %v2478 = vpack.c.b16 %v2456, %v2454
  %v2479 = vpack.c.b16 %v2457, %v2455
  %v2480 = vpack.c.b16 %v2460, %v2458
  %v2481 = vpack.c.b16 %v2461, %v2459
  %v2482 = vpack.c.b16 %v2464, %v2462
  %v2483 = vpack.c.b16 %v2465, %v2463
  %v2484 = vpack.c.b16 %v2468, %v2466
  %v2485 = vpack.c.b16 %v2469, %v2467
  %2502 = vmatprep.subr.bf16.mxu0 %v2485
  %2503 = vmatpush1.bf16.msra.mxu0 %v2484
  %2504 = vmatprep.subr.bf16.mxu0 %v2483
  %2505 = vmatpush1.bf16.msra.mxu0 %v2482
  %2506 = vmatprep.subr.bf16.mxu0 %v2481
  %2507 = vmatpush1.bf16.msra.mxu0 %v2480
  %2508 = vmatprep.subr.bf16.mxu0 %v2479
  %2509 = vmatpush1.bf16.msra.mxu0 %v2478
  %2510 = vmatprep.subr.bf16.mxu0 %v2477
  %2511 = vmatpush1.bf16.msra.mxu0 %v2476
  %2512 = vmatprep.subr.bf16.mxu0 %v2475
  %2513 = vmatpush1.bf16.msra.mxu0 %v2474
  %2514 = vmatprep.subr.bf16.mxu0 %v2473
  %2515 = vmatpush1.bf16.msra.mxu0 %v2472
  %2516 = vmatprep.subr.bf16.mxu0 %v2471
  %2517 = vmatpush1.bf16.msra.mxu0 %v2470
  %2518 = vmatprep.subr.bf16.mxu0 0
  %2519 = vmatpush2.bf16.msra.mxu0 0
  %2520 = vmatprep.subr.bf16.mxu0 0
  %2521 = vmatpush2.bf16.msra.mxu0 0
  %2522 = vmatprep.subr.bf16.mxu0 0
  %2523 = vmatpush2.bf16.msra.mxu0 0
  %2524 = vmatprep.subr.bf16.mxu0 0
  %2525 = vmatpush2.bf16.msra.mxu0 0
  %2526 = vmatprep.subr.bf16.mxu0 0
  %2527 = vmatpush2.bf16.msra.mxu0 0
  %2528 = vmatprep.subr.bf16.mxu0 0
  %2529 = vmatpush2.bf16.msra.mxu0 0
  %2530 = vmatprep.subr.bf16.mxu0 0
  %2531 = vmatpush2.bf16.msra.mxu0 0
  %2532 = vmatprep.subr.bf16.mxu0 0
  %2533 = vmatpush2.bf16.msra.mxu0 0
  %2534 = vmatprep.mubr.bf16.mxu0 0
  %2535 = vmatmul.mubr.bf16.gmra.mxu0 %v1942
  %v2536 = vpop.f32.mrf.mxu0
  %v2537 = vadd.f32 0.0, %v2536
  %v2538 = vpop.f32.mrf.mxu0
  %v2539 = vadd.f32 0.0, %v2538
  %v2540 = vpop.f32.mrf.mxu0
  %v2541 = vadd.f32 0.0, %v2540
  %v2542 = vpop.f32.mrf.mxu0
  %v2543 = vadd.f32 0.0, %v2542
  %2544 = vmatprep.mubr.bf16.mxu0 0
  %2545 = vmatmul.mubr.bf16.gmra.mxu0 %v1943
  %v2546 = vpop.f32.mrf.mxu0
  %v2547 = vadd.f32 0.0, %v2546
  %v2548 = vpop.f32.mrf.mxu0
  %v2549 = vadd.f32 0.0, %v2548
  %v2550 = vpop.f32.mrf.mxu0
  %v2551 = vadd.f32 0.0, %v2550
  %v2552 = vpop.f32.mrf.mxu0
  %v2553 = vadd.f32 0.0, %v2552
  %2554 = vdwg.mxu0
  %v2555 = vadd.f32 %v2397, %v2537
  %v2556 = vadd.f32 %v2398, %v2539
  %v2557 = vadd.f32 %v2399, %v2541
  %v2558 = vadd.f32 %v2400, %v2543
  %v2559 = vadd.f32 %v2401, %v2547
  %v2560 = vadd.f32 %v2402, %v2549
  %v2561 = vadd.f32 %v2403, %v2551
  %v2562 = vadd.f32 %v2404, %v2553
  %s2563 = scalar_lea.vmem %s3, 512
  %v2564 = vld [vmem:[%s2563] sm:$0xff]
  %v2565 = vld [vmem:[%s2563 + $0x8] sm:$0xff]
  %v2566 = vld [vmem:[%s2563 + $0x10] sm:$0xff]
  %v2567 = vld [vmem:[%s2563 + $0x18] sm:$0xff]
  %v2568 = vld [vmem:[%s2563 + $0x20] sm:$0xff]
  %v2569 = vld [vmem:[%s2563 + $0x28] sm:$0xff]
  %v2570 = vld [vmem:[%s2563 + $0x30] sm:$0xff]
  %v2571 = vld [vmem:[%s2563 + $0x38] sm:$0xff]
  %v2572 = vld [vmem:[%s2563 + $0x40] sm:$0xff]
  %v2573 = vld [vmem:[%s2563 + $0x48] sm:$0xff]
  %v2574 = vld [vmem:[%s2563 + $0x50] sm:$0xff]
  %v2575 = vld [vmem:[%s2563 + $0x58] sm:$0xff]
  %v2576 = vld [vmem:[%s2563 + $0x60] sm:$0xff]
  %v2577 = vld [vmem:[%s2563 + $0x68] sm:$0xff]
  %v2578 = vld [vmem:[%s2563 + $0x70] sm:$0xff]
  %v2579 = vld [vmem:[%s2563 + $0x78] sm:$0xff]
  %v2596 = vunpack.c.l.b16 %v2564
  %v2597 = vunpack.c.h.b16 %v2564
  %v2598 = vunpack.c.l.b16 %v2565
  %v2599 = vunpack.c.h.b16 %v2565
  %v2600 = vunpack.c.l.b16 %v2566
  %v2601 = vunpack.c.h.b16 %v2566
  %v2602 = vunpack.c.l.b16 %v2567
  %v2603 = vunpack.c.h.b16 %v2567
  %v2604 = vunpack.c.l.b16 %v2568
  %v2605 = vunpack.c.h.b16 %v2568
  %v2606 = vunpack.c.l.b16 %v2569
  %v2607 = vunpack.c.h.b16 %v2569
  %v2608 = vunpack.c.l.b16 %v2570
  %v2609 = vunpack.c.h.b16 %v2570
  %v2610 = vunpack.c.l.b16 %v2571
  %v2611 = vunpack.c.h.b16 %v2571
  %v2612 = vunpack.c.l.b16 %v2572
  %v2613 = vunpack.c.h.b16 %v2572
  %v2614 = vunpack.c.l.b16 %v2573
  %v2615 = vunpack.c.h.b16 %v2573
  %v2616 = vunpack.c.l.b16 %v2574
  %v2617 = vunpack.c.h.b16 %v2574
  %v2618 = vunpack.c.l.b16 %v2575
  %v2619 = vunpack.c.h.b16 %v2575
  %v2620 = vunpack.c.l.b16 %v2576
  %v2621 = vunpack.c.h.b16 %v2576
  %v2622 = vunpack.c.l.b16 %v2577
  %v2623 = vunpack.c.h.b16 %v2577
  %v2624 = vunpack.c.l.b16 %v2578
  %v2625 = vunpack.c.h.b16 %v2578
  %v2626 = vunpack.c.l.b16 %v2579
  %v2627 = vunpack.c.h.b16 %v2579
  %v2628 = vpack.c.b16 %v2598, %v2596
  %v2629 = vpack.c.b16 %v2599, %v2597
  %v2630 = vpack.c.b16 %v2602, %v2600
  %v2631 = vpack.c.b16 %v2603, %v2601
  %v2632 = vpack.c.b16 %v2606, %v2604
  %v2633 = vpack.c.b16 %v2607, %v2605
  %v2634 = vpack.c.b16 %v2610, %v2608
  %v2635 = vpack.c.b16 %v2611, %v2609
  %v2636 = vpack.c.b16 %v2614, %v2612
  %v2637 = vpack.c.b16 %v2615, %v2613
  %v2638 = vpack.c.b16 %v2618, %v2616
  %v2639 = vpack.c.b16 %v2619, %v2617
  %v2640 = vpack.c.b16 %v2622, %v2620
  %v2641 = vpack.c.b16 %v2623, %v2621
  %v2642 = vpack.c.b16 %v2626, %v2624
  %v2643 = vpack.c.b16 %v2627, %v2625
  %2660 = vmatprep.subr.bf16.mxu0 %v2643
  %2661 = vmatpush1.bf16.msra.mxu0 %v2642
  %2662 = vmatprep.subr.bf16.mxu0 %v2641
  %2663 = vmatpush1.bf16.msra.mxu0 %v2640
  %2664 = vmatprep.subr.bf16.mxu0 %v2639
  %2665 = vmatpush1.bf16.msra.mxu0 %v2638
  %2666 = vmatprep.subr.bf16.mxu0 %v2637
  %2667 = vmatpush1.bf16.msra.mxu0 %v2636
  %2668 = vmatprep.subr.bf16.mxu0 %v2635
  %2669 = vmatpush1.bf16.msra.mxu0 %v2634
  %2670 = vmatprep.subr.bf16.mxu0 %v2633
  %2671 = vmatpush1.bf16.msra.mxu0 %v2632
  %2672 = vmatprep.subr.bf16.mxu0 %v2631
  %2673 = vmatpush1.bf16.msra.mxu0 %v2630
  %2674 = vmatprep.subr.bf16.mxu0 %v2629
  %2675 = vmatpush1.bf16.msra.mxu0 %v2628
  %2676 = vmatprep.subr.bf16.mxu0 0
  %2677 = vmatpush2.bf16.msra.mxu0 0
  %2678 = vmatprep.subr.bf16.mxu0 0
  %2679 = vmatpush2.bf16.msra.mxu0 0
  %2680 = vmatprep.subr.bf16.mxu0 0
  %2681 = vmatpush2.bf16.msra.mxu0 0
  %2682 = vmatprep.subr.bf16.mxu0 0
  %2683 = vmatpush2.bf16.msra.mxu0 0
  %2684 = vmatprep.subr.bf16.mxu0 0
  %2685 = vmatpush2.bf16.msra.mxu0 0
  %2686 = vmatprep.subr.bf16.mxu0 0
  %2687 = vmatpush2.bf16.msra.mxu0 0
  %2688 = vmatprep.subr.bf16.mxu0 0
  %2689 = vmatpush2.bf16.msra.mxu0 0
  %2690 = vmatprep.subr.bf16.mxu0 0
  %2691 = vmatpush2.bf16.msra.mxu0 0
  %2692 = vmatprep.mubr.bf16.mxu0 0
  %2693 = vmatmul.mubr.bf16.gmra.mxu0 %v1931
  %v2694 = vpop.f32.mrf.mxu0
  %v2695 = vadd.f32 0.0, %v2694
  %v2696 = vpop.f32.mrf.mxu0
  %v2697 = vadd.f32 0.0, %v2696
  %v2698 = vpop.f32.mrf.mxu0
  %v2699 = vadd.f32 0.0, %v2698
  %v2700 = vpop.f32.mrf.mxu0
  %v2701 = vadd.f32 0.0, %v2700
  %2702 = vmatprep.mubr.bf16.mxu0 0
  %2703 = vmatmul.mubr.bf16.gmra.mxu0 %v1945
  %v2704 = vpop.f32.mrf.mxu0
  %v2705 = vadd.f32 0.0, %v2704
  %v2706 = vpop.f32.mrf.mxu0
  %v2707 = vadd.f32 0.0, %v2706
  %v2708 = vpop.f32.mrf.mxu0
  %v2709 = vadd.f32 0.0, %v2708
  %v2710 = vpop.f32.mrf.mxu0
  %v2711 = vadd.f32 0.0, %v2710
  %2712 = vdwg.mxu0
  %v2713 = vadd.f32 %v2555, %v2695
  %v2714 = vadd.f32 %v2556, %v2697
  %v2715 = vadd.f32 %v2557, %v2699
  %v2716 = vadd.f32 %v2558, %v2701
  %v2717 = vadd.f32 %v2559, %v2705
  %v2718 = vadd.f32 %v2560, %v2707
  %v2719 = vadd.f32 %v2561, %v2709
  %v2720 = vadd.f32 %v2562, %v2711
  %2721 = vmatprep.subr.bf16.mxu0 %v2044
  %2722 = vmatpush1.bf16.msra.mxu0 %v2043
  %2723 = vmatprep.subr.bf16.mxu0 %v2042
  %2724 = vmatpush1.bf16.msra.mxu0 %v2041
  %2725 = vmatprep.subr.bf16.mxu0 %v2040
  %2726 = vmatpush1.bf16.msra.mxu0 %v2039
  %2727 = vmatprep.subr.bf16.mxu0 %v2038
  %2728 = vmatpush1.bf16.msra.mxu0 %v2037
  %2729 = vmatprep.subr.bf16.mxu0 %v2036
  %2730 = vmatpush1.bf16.msra.mxu0 %v2035
  %2731 = vmatprep.subr.bf16.mxu0 %v2034
  %2732 = vmatpush1.bf16.msra.mxu0 %v2033
  %2733 = vmatprep.subr.bf16.mxu0 %v2032
  %2734 = vmatpush1.bf16.msra.mxu0 %v2031
  %2735 = vmatprep.subr.bf16.mxu0 %v2030
  %2736 = vmatpush1.bf16.msra.mxu0 %v2029
  %2737 = vmatprep.subr.bf16.mxu0 0
  %2738 = vmatpush2.bf16.msra.mxu0 0
  %2739 = vmatprep.subr.bf16.mxu0 0
  %2740 = vmatpush2.bf16.msra.mxu0 0
  %2741 = vmatprep.subr.bf16.mxu0 0
  %2742 = vmatpush2.bf16.msra.mxu0 0
  %2743 = vmatprep.subr.bf16.mxu0 0
  %2744 = vmatpush2.bf16.msra.mxu0 0
  %2745 = vmatprep.subr.bf16.mxu0 0
  %2746 = vmatpush2.bf16.msra.mxu0 0
  %2747 = vmatprep.subr.bf16.mxu0 0
  %2748 = vmatpush2.bf16.msra.mxu0 0
  %2749 = vmatprep.subr.bf16.mxu0 0
  %2750 = vmatpush2.bf16.msra.mxu0 0
  %2751 = vmatprep.subr.bf16.mxu0 0
  %2752 = vmatpush2.bf16.msra.mxu0 0
  %2753 = vmatprep.mubr.bf16.mxu0 0
  %2754 = vmatmul.mubr.bf16.gmra.mxu0 %v1939
  %v2755 = vpop.f32.mrf.mxu0
  %v2756 = vadd.f32 0.0, %v2755
  %v2757 = vpop.f32.mrf.mxu0
  %v2758 = vadd.f32 0.0, %v2757
  %v2759 = vpop.f32.mrf.mxu0
  %v2760 = vadd.f32 0.0, %v2759
  %v2761 = vpop.f32.mrf.mxu0
  %v2762 = vadd.f32 0.0, %v2761
  %2763 = vmatprep.mubr.bf16.mxu0 0
  %2764 = vmatmul.mubr.bf16.gmra.mxu0 %v1940
  %v2765 = vpop.f32.mrf.mxu0
  %v2766 = vadd.f32 0.0, %v2765
  %v2767 = vpop.f32.mrf.mxu0
  %v2768 = vadd.f32 0.0, %v2767
  %v2769 = vpop.f32.mrf.mxu0
  %v2770 = vadd.f32 0.0, %v2769
  %v2771 = vpop.f32.mrf.mxu0
  %v2772 = vadd.f32 0.0, %v2771
  %2773 = vdwg.mxu0
  %2774 = vmatprep.subr.bf16.mxu0 %v2177
  %2775 = vmatpush1.bf16.msra.mxu0 %v2176
  %2776 = vmatprep.subr.bf16.mxu0 %v2175
  %2777 = vmatpush1.bf16.msra.mxu0 %v2174
  %2778 = vmatprep.subr.bf16.mxu0 %v2173
  %2779 = vmatpush1.bf16.msra.mxu0 %v2172
  %2780 = vmatprep.subr.bf16.mxu0 %v2171
  %2781 = vmatpush1.bf16.msra.mxu0 %v2170
  %2782 = vmatprep.subr.bf16.mxu0 %v2169
  %2783 = vmatpush1.bf16.msra.mxu0 %v2168
  %2784 = vmatprep.subr.bf16.mxu0 %v2167
  %2785 = vmatpush1.bf16.msra.mxu0 %v2166
  %2786 = vmatprep.subr.bf16.mxu0 %v2165
  %2787 = vmatpush1.bf16.msra.mxu0 %v2164
  %2788 = vmatprep.subr.bf16.mxu0 %v2163
  %2789 = vmatpush1.bf16.msra.mxu0 %v2162
  %2790 = vmatprep.subr.bf16.mxu0 0
  %2791 = vmatpush2.bf16.msra.mxu0 0
  %2792 = vmatprep.subr.bf16.mxu0 0
  %2793 = vmatpush2.bf16.msra.mxu0 0
  %2794 = vmatprep.subr.bf16.mxu0 0
  %2795 = vmatpush2.bf16.msra.mxu0 0
  %2796 = vmatprep.subr.bf16.mxu0 0
  %2797 = vmatpush2.bf16.msra.mxu0 0
  %2798 = vmatprep.subr.bf16.mxu0 0
  %2799 = vmatpush2.bf16.msra.mxu0 0
  %2800 = vmatprep.subr.bf16.mxu0 0
  %2801 = vmatpush2.bf16.msra.mxu0 0
  %2802 = vmatprep.subr.bf16.mxu0 0
  %2803 = vmatpush2.bf16.msra.mxu0 0
  %2804 = vmatprep.subr.bf16.mxu0 0
  %2805 = vmatpush2.bf16.msra.mxu0 0
  %2806 = vmatprep.mubr.bf16.mxu0 0
  %2807 = vmatmul.mubr.bf16.gmra.mxu0 %v1936
  %v2808 = vpop.f32.mrf.mxu0
  %v2809 = vadd.f32 %v2756, %v2808
  %v2810 = vpop.f32.mrf.mxu0
  %v2811 = vadd.f32 %v2758, %v2810
  %v2812 = vpop.f32.mrf.mxu0
  %v2813 = vadd.f32 %v2760, %v2812
  %v2814 = vpop.f32.mrf.mxu0
  %v2815 = vadd.f32 %v2762, %v2814
  %2816 = vmatprep.mubr.bf16.mxu0 0
  %2817 = vmatmul.mubr.bf16.gmra.mxu0 %v1937
  %v2818 = vpop.f32.mrf.mxu0
  %v2819 = vadd.f32 %v2766, %v2818
  %v2820 = vpop.f32.mrf.mxu0
  %v2821 = vadd.f32 %v2768, %v2820
  %v2822 = vpop.f32.mrf.mxu0
  %v2823 = vadd.f32 %v2770, %v2822
  %v2824 = vpop.f32.mrf.mxu0
  %v2825 = vadd.f32 %v2772, %v2824
  %2826 = vdwg.mxu0
  %2827 = vmatprep.subr.bf16.mxu0 %v2327
  %2828 = vmatpush1.bf16.msra.mxu0 %v2326
  %2829 = vmatprep.subr.bf16.mxu0 %v2325
  %2830 = vmatpush1.bf16.msra.mxu0 %v2324
  %2831 = vmatprep.subr.bf16.mxu0 %v2323
  %2832 = vmatpush1.bf16.msra.mxu0 %v2322
  %2833 = vmatprep.subr.bf16.mxu0 %v2321
  %2834 = vmatpush1.bf16.msra.mxu0 %v2320
  %2835 = vmatprep.subr.bf16.mxu0 %v2319
  %2836 = vmatpush1.bf16.msra.mxu0 %v2318
  %2837 = vmatprep.subr.bf16.mxu0 %v2317
  %2838 = vmatpush1.bf16.msra.mxu0 %v2316
  %2839 = vmatprep.subr.bf16.mxu0 %v2315
  %2840 = vmatpush1.bf16.msra.mxu0 %v2314
  %2841 = vmatprep.subr.bf16.mxu0 %v2313
  %2842 = vmatpush1.bf16.msra.mxu0 %v2312
  %2843 = vmatprep.subr.bf16.mxu0 0
  %2844 = vmatpush2.bf16.msra.mxu0 0
  %2845 = vmatprep.subr.bf16.mxu0 0
  %2846 = vmatpush2.bf16.msra.mxu0 0
  %2847 = vmatprep.subr.bf16.mxu0 0
  %2848 = vmatpush2.bf16.msra.mxu0 0
  %2849 = vmatprep.subr.bf16.mxu0 0
  %2850 = vmatpush2.bf16.msra.mxu0 0
  %2851 = vmatprep.subr.bf16.mxu0 0
  %2852 = vmatpush2.bf16.msra.mxu0 0
  %2853 = vmatprep.subr.bf16.mxu0 0
  %2854 = vmatpush2.bf16.msra.mxu0 0
  %2855 = vmatprep.subr.bf16.mxu0 0
  %2856 = vmatpush2.bf16.msra.mxu0 0
  %2857 = vmatprep.subr.bf16.mxu0 0
  %2858 = vmatpush2.bf16.msra.mxu0 0
  %2859 = vmatprep.mubr.bf16.mxu0 0
  %2860 = vmatmul.mubr.bf16.gmra.mxu0 %v1942
  %v2861 = vpop.f32.mrf.mxu0
  %v2862 = vadd.f32 0.0, %v2861
  %v2863 = vpop.f32.mrf.mxu0
  %v2864 = vadd.f32 0.0, %v2863
  %v2865 = vpop.f32.mrf.mxu0
  %v2866 = vadd.f32 0.0, %v2865
  %v2867 = vpop.f32.mrf.mxu0
  %v2868 = vadd.f32 0.0, %v2867
  %2869 = vmatprep.mubr.bf16.mxu0 0
  %2870 = vmatmul.mubr.bf16.gmra.mxu0 %v1943
  %v2871 = vpop.f32.mrf.mxu0
  %v2872 = vadd.f32 0.0, %v2871
  %v2873 = vpop.f32.mrf.mxu0
  %v2874 = vadd.f32 0.0, %v2873
  %v2875 = vpop.f32.mrf.mxu0
  %v2876 = vadd.f32 0.0, %v2875
  %v2877 = vpop.f32.mrf.mxu0
  %v2878 = vadd.f32 0.0, %v2877
  %2879 = vdwg.mxu0
  %v2880 = vadd.f32 %v2809, %v2862
  %v2881 = vadd.f32 %v2811, %v2864
  %v2882 = vadd.f32 %v2813, %v2866
  %v2883 = vadd.f32 %v2815, %v2868
  %v2884 = vadd.f32 %v2819, %v2872
  %v2885 = vadd.f32 %v2821, %v2874
  %v2886 = vadd.f32 %v2823, %v2876
  %v2887 = vadd.f32 %v2825, %v2878
  %2888 = vmatprep.subr.bf16.mxu0 %v2485
  %2889 = vmatpush1.bf16.msra.mxu0 %v2484
  %2890 = vmatprep.subr.bf16.mxu0 %v2483
  %2891 = vmatpush1.bf16.msra.mxu0 %v2482
  %2892 = vmatprep.subr.bf16.mxu0 %v2481
  %2893 = vmatpush1.bf16.msra.mxu0 %v2480
  %2894 = vmatprep.subr.bf16.mxu0 %v2479
  %2895 = vmatpush1.bf16.msra.mxu0 %v2478
  %2896 = vmatprep.subr.bf16.mxu0 %v2477
  %2897 = vmatpush1.bf16.msra.mxu0 %v2476
  %2898 = vmatprep.subr.bf16.mxu0 %v2475
  %2899 = vmatpush1.bf16.msra.mxu0 %v2474
  %2900 = vmatprep.subr.bf16.mxu0 %v2473
  %2901 = vmatpush1.bf16.msra.mxu0 %v2472
  %2902 = vmatprep.subr.bf16.mxu0 %v2471
  %2903 = vmatpush1.bf16.msra.mxu0 %v2470
  %2904 = vmatprep.subr.bf16.mxu0 0
  %2905 = vmatpush2.bf16.msra.mxu0 0
  %2906 = vmatprep.subr.bf16.mxu0 0
  %2907 = vmatpush2.bf16.msra.mxu0 0
  %2908 = vmatprep.subr.bf16.mxu0 0
  %2909 = vmatpush2.bf16.msra.mxu0 0
  %2910 = vmatprep.subr.bf16.mxu0 0
  %2911 = vmatpush2.bf16.msra.mxu0 0
  %2912 = vmatprep.subr.bf16.mxu0 0
  %2913 = vmatpush2.bf16.msra.mxu0 0
  %2914 = vmatprep.subr.bf16.mxu0 0
  %2915 = vmatpush2.bf16.msra.mxu0 0
  %2916 = vmatprep.subr.bf16.mxu0 0
  %2917 = vmatpush2.bf16.msra.mxu0 0
  %2918 = vmatprep.subr.bf16.mxu0 0
  %2919 = vmatpush2.bf16.msra.mxu0 0
  %2920 = vmatprep.mubr.bf16.mxu0 0
  %2921 = vmatmul.mubr.bf16.gmra.mxu0 %v1931
  %v2922 = vpop.f32.mrf.mxu0
  %v2923 = vadd.f32 0.0, %v2922
  %v2924 = vpop.f32.mrf.mxu0
  %v2925 = vadd.f32 0.0, %v2924
  %v2926 = vpop.f32.mrf.mxu0
  %v2927 = vadd.f32 0.0, %v2926
  %v2928 = vpop.f32.mrf.mxu0
  %v2929 = vadd.f32 0.0, %v2928
  %2930 = vmatprep.mubr.bf16.mxu0 0
  %2931 = vmatmul.mubr.bf16.gmra.mxu0 %v1945
  %v2932 = vpop.f32.mrf.mxu0
  %v2933 = vadd.f32 0.0, %v2932
  %v2934 = vpop.f32.mrf.mxu0
  %v2935 = vadd.f32 0.0, %v2934
  %v2936 = vpop.f32.mrf.mxu0
  %v2937 = vadd.f32 0.0, %v2936
  %v2938 = vpop.f32.mrf.mxu0
  %v2939 = vadd.f32 0.0, %v2938
  %2940 = vdwg.mxu0
  %v2941 = vadd.f32 %v2880, %v2923
  %v2942 = vadd.f32 %v2881, %v2925
  %v2943 = vadd.f32 %v2882, %v2927
  %v2944 = vadd.f32 %v2883, %v2929
  %v2945 = vadd.f32 %v2884, %v2933
  %v2946 = vadd.f32 %v2885, %v2935
  %v2947 = vadd.f32 %v2886, %v2937
  %v2948 = vadd.f32 %v2887, %v2939
  %2949 = vmatprep.subr.bf16.mxu0 %v2643
  %2950 = vmatpush1.bf16.msra.mxu0 %v2642
  %2951 = vmatprep.subr.bf16.mxu0 %v2641
  %2952 = vmatpush1.bf16.msra.mxu0 %v2640
  %2953 = vmatprep.subr.bf16.mxu0 %v2639
  %2954 = vmatpush1.bf16.msra.mxu0 %v2638
  %2955 = vmatprep.subr.bf16.mxu0 %v2637
  %2956 = vmatpush1.bf16.msra.mxu0 %v2636
  %2957 = vmatprep.subr.bf16.mxu0 %v2635
  %2958 = vmatpush1.bf16.msra.mxu0 %v2634
  %2959 = vmatprep.subr.bf16.mxu0 %v2633
  %2960 = vmatpush1.bf16.msra.mxu0 %v2632
  %2961 = vmatprep.subr.bf16.mxu0 %v2631
  %2962 = vmatpush1.bf16.msra.mxu0 %v2630
  %2963 = vmatprep.subr.bf16.mxu0 %v2629
  %2964 = vmatpush1.bf16.msra.mxu0 %v2628
  %2965 = vmatprep.subr.bf16.mxu0 0
  %2966 = vmatpush2.bf16.msra.mxu0 0
  %2967 = vmatprep.subr.bf16.mxu0 0
  %2968 = vmatpush2.bf16.msra.mxu0 0
  %2969 = vmatprep.subr.bf16.mxu0 0
  %2970 = vmatpush2.bf16.msra.mxu0 0
  %2971 = vmatprep.subr.bf16.mxu0 0
  %2972 = vmatpush2.bf16.msra.mxu0 0
  %2973 = vmatprep.subr.bf16.mxu0 0
  %2974 = vmatpush2.bf16.msra.mxu0 0
  %2975 = vmatprep.subr.bf16.mxu0 0
  %2976 = vmatpush2.bf16.msra.mxu0 0
  %2977 = vmatprep.subr.bf16.mxu0 0
  %2978 = vmatpush2.bf16.msra.mxu0 0
  %2979 = vmatprep.subr.bf16.mxu0 0
  %2980 = vmatpush2.bf16.msra.mxu0 0
  %2981 = vmatprep.mubr.bf16.mxu0 0
  %2982 = vmatmul.mubr.bf16.gmra.mxu0 %v1937
  %v2983 = vpop.f32.mrf.mxu0
  %v2984 = vadd.f32 0.0, %v2983
  %v2985 = vpop.f32.mrf.mxu0
  %v2986 = vadd.f32 0.0, %v2985
  %v2987 = vpop.f32.mrf.mxu0
  %v2988 = vadd.f32 0.0, %v2987
  %v2989 = vpop.f32.mrf.mxu0
  %v2990 = vadd.f32 0.0, %v2989
  %2991 = vmatprep.mubr.bf16.mxu0 0
  %2992 = vmatmul.mubr.bf16.gmra.mxu0 %v1947
  %v2993 = vpop.f32.mrf.mxu0
  %v2994 = vadd.f32 0.0, %v2993
  %v2995 = vpop.f32.mrf.mxu0
  %v2996 = vadd.f32 0.0, %v2995
  %v2997 = vpop.f32.mrf.mxu0
  %v2998 = vadd.f32 0.0, %v2997
  %v2999 = vpop.f32.mrf.mxu0
  %v3000 = vadd.f32 0.0, %v2999
  %3001 = vdwg.mxu0
  %v3002 = vadd.f32 %v2941, %v2984
  %v3003 = vadd.f32 %v2942, %v2986
  %v3004 = vadd.f32 %v2943, %v2988
  %v3005 = vadd.f32 %v2944, %v2990
  %v3006 = vadd.f32 %v2945, %v2994
  %v3007 = vadd.f32 %v2946, %v2996
  %v3008 = vadd.f32 %v2947, %v2998
  %v3009 = vadd.f32 %v2948, %v3000
  %v3010 = vmax.f32 %v2713, %v3002
  %v3011 = vmax.f32 %v2714, %v3003
  %v3012 = vmax.f32 %v2715, %v3004
  %v3013 = vmax.f32 %v2716, %v3005
  %v3014 = vmax.f32 %v2717, %v3006
  %v3015 = vmax.f32 %v2718, %v3007
  %v3016 = vmax.f32 %v2719, %v3008
  %v3017 = vmax.f32 %v2720, %v3009
  %v3018 = vmax.f32 %v3010, %v3011
  %v3019 = vmax.f32 %v3012, %v3013
  %v3020 = vmax.f32 %v3014, %v3015
  %v3021 = vmax.f32 %v3016, %v3017
  %v3022 = vld [vmem:[%s4] sm:$0x1]
  %v3024 = vlaneseq
  %v3025 = vshrl.u32 %v3024, 7
  %v3026 = vsub.s32 0, %v3025
  %v3027 = vrot.slane %v3022, %v3026
  %v3029 = vadd.f32 %v3018, %v3027
  %v3030 = vadd.f32 %v3019, %v3027
  %v3031 = vadd.f32 %v3020, %v3027
  %v3032 = vadd.f32 %v3021, %v3027
  %v3033 = vmax.f32 %v3029, 0.0
  %v3034 = vmax.f32 %v3030, 0.0
  %v3035 = vmax.f32 %v3031, 0.0
  %v3036 = vmax.f32 %v3032, 0.0
  %3037 = vst [vmem:[#allocation3] sm:$0xff] %v3033
  %3038 = vst [vmem:[#allocation3 + $0x8] sm:$0xff] %v3034
  %3039 = vst [vmem:[#allocation3 + $0x10] sm:$0xff] %v3035
  %3040 = vst [vmem:[#allocation3 + $0x18] sm:$0xff] %v3036
  %v3041 = vld [vmem:[#allocation3] sm:$0xff]
  %v3042 = vld [vmem:[#allocation3 + $0x8] sm:$0xff]
  %v3043 = vld [vmem:[#allocation3 + $0x10] sm:$0xff]
  %v3044 = vld [vmem:[#allocation3 + $0x18] sm:$0xff]
  %v3045 = vpack.c.bf16 %v3041, %v3041
  %v3046 = vpack.c.bf16 %v3042, %v3042
  %v3047 = vpack.c.bf16 %v3043, %v3043
  %v3048 = vpack.c.bf16 %v3044, %v3044
  %v3049 = vld [vmem:[%s5] sm:$0xf]
  %v3050 = vld [vmem:[%s5 + $0x4] sm:$0xf]
  %v3051 = vld [vmem:[%s5 + $0x8] sm:$0xf]
  %v3052 = vld [vmem:[%s5 + $0xc] sm:$0xf]
  %v3053 = vld [vmem:[%s5 + $0x10] sm:$0xf]
  %v3054 = vld [vmem:[%s5 + $0x14] sm:$0xf]
  %v3055 = vld [vmem:[%s5 + $0x18] sm:$0xf]
  %v3056 = vld [vmem:[%s5 + $0x1c] sm:$0xf]
  %v3057 = vld [vmem:[%s5 + $0x20] sm:$0xf]
  %v3058 = vld [vmem:[%s5 + $0x24] sm:$0xf]
  %v3059 = vld [vmem:[%s5 + $0x28] sm:$0xf]
  %v3060 = vld [vmem:[%s5 + $0x2c] sm:$0xf]
  %v3061 = vld [vmem:[%s5 + $0x30] sm:$0xf]
  %v3062 = vld [vmem:[%s5 + $0x34] sm:$0xf]
  %v3063 = vld [vmem:[%s5 + $0x38] sm:$0xf]
  %v3064 = vld [vmem:[%s5 + $0x3c] sm:$0xf]
  %v3065 = vld [vmem:[%s5 + $0x40] sm:$0xf]
  %v3066 = vld [vmem:[%s5 + $0x44] sm:$0xf]
  %v3067 = vld [vmem:[%s5 + $0x48] sm:$0xf]
  %v3068 = vld [vmem:[%s5 + $0x4c] sm:$0xf]
  %v3069 = vld [vmem:[%s5 + $0x50] sm:$0xf]
  %v3070 = vld [vmem:[%s5 + $0x54] sm:$0xf]
  %v3071 = vld [vmem:[%s5 + $0x58] sm:$0xf]
  %v3072 = vld [vmem:[%s5 + $0x5c] sm:$0xf]
  %v3073 = vld [vmem:[%s5 + $0x60] sm:$0xf]
  %v3074 = vld [vmem:[%s5 + $0x64] sm:$0xf]
  %v3075 = vld [vmem:[%s5 + $0x68] sm:$0xf]
  %v3076 = vld [vmem:[%s5 + $0x6c] sm:$0xf]
  %v3077 = vld [vmem:[%s5 + $0x70] sm:$0xf]
  %v3078 = vld [vmem:[%s5 + $0x74] sm:$0xf]
  %v3079 = vld [vmem:[%s5 + $0x78] sm:$0xf]
  %v3080 = vld [vmem:[%s5 + $0x7c] sm:$0xf]
  %v3081 = vld [vmem:[%s5 + $0x80] sm:$0xf]
  %v3082 = vld [vmem:[%s5 + $0x84] sm:$0xf]
  %v3083 = vld [vmem:[%s5 + $0x88] sm:$0xf]
  %v3084 = vld [vmem:[%s5 + $0x8c] sm:$0xf]
  %v3085 = vld [vmem:[%s5 + $0x90] sm:$0xf]
  %v3086 = vld [vmem:[%s5 + $0x94] sm:$0xf]
  %v3087 = vld [vmem:[%s5 + $0x98] sm:$0xf]
  %v3088 = vld [vmem:[%s5 + $0x9c] sm:$0xf]
  %v3089 = vld [vmem:[%s5 + $0xa0] sm:$0xf]
  %v3090 = vld [vmem:[%s5 + $0xa4] sm:$0xf]
  %v3091 = vld [vmem:[%s5 + $0xa8] sm:$0xf]
  %v3092 = vld [vmem:[%s5 + $0xac] sm:$0xf]
  %v3093 = vld [vmem:[%s5 + $0xb0] sm:$0xf]
  %v3094 = vld [vmem:[%s5 + $0xb4] sm:$0xf]
  %v3095 = vld [vmem:[%s5 + $0xb8] sm:$0xf]
  %v3096 = vld [vmem:[%s5 + $0xbc] sm:$0xf]
  %v3097 = vld [vmem:[%s5 + $0xc0] sm:$0xf]
  %v3098 = vld [vmem:[%s5 + $0xc4] sm:$0xf]
  %v3099 = vld [vmem:[%s5 + $0xc8] sm:$0xf]
  %v3100 = vld [vmem:[%s5 + $0xcc] sm:$0xf]
  %v3101 = vld [vmem:[%s5 + $0xd0] sm:$0xf]
  %v3102 = vld [vmem:[%s5 + $0xd4] sm:$0xf]
  %v3103 = vld [vmem:[%s5 + $0xd8] sm:$0xf]
  %v3104 = vld [vmem:[%s5 + $0xdc] sm:$0xf]
  %v3105 = vld [vmem:[%s5 + $0xe0] sm:$0xf]
  %v3106 = vld [vmem:[%s5 + $0xe4] sm:$0xf]
  %v3107 = vld [vmem:[%s5 + $0xe8] sm:$0xf]
  %v3108 = vld [vmem:[%s5 + $0xec] sm:$0xf]
  %v3109 = vld [vmem:[%s5 + $0xf0] sm:$0xf]
  %v3110 = vld [vmem:[%s5 + $0xf4] sm:$0xf]
  %v3111 = vld [vmem:[%s5 + $0xf8] sm:$0xf]
  %v3112 = vld [vmem:[%s5 + $0xfc] sm:$0xf]
  %v3113 = vld [vmem:[%s6] sm:$0x1]
  %v3115 = vlaneseq
  %v3116 = vshrl.u32 %v3115, 7
  %v3117 = vsub.s32 0, %v3116
  %v3118 = vrot.slane %v3113, %v3117
  %v3184 = vunpack.c.l.b16 %v3049
  %v3185 = vunpack.c.l.b16 %v3050
  %v3186 = vunpack.c.l.b16 %v3051
  %v3187 = vunpack.c.l.b16 %v3052
  %v3188 = vunpack.c.l.b16 %v3053
  %v3189 = vunpack.c.l.b16 %v3054
  %v3190 = vunpack.c.l.b16 %v3055
  %v3191 = vunpack.c.l.b16 %v3056
  %v3192 = vunpack.c.l.b16 %v3057
  %v3193 = vunpack.c.l.b16 %v3058
  %v3194 = vunpack.c.l.b16 %v3059
  %v3195 = vunpack.c.l.b16 %v3060
  %v3196 = vunpack.c.l.b16 %v3061
  %v3197 = vunpack.c.l.b16 %v3062
  %v3198 = vunpack.c.l.b16 %v3063
  %v3199 = vunpack.c.l.b16 %v3064
  %v3200 = vunpack.c.l.b16 %v3065
  %v3201 = vunpack.c.l.b16 %v3066
  %v3202 = vunpack.c.l.b16 %v3067
  %v3203 = vunpack.c.l.b16 %v3068
  %v3204 = vunpack.c.l.b16 %v3069
  %v3205 = vunpack.c.l.b16 %v3070
  %v3206 = vunpack.c.l.b16 %v3071
  %v3207 = vunpack.c.l.b16 %v3072
  %v3208 = vunpack.c.l.b16 %v3073
  %v3209 = vunpack.c.l.b16 %v3074
  %v3210 = vunpack.c.l.b16 %v3075
  %v3211 = vunpack.c.l.b16 %v3076
  %v3212 = vunpack.c.l.b16 %v3077
  %v3213 = vunpack.c.l.b16 %v3078
  %v3214 = vunpack.c.l.b16 %v3079
  %v3215 = vunpack.c.l.b16 %v3080
  %v3216 = vunpack.c.l.b16 %v3081
  %v3217 = vunpack.c.l.b16 %v3082
  %v3218 = vunpack.c.l.b16 %v3083
  %v3219 = vunpack.c.l.b16 %v3084
  %v3220 = vunpack.c.l.b16 %v3085
  %v3221 = vunpack.c.l.b16 %v3086
  %v3222 = vunpack.c.l.b16 %v3087
  %v3223 = vunpack.c.l.b16 %v3088
  %v3224 = vunpack.c.l.b16 %v3089
  %v3225 = vunpack.c.l.b16 %v3090
  %v3226 = vunpack.c.l.b16 %v3091
  %v3227 = vunpack.c.l.b16 %v3092
  %v3228 = vunpack.c.l.b16 %v3093
  %v3229 = vunpack.c.l.b16 %v3094
  %v3230 = vunpack.c.l.b16 %v3095
  %v3231 = vunpack.c.l.b16 %v3096
  %v3232 = vunpack.c.l.b16 %v3097
  %v3233 = vunpack.c.l.b16 %v3098
  %v3234 = vunpack.c.l.b16 %v3099
  %v3235 = vunpack.c.l.b16 %v3100
  %v3236 = vunpack.c.l.b16 %v3101
  %v3237 = vunpack.c.l.b16 %v3102
  %v3238 = vunpack.c.l.b16 %v3103
  %v3239 = vunpack.c.l.b16 %v3104
  %v3240 = vunpack.c.l.b16 %v3105
  %v3241 = vunpack.c.l.b16 %v3106
  %v3242 = vunpack.c.l.b16 %v3107
  %v3243 = vunpack.c.l.b16 %v3108
  %v3244 = vunpack.c.l.b16 %v3109
  %v3245 = vunpack.c.l.b16 %v3110
  %v3246 = vunpack.c.l.b16 %v3111
  %v3247 = vunpack.c.l.b16 %v3112
  %v3248 = vpack.c.b16 %v3185, %v3184
  %v3249 = vpack.c.b16 %v3187, %v3186
  %v3250 = vpack.c.b16 %v3189, %v3188
  %v3251 = vpack.c.b16 %v3191, %v3190
  %v3252 = vpack.c.b16 %v3193, %v3192
  %v3253 = vpack.c.b16 %v3195, %v3194
  %v3254 = vpack.c.b16 %v3197, %v3196
  %v3255 = vpack.c.b16 %v3199, %v3198
  %v3256 = vpack.c.b16 %v3201, %v3200
  %v3257 = vpack.c.b16 %v3203, %v3202
  %v3258 = vpack.c.b16 %v3205, %v3204
  %v3259 = vpack.c.b16 %v3207, %v3206
  %v3260 = vpack.c.b16 %v3209, %v3208
  %v3261 = vpack.c.b16 %v3211, %v3210
  %v3262 = vpack.c.b16 %v3213, %v3212
  %v3263 = vpack.c.b16 %v3215, %v3214
  %v3264 = vpack.c.b16 %v3217, %v3216
  %v3265 = vpack.c.b16 %v3219, %v3218
  %v3266 = vpack.c.b16 %v3221, %v3220
  %v3267 = vpack.c.b16 %v3223, %v3222
  %v3268 = vpack.c.b16 %v3225, %v3224
  %v3269 = vpack.c.b16 %v3227, %v3226
  %v3270 = vpack.c.b16 %v3229, %v3228
  %v3271 = vpack.c.b16 %v3231, %v3230
  %v3272 = vpack.c.b16 %v3233, %v3232
  %v3273 = vpack.c.b16 %v3235, %v3234
  %v3274 = vpack.c.b16 %v3237, %v3236
  %v3275 = vpack.c.b16 %v3239, %v3238
  %v3276 = vpack.c.b16 %v3241, %v3240
  %v3277 = vpack.c.b16 %v3243, %v3242
  %v3278 = vpack.c.b16 %v3245, %v3244
  %v3279 = vpack.c.b16 %v3247, %v3246
  %3312 = vmatprep.subr.bf16.mxu0 0
  %3313 = vmatpush1.bf16.msra.mxu0 %v3255
  %3314 = vmatprep.subr.bf16.mxu0 0
  %3315 = vmatpush1.bf16.msra.mxu0 %v3254
  %3316 = vmatprep.subr.bf16.mxu0 0
  %3317 = vmatpush1.bf16.msra.mxu0 %v3253
  %3318 = vmatprep.subr.bf16.mxu0 0
  %3319 = vmatpush1.bf16.msra.mxu0 %v3252
  %3320 = vmatprep.subr.bf16.mxu0 0
  %3321 = vmatpush1.bf16.msra.mxu0 %v3251
  %3322 = vmatprep.subr.bf16.mxu0 0
  %3323 = vmatpush1.bf16.msra.mxu0 %v3250
  %3324 = vmatprep.subr.bf16.mxu0 0
  %3325 = vmatpush1.bf16.msra.mxu0 %v3249
  %3326 = vmatprep.subr.bf16.mxu0 0
  %3327 = vmatpush1.bf16.msra.mxu0 %v3248
  %3328 = vmatprep.subr.bf16.mxu0 0
  %3329 = vmatpush2.bf16.msra.mxu0 %v3263
  %3330 = vmatprep.subr.bf16.mxu0 0
  %3331 = vmatpush2.bf16.msra.mxu0 %v3262
  %3332 = vmatprep.subr.bf16.mxu0 0
  %3333 = vmatpush2.bf16.msra.mxu0 %v3261
  %3334 = vmatprep.subr.bf16.mxu0 0
  %3335 = vmatpush2.bf16.msra.mxu0 %v3260
  %3336 = vmatprep.subr.bf16.mxu0 0
  %3337 = vmatpush2.bf16.msra.mxu0 %v3259
  %3338 = vmatprep.subr.bf16.mxu0 0
  %3339 = vmatpush2.bf16.msra.mxu0 %v3258
  %3340 = vmatprep.subr.bf16.mxu0 0
  %3341 = vmatpush2.bf16.msra.mxu0 %v3257
  %3342 = vmatprep.subr.bf16.mxu0 0
  %3343 = vmatpush2.bf16.msra.mxu0 %v3256
  %3344 = vmatprep.mubr.bf16.mxu0 %v3046
  %3345 = vmatmul.mubr.bf16.gmra.mxu0 %v3045
  %v3346 = vpop.f32.mrf.mxu0
  %v3347 = vadd.f32 %v3118, %v3346
  %v3348 = vpop.f32.mrf.mxu0
  %v3349 = vpop.f32.mrf.mxu0
  %v3350 = vpop.f32.mrf.mxu0
  %3351 = vdwg.mxu0
  %3352 = vmatprep.subr.bf16.mxu0 0
  %3353 = vmatpush1.bf16.msra.mxu0 %v3271
  %3354 = vmatprep.subr.bf16.mxu0 0
  %3355 = vmatpush1.bf16.msra.mxu0 %v3270
  %3356 = vmatprep.subr.bf16.mxu0 0
  %3357 = vmatpush1.bf16.msra.mxu0 %v3269
  %3358 = vmatprep.subr.bf16.mxu0 0
  %3359 = vmatpush1.bf16.msra.mxu0 %v3268
  %3360 = vmatprep.subr.bf16.mxu0 0
  %3361 = vmatpush1.bf16.msra.mxu0 %v3267
  %3362 = vmatprep.subr.bf16.mxu0 0
  %3363 = vmatpush1.bf16.msra.mxu0 %v3266
  %3364 = vmatprep.subr.bf16.mxu0 0
  %3365 = vmatpush1.bf16.msra.mxu0 %v3265
  %3366 = vmatprep.subr.bf16.mxu0 0
  %3367 = vmatpush1.bf16.msra.mxu0 %v3264
  %3368 = vmatprep.subr.bf16.mxu0 0
  %3369 = vmatpush2.bf16.msra.mxu0 %v3279
  %3370 = vmatprep.subr.bf16.mxu0 0
  %3371 = vmatpush2.bf16.msra.mxu0 %v3278
  %3372 = vmatprep.subr.bf16.mxu0 0
  %3373 = vmatpush2.bf16.msra.mxu0 %v3277
  %3374 = vmatprep.subr.bf16.mxu0 0
  %3375 = vmatpush2.bf16.msra.mxu0 %v3276
  %3376 = vmatprep.subr.bf16.mxu0 0
  %3377 = vmatpush2.bf16.msra.mxu0 %v3275
  %3378 = vmatprep.subr.bf16.mxu0 0
  %3379 = vmatpush2.bf16.msra.mxu0 %v3274
  %3380 = vmatprep.subr.bf16.mxu0 0
  %3381 = vmatpush2.bf16.msra.mxu0 %v3273
  %3382 = vmatprep.subr.bf16.mxu0 0
  %3383 = vmatpush2.bf16.msra.mxu0 %v3272
  %3384 = vmatprep.mubr.bf16.mxu0 %v3048
  %3385 = vmatmul.mubr.bf16.gmra.mxu0 %v3047
  %v3386 = vpop.f32.mrf.mxu0
  %v3387 = vadd.f32 %v3347, %v3386
  %v3388 = vpop.f32.mrf.mxu0
  %v3389 = vpop.f32.mrf.mxu0
  %v3390 = vpop.f32.mrf.mxu0
  %3391 = vdwg.mxu0
  %v3392 = vmax.f32 %v3387, 0.0
  %v3393 = vpack.c.bf16 %v3392, %v3392
  %v3394 = vld [vmem:[%s7] sm:$0xf]
  %v3395 = vld [vmem:[%s7 + $0x4] sm:$0xf]
  %v3396 = vld [vmem:[%s7 + $0x8] sm:$0xf]
  %v3397 = vld [vmem:[%s7 + $0xc] sm:$0xf]
  %v3398 = vld [vmem:[%s7 + $0x10] sm:$0xf]
  %v3399 = vld [vmem:[%s7 + $0x14] sm:$0xf]
  %v3400 = vld [vmem:[%s7 + $0x18] sm:$0xf]
  %v3401 = vld [vmem:[%s7 + $0x1c] sm:$0xf]
  %v3402 = vld [vmem:[%s7 + $0x20] sm:$0xf]
  %v3403 = vld [vmem:[%s7 + $0x24] sm:$0xf]
  %v3404 = vld [vmem:[%s7 + $0x28] sm:$0xf]
  %v3405 = vld [vmem:[%s7 + $0x2c] sm:$0xf]
  %v3406 = vld [vmem:[%s7 + $0x30] sm:$0xf]
  %v3407 = vld [vmem:[%s7 + $0x34] sm:$0xf]
  %v3408 = vld [vmem:[%s7 + $0x38] sm:$0xf]
  %v3409 = vld [vmem:[%s7 + $0x3c] sm:$0xf]
  %v3410 = vld [vmem:[%s8] sm:$0x1]
  %v3412 = vlaneseq
  %v3413 = vshrl.u32 %v3412, 7
  %v3414 = vsub.s32 0, %v3413
  %v3415 = vrot.slane %v3410, %v3414
  %v3433 = vunpack.c.l.b16 %v3394
  %v3434 = vunpack.c.l.b16 %v3395
  %v3435 = vunpack.c.l.b16 %v3396
  %v3436 = vunpack.c.l.b16 %v3397
  %v3437 = vunpack.c.l.b16 %v3398
  %v3438 = vunpack.c.l.b16 %v3399
  %v3439 = vunpack.c.l.b16 %v3400
  %v3440 = vunpack.c.l.b16 %v3401
  %v3441 = vunpack.c.l.b16 %v3402
  %v3442 = vunpack.c.l.b16 %v3403
  %v3443 = vunpack.c.l.b16 %v3404
  %v3444 = vunpack.c.l.b16 %v3405
  %v3445 = vunpack.c.l.b16 %v3406
  %v3446 = vunpack.c.l.b16 %v3407
  %v3447 = vunpack.c.l.b16 %v3408
  %v3448 = vunpack.c.l.b16 %v3409
  %v3449 = vpack.c.b16 %v3434, %v3433
  %v3450 = vpack.c.b16 %v3436, %v3435
  %v3451 = vpack.c.b16 %v3438, %v3437
  %v3452 = vpack.c.b16 %v3440, %v3439
  %v3453 = vpack.c.b16 %v3442, %v3441
  %v3454 = vpack.c.b16 %v3444, %v3443
  %v3455 = vpack.c.b16 %v3446, %v3445
  %v3456 = vpack.c.b16 %v3448, %v3447
  %3465 = vmatprep.subr.bf16.mxu0 0
  %3466 = vmatpush1.bf16.msra.mxu0 %v3456
  %3467 = vmatprep.subr.bf16.mxu0 0
  %3468 = vmatpush1.bf16.msra.mxu0 %v3455
  %3469 = vmatprep.subr.bf16.mxu0 0
  %3470 = vmatpush1.bf16.msra.mxu0 %v3454
  %3471 = vmatprep.subr.bf16.mxu0 0
  %3472 = vmatpush1.bf16.msra.mxu0 %v3453
  %3473 = vmatprep.subr.bf16.mxu0 0
  %3474 = vmatpush1.bf16.msra.mxu0 %v3452
  %3475 = vmatprep.subr.bf16.mxu0 0
  %3476 = vmatpush1.bf16.msra.mxu0 %v3451
  %3477 = vmatprep.subr.bf16.mxu0 0
  %3478 = vmatpush1.bf16.msra.mxu0 %v3450
  %3479 = vmatprep.subr.bf16.mxu0 0
  %3480 = vmatpush1.bf16.msra.mxu0 %v3449
  %3481 = vmatprep.subr.bf16.mxu0 0
  %3482 = vmatpush2.bf16.msra.mxu0 0
  %3483 = vmatprep.subr.bf16.mxu0 0
  %3484 = vmatpush2.bf16.msra.mxu0 0
  %3485 = vmatprep.subr.bf16.mxu0 0
  %3486 = vmatpush2.bf16.msra.mxu0 0
  %3487 = vmatprep.subr.bf16.mxu0 0
  %3488 = vmatpush2.bf16.msra.mxu0 0
  %3489 = vmatprep.subr.bf16.mxu0 0
  %3490 = vmatpush2.bf16.msra.mxu0 0
  %3491 = vmatprep.subr.bf16.mxu0 0
  %3492 = vmatpush2.bf16.msra.mxu0 0
  %3493 = vmatprep.subr.bf16.mxu0 0
  %3494 = vmatpush2.bf16.msra.mxu0 0
  %3495 = vmatprep.subr.bf16.mxu0 0
  %3496 = vmatpush2.bf16.msra.mxu0 0
  %3497 = vmatprep.mubr.bf16.mxu0 0
  %3498 = vmatmul.mubr.bf16.gmra.mxu0 %v3393
  %v3499 = vpop.f32.mrf.mxu0
  %v3500 = vadd.f32 %v3415, %v3499
  %v3501 = vpop.f32.mrf.mxu0
  %v3502 = vpop.f32.mrf.mxu0
  %v3503 = vpop.f32.mrf.mxu0
  %3504 = vdwg.mxu0
  %v3505 = vmax.f32 %v3500, 0.0
  %v3506 = vpack.c.bf16 %v3505, %v3505
  %v3507 = vld [vmem:[%s9] sm:$0xf]
  %v3508 = vld [vmem:[%s9 + $0x4] sm:$0xf]
  %v3509 = vld [vmem:[%s9 + $0x8] sm:$0xf]
  %v3510 = vld [vmem:[%s9 + $0xc] sm:$0xf]
  %v3511 = vld [vmem:[%s9 + $0x10] sm:$0xf]
  %v3512 = vld [vmem:[%s9 + $0x14] sm:$0xf]
  %v3513 = vld [vmem:[%s9 + $0x18] sm:$0xf]
  %v3514 = vld [vmem:[%s9 + $0x1c] sm:$0xf]
  %v3515 = vld [vmem:[%s9 + $0x20] sm:$0xf]
  %v3516 = vld [vmem:[%s9 + $0x24] sm:$0xf]
  %v3517 = vld [vmem:[%s9 + $0x28] sm:$0xf]
  %v3518 = vld [vmem:[%s9 + $0x2c] sm:$0xf]
  %v3519 = vld [vmem:[%s9 + $0x30] sm:$0xf]
  %v3520 = vld [vmem:[%s9 + $0x34] sm:$0xf]
  %v3521 = vld [vmem:[%s9 + $0x38] sm:$0xf]
  %v3522 = vld [vmem:[%s9 + $0x3c] sm:$0xf]
  %v3523 = vld [vmem:[%s10] sm:$0x1]
  %v3525 = vlaneseq
  %v3526 = vshrl.u32 %v3525, 7
  %v3527 = vsub.s32 0, %v3526
  %v3528 = vrot.slane %v3523, %v3527
  %v3546 = vunpack.c.l.b16 %v3507
  %v3547 = vunpack.c.l.b16 %v3508
  %v3548 = vunpack.c.l.b16 %v3509
  %v3549 = vunpack.c.l.b16 %v3510
  %v3550 = vunpack.c.l.b16 %v3511
  %v3551 = vunpack.c.l.b16 %v3512
  %v3552 = vunpack.c.l.b16 %v3513
  %v3553 = vunpack.c.l.b16 %v3514
  %v3554 = vunpack.c.l.b16 %v3515
  %v3555 = vunpack.c.l.b16 %v3516
  %v3556 = vunpack.c.l.b16 %v3517
  %v3557 = vunpack.c.l.b16 %v3518
  %v3558 = vunpack.c.l.b16 %v3519
  %v3559 = vunpack.c.l.b16 %v3520
  %v3560 = vunpack.c.l.b16 %v3521
  %v3561 = vunpack.c.l.b16 %v3522
  %v3562 = vpack.c.b16 %v3547, %v3546
  %v3563 = vpack.c.b16 %v3549, %v3548
  %v3564 = vpack.c.b16 %v3551, %v3550
  %v3565 = vpack.c.b16 %v3553, %v3552
  %v3566 = vpack.c.b16 %v3555, %v3554
  %v3567 = vpack.c.b16 %v3557, %v3556
  %v3568 = vpack.c.b16 %v3559, %v3558
  %v3569 = vpack.c.b16 %v3561, %v3560
  %3578 = vmatprep.subr.bf16.mxu0 0
  %3579 = vmatpush1.bf16.msra.mxu0 %v3569
  %3580 = vmatprep.subr.bf16.mxu0 0
  %3581 = vmatpush1.bf16.msra.mxu0 %v3568
  %3582 = vmatprep.subr.bf16.mxu0 0
  %3583 = vmatpush1.bf16.msra.mxu0 %v3567
  %3584 = vmatprep.subr.bf16.mxu0 0
  %3585 = vmatpush1.bf16.msra.mxu0 %v3566
  %3586 = vmatprep.subr.bf16.mxu0 0
  %3587 = vmatpush1.bf16.msra.mxu0 %v3565
  %3588 = vmatprep.subr.bf16.mxu0 0
  %3589 = vmatpush1.bf16.msra.mxu0 %v3564
  %3590 = vmatprep.subr.bf16.mxu0 0
  %3591 = vmatpush1.bf16.msra.mxu0 %v3563
  %3592 = vmatprep.subr.bf16.mxu0 0
  %3593 = vmatpush1.bf16.msra.mxu0 %v3562
  %3594 = vmatprep.subr.bf16.mxu0 0
  %3595 = vmatpush2.bf16.msra.mxu0 0
  %3596 = vmatprep.subr.bf16.mxu0 0
  %3597 = vmatpush2.bf16.msra.mxu0 0
  %3598 = vmatprep.subr.bf16.mxu0 0
  %3599 = vmatpush2.bf16.msra.mxu0 0
  %3600 = vmatprep.subr.bf16.mxu0 0
  %3601 = vmatpush2.bf16.msra.mxu0 0
  %3602 = vmatprep.subr.bf16.mxu0 0
  %3603 = vmatpush2.bf16.msra.mxu0 0
  %3604 = vmatprep.subr.bf16.mxu0 0
  %3605 = vmatpush2.bf16.msra.mxu0 0
  %3606 = vmatprep.subr.bf16.mxu0 0
  %3607 = vmatpush2.bf16.msra.mxu0 0
  %3608 = vmatprep.subr.bf16.mxu0 0
  %3609 = vmatpush2.bf16.msra.mxu0 0
  %3610 = vmatprep.mubr.bf16.mxu0 0
  %3611 = vmatmul.mubr.bf16.gmra.mxu0 %v3506
  %v3612 = vpop.f32.mrf.mxu0
  %v3613 = vadd.f32 %v3528, %v3612
  %v3614 = vpop.f32.mrf.mxu0
  %v3615 = vpop.f32.mrf.mxu0
  %v3616 = vpop.f32.mrf.mxu0
  %3617 = vdwg.mxu0
  %v3618 = vmax.f32 %v3613, 0.0
  %3619 = vst [vmem:[%s11] sm:$0xff] %v3618
  // Predicated region
  $region46: #{lenet_forward.1} parent=0 // pred_check
    _
  $region47: #{lenet_forward.1} parent=0 // pred_check_branch
    %3621 = sbr.rel (0) target = $region49
  $region48: #{lenet_forward.1} parent=0 // pred_region
    _
  $region49: #{lenet_forward.1} parent=0 // pred_fallthru
    _
  // Predicated region
  $region50: #{lenet_forward.1} parent=0 // pred_check
    _
  $region51: #{lenet_forward.1} parent=0 // pred_check_branch
    %3623 = sbr.rel (0) target = $region53
  $region52: #{lenet_forward.1} parent=0 // pred_region
    _
  $region53: #{lenet_forward.1} parent=0 // pred_fallthru
    _

</llo_original>
